<compile_context>
chip_gen: v5e
topology: v5e:2x2
jax: 0.10.0
libtpu: 0.0.40
codegen_flags: <defaults>
</compile_context>

<pallas_src>
import functools

import numpy as np
import jax
import jax.numpy as jnp
from jax.experimental import pallas as pl
from jax.experimental.pallas import tpu as pltpu

EPS = 1e-5
SLOPE = 0.01
NUM_GROUPS = 4
K = 3                 # conv kernel size
T = K * K * K         # 27 taps
T_PAD = T + 1         # pad to 28 taps -> bf16 patch rows are (16)-tile aligned


def _res_unit_kernel(x_ref, mask_ref, m_ref,
                     g1_ref, be1_ref, w1_ref, cb1_ref,
                     g2_ref, be2_ref, w2_ref, cb2_ref,
                     o_ref, patch_ref, *, D, H, W):
    C = x_ref.shape[1]
    P = D * H * W
    HW = H * W

    xf = x_ref[0].astype(jnp.float32)          # (C, P), lane-dense
    M2 = m_ref[...]                            # (2C, 2C) block-diag group-average matrix

    def gn_lrelu(v, gamma, beta):
        # GroupNorm(NUM_GROUPS, C) + LeakyReLU(SLOPE); v: (C, P) f32
        s = jnp.sum(v, axis=1, keepdims=True)            # (C, 1) per-channel sum
        ss = jnp.sum(v * v, axis=1, keepdims=True)       # (C, 1) per-channel sumsq
        s_ss = jnp.concatenate([s, ss], axis=0)          # (2C, 1), free sublane concat
        stats = jnp.dot(M2, s_ss, preferred_element_type=jnp.float32)   # one fused dot
        mean = stats[0:C]                                # group mean per channel
        meansq = stats[C:2 * C]                          # group E[x^2] per channel
        var = jnp.maximum(meansq - mean * mean, 0.0)     # biased var, clamped
        y = (v - mean) * jax.lax.rsqrt(var + EPS)
        y = y * gamma + beta                             # (C,1) broadcasts over lanes
        return jnp.where(y >= 0, y, SLOPE * y)

    def tap_piece(v, t):
        # x[cin, neighbor(p) for tap t] at every lane p; out-of-bounds -> 0.  f32.
        if t >= T:
            return jnp.zeros_like(v)                     # padding tap (zero weights too)
        kd, kh, kw = t // 9, (t // 3) % 3, t % 3
        off = (kd - 1) * HW + (kh - 1) * W + (kw - 1)
        if off == 0:                                     # center tap: always valid
            return v
        piece = pltpu.roll(v, shift=(-off) % P, axis=1)  # circular lane roll (XLU)
        # zero lanes whose D/H/W neighbor is out of bounds == exactly the wrapped lanes;
        # keep the multiply in f32 (no bf16 VALU on v5e), cast only at the store.
        return piece * mask_ref[t:t + 1, :]

    def conv3d(v, w_ref_, cbias):
        # 3x3x3 conv, padding=1, as one fused im2col matmul (C, 28C) @ (28C, P).
        for j in range(T_PAD // 2):
            pair = jnp.concatenate([tap_piece(v, 2 * j), tap_piece(v, 2 * j + 1)],
                                   axis=0)               # (2C, P) f32, 8-row boundary
            # single tile-aligned 16-sublane bf16 store per tap pair
            patch_ref[2 * j * C:2 * (j + 1) * C, :] = pair.astype(jnp.bfloat16)
        acc = jnp.dot(w_ref_[...], patch_ref[...],       # bf16 x bf16 -> f32 acc (MXU)
                      preferred_element_type=jnp.float32)
        return acc + cbias                               # (C,1) bias after matmul

    h = gn_lrelu(xf, g1_ref[...], be1_ref[...])
    h = conv3d(h, w1_ref, cb1_ref[...])
    h = gn_lrelu(h, g2_ref[...], be2_ref[...])
    h = conv3d(h, w2_ref, cb2_ref[...])
    o_ref[0] = (h + xf).astype(o_ref.dtype)              # residual add (out.add_(x))


def res_unit_forward(x_ncdhw, gn1_g, gn1_b, w1_dhwio, cb1, gn2_g, gn2_b, w2_dhwio, cb2):
    N, C, D, H, W = x_ncdhw.shape
    assert C % NUM_GROUPS == 0
    P = D * H * W
    assert P % 128 == 0, "flattened spatial extent must be lane aligned"
    Cg = C // NUM_GROUPS

    x_flat = x_ncdhw.reshape(N, C, P)

    # Block-diagonal group-averaging matrix for the fused [sum; sumsq] stat dot:
    # stats = M2 @ [s; ss] gives [group_mean_per_channel; group_meansq_per_channel].
    gid = np.arange(C) // Cg
    m_small = (gid[:, None] == gid[None, :]).astype(np.float32) / float(P * Cg)
    m2 = np.zeros((2 * C, 2 * C), np.float32)
    m2[:C, :C] = m_small
    m2[C:, C:] = m_small
    m2 = jnp.asarray(m2)

    # Per-tap D/H/W validity masks over the flattened spatial axis.  The kernel
    # builds each tap with a circular lane roll; the invalid lanes are exactly
    # the circularly wrapped ones, so these masks restore zero padding.
    p = np.arange(P)
    dd = p // (H * W)
    hh = (p // W) % H
    ww = p % W
    masks = np.empty((T, P), np.float32)
    k = 0
    for kd in range(K):
        for kh in range(K):
            for kw in range(K):
                vd = (dd + kd - 1 >= 0) & (dd + kd - 1 < D)
                vh = (hh + kh - 1 >= 0) & (hh + kh - 1 < H)
                vw = (ww + kw - 1 >= 0) & (ww + kw - 1 < W)
                masks[k] = (vd & vh & vw).astype(np.float32)
                k += 1
    masks = jnp.asarray(masks)

    def pack_w(w_dhwio):
        # (3,3,3,Cin,Cout) -> (Cout, 28*Cin) bf16 matching the patch row layout
        # (tap-major, cin-minor); tap 27 is the zero padding tap.
        w27 = w_dhwio.reshape(T, C, C)                       # (tap, cin, cout)
        wk = jnp.transpose(w27, (2, 0, 1)).reshape(C, T * C)
        wk = jnp.concatenate([wk, jnp.zeros((C, C), wk.dtype)], axis=1)
        return wk.astype(jnp.bfloat16)

    col = lambda v: v.reshape(C, 1).astype(jnp.float32)
    c0 = lambda n: (0, 0)

    kernel = functools.partial(_res_unit_kernel, D=D, H=H, W=W)

    out = pl.pallas_call(
        kernel,
        out_shape=jax.ShapeDtypeStruct((N, C, P), x_ncdhw.dtype),
        grid=(N,),
        in_specs=[
            pl.BlockSpec((1, C, P), lambda n: (n, 0, 0)),    # x (one sample, lane-dense)
            pl.BlockSpec((T, P), c0),                        # per-tap validity masks
            pl.BlockSpec((2 * C, 2 * C), c0),                # block-diag group-avg matrix
            pl.BlockSpec((C, 1), c0),                        # gn1 gamma
            pl.BlockSpec((C, 1), c0),                        # gn1 beta
            pl.BlockSpec((C, T_PAD * C), c0),                # conv1 weight (packed bf16)
            pl.BlockSpec((C, 1), c0),                        # conv1 bias
            pl.BlockSpec((C, 1), c0),                        # gn2 gamma
            pl.BlockSpec((C, 1), c0),                        # gn2 beta
            pl.BlockSpec((C, T_PAD * C), c0),                # conv2 weight (packed bf16)
            pl.BlockSpec((C, 1), c0),                        # conv2 bias
        ],
        out_specs=pl.BlockSpec((1, C, P), lambda n: (n, 0, 0)),
        scratch_shapes=[
            pltpu.VMEM((T_PAD * C, P), jnp.bfloat16),        # bf16 im2col patch
        ],
        compiler_params=pltpu.CompilerParams(dimension_semantics=("parallel",)),
    )(x_flat, masks, m2, col(gn1_g), col(gn1_b), pack_w(w1_dhwio), col(cb1),
      col(gn2_g), col(gn2_b), pack_w(w2_dhwio), col(cb2))

    return out.reshape(N, C, D, H, W)


# ----------------------------- pure-JAX reference -----------------------------
def _gn_ref(v, g, b):                                   # v: NDHWC
    N, D, H, W, C = v.shape
    Cg = C // NUM_GROUPS
    vg = v.reshape(N, D, H, W, NUM_GROUPS, Cg)
    mean = vg.mean(axis=(1, 2, 3, 5), keepdims=True)
    var = ((vg - mean) ** 2).mean(axis=(1, 2, 3, 5), keepdims=True)
    out = ((vg - mean) / jnp.sqrt(var + EPS)).reshape(N, D, H, W, C)
    return out * g.reshape(1, 1, 1, 1, C) + b.reshape(1, 1, 1, 1, C)


def _lrelu_ref(v):
    return jnp.where(v >= 0, v, SLOPE * v)


def _conv_ref(v, w_dhwio, bias):
    out = jax.lax.conv_general_dilated(
        v, w_dhwio, window_strides=(1, 1, 1), padding="SAME",
        dimension_numbers=("NDHWC", "DHWIO", "NDHWC"))
    return out + bias.reshape(1, 1, 1, 1, -1)


def res_unit_ref(x_ncdhw, gn1_g, gn1_b, w1, cb1, gn2_g, gn2_b, w2, cb2):
    x = jnp.transpose(x_ncdhw, (0, 2, 3, 4, 1))         # NCDHW -> NDHWC
    h = _conv_ref(_lrelu_ref(_gn_ref(x, gn1_g, gn1_b)), w1, cb1)
    h = _conv_ref(_lrelu_ref(_gn_ref(h, gn2_g, gn2_b)), w2, cb2)
    return jnp.transpose(h + x, (0, 4, 1, 2, 3))        # NDHWC -> NCDHW


# ------------------------------------ main ------------------------------------
if __name__ == "__main__":
    N, C, D, H, W = 2, 8, 8, 8, 8   # in_ch == out_ch == 8 (residual add requires it)

    key = jax.random.PRNGKey(0)
    ks = jax.random.split(key, 9)
    x = jax.random.normal(ks[0], (N, C, D, H, W), jnp.float32)          # NCDHW
    gn1_g = 1.0 + 0.1 * jax.random.normal(ks[1], (C,), jnp.float32)
    gn1_b = 0.1 * jax.random.normal(ks[2], (C,), jnp.float32)
    w1 = 0.05 * jax.random.normal(ks[3], (K, K, K, C, C), jnp.float32)  # DHWIO
    cb1 = 0.1 * jax.random.normal(ks[4], (C,), jnp.float32)
    gn2_g = 1.0 + 0.1 * jax.random.normal(ks[5], (C,), jnp.float32)
    gn2_b = 0.1 * jax.random.normal(ks[6], (C,), jnp.float32)
    w2 = 0.05 * jax.random.normal(ks[7], (K, K, K, C, C), jnp.float32)  # DHWIO
    cb2 = 0.1 * jax.random.normal(ks[8], (C,), jnp.float32)

    out = res_unit_forward(x, gn1_g, gn1_b, w1, cb1, gn2_g, gn2_b, w2, cb2)
    out = jax.block_until_ready(out)

    ref = res_unit_ref(x, gn1_g, gn1_b, w1, cb1, gn2_g, gn2_b, w2, cb2)
    assert out.shape == (N, C, D, H, W)
    # The kernel uses bf16 MXU operands (f32 accumulation), so allow ~1e-3-level
    # differences vs. the pure-f32 reference; 1e-2 still catches any structural /
    # layout / indexing bug.
    err = float(jnp.max(jnp.abs(out - ref)))
    assert bool(jnp.allclose(out, ref, atol=1e-2, rtol=1e-2)), f"max abs err = {err}"

    print("KERNEL_OK")
</pallas_src>

<mosaic_0001>
module attributes {stable_mosaic.version = 11 : i64} {
  func.func @_res_unit_kernel(%arg0: i32, %arg1: memref<1x8x512xf32, #tpu.memory_space<vmem>>, %arg2: memref<27x512xf32, #tpu.memory_space<vmem>>, %arg3: memref<16x16xf32, #tpu.memory_space<vmem>>, %arg4: memref<8x1xf32, #tpu.memory_space<vmem>>, %arg5: memref<8x1xf32, #tpu.memory_space<vmem>>, %arg6: memref<8x224xbf16, #tpu.memory_space<vmem>>, %arg7: memref<8x1xf32, #tpu.memory_space<vmem>>, %arg8: memref<8x1xf32, #tpu.memory_space<vmem>>, %arg9: memref<8x1xf32, #tpu.memory_space<vmem>>, %arg10: memref<8x224xbf16, #tpu.memory_space<vmem>>, %arg11: memref<8x1xf32, #tpu.memory_space<vmem>>, %arg12: memref<1x8x512xf32, #tpu.memory_space<vmem>>, %arg13: memref<224x512xbf16, #tpu.memory_space<vmem>>) attributes {dimension_semantics = [#tpu.dimension_semantics<parallel>], iteration_bounds = array<i64: 2>, scalar_prefetch = 0 : i64, scratch_operands = 1 : i64, tpu.core_type = #tpu.core_type<tc>, window_params = [{transform_indices = @transform_0, window_bounds = array<i64: 1, 8, 512>}, {pipeline_mode = #tpu.pipeline_mode<synchronous>, transform_indices = @transform_1, window_bounds = array<i64: 27, 512>}, {pipeline_mode = #tpu.pipeline_mode<synchronous>, transform_indices = @transform_2, window_bounds = array<i64: 16, 16>}, {pipeline_mode = #tpu.pipeline_mode<synchronous>, transform_indices = @transform_3, window_bounds = array<i64: 8, 1>}, {pipeline_mode = #tpu.pipeline_mode<synchronous>, transform_indices = @transform_4, window_bounds = array<i64: 8, 1>}, {pipeline_mode = #tpu.pipeline_mode<synchronous>, transform_indices = @transform_5, window_bounds = array<i64: 8, 224>}, {pipeline_mode = #tpu.pipeline_mode<synchronous>, transform_indices = @transform_6, window_bounds = array<i64: 8, 1>}, {pipeline_mode = #tpu.pipeline_mode<synchronous>, transform_indices = @transform_7, window_bounds = array<i64: 8, 1>}, {pipeline_mode = #tpu.pipeline_mode<synchronous>, transform_indices = @transform_8, window_bounds = array<i64: 8, 1>}, {pipeline_mode = #tpu.pipeline_mode<synchronous>, transform_indices = @transform_9, window_bounds = array<i64: 8, 224>}, {pipeline_mode = #tpu.pipeline_mode<synchronous>, transform_indices = @transform_10, window_bounds = array<i64: 8, 1>}, {transform_indices = @transform_11, window_bounds = array<i64: 1, 8, 512>}]} {
    %c0 = arith.constant 0 : index
    %c0_0 = arith.constant 0 : index
    %c0_1 = arith.constant 0 : index
    %0 = vector.load %arg1[%c0, %c0_0, %c0_1] : memref<1x8x512xf32, #tpu.memory_space<vmem>>, vector<1x8x512xf32>
    %1 = vector.shape_cast %0 : vector<1x8x512xf32> to vector<8x512xf32>
    %c0_2 = arith.constant 0 : index
    %c0_3 = arith.constant 0 : index
    %2 = vector.load %arg3[%c0_2, %c0_3] : memref<16x16xf32, #tpu.memory_space<vmem>>, vector<16x16xf32>
    %c0_4 = arith.constant 0 : index
    %c0_5 = arith.constant 0 : index
    %3 = vector.load %arg4[%c0_4, %c0_5] : memref<8x1xf32, #tpu.memory_space<vmem>>, vector<8x1xf32>
    %c0_6 = arith.constant 0 : index
    %c0_7 = arith.constant 0 : index
    %4 = vector.load %arg5[%c0_6, %c0_7] : memref<8x1xf32, #tpu.memory_space<vmem>>, vector<8x1xf32>
    %cst = arith.constant dense<0.000000e+00> : vector<8xf32>
    %5 = vector.multi_reduction <add>, %1, %cst [1] : vector<8x512xf32> to vector<8xf32>
    %6 = vector.shape_cast %5 : vector<8xf32> to vector<8x1xf32>
    %7 = arith.mulf %1, %1 : vector<8x512xf32>
    %cst_8 = arith.constant dense<0.000000e+00> : vector<8xf32>
    %8 = vector.multi_reduction <add>, %7, %cst_8 [1] : vector<8x512xf32> to vector<8xf32>
    %9 = vector.shape_cast %8 : vector<8xf32> to vector<8x1xf32>
    %10 = tpu.concatenate %6, %9 in 0 : vector<8x1xf32>, vector<8x1xf32> -> vector<16x1xf32>
    %cst_9 = arith.constant dense<0.000000e+00> : vector<16x1xf32>
    %11 = tpu.matmul %2, %10, %cst_9 {dimension_numbers = #tpu.dot_dimension_numbers<[1], [0], [0], [1], [0, 0, 1, 1], [], []>} : vector<16x16xf32>, vector<16x1xf32>, vector<16x1xf32> -> vector<16x1xf32>
    %12 = vector.extract_strided_slice %11 {offsets = [0, 0], sizes = [8, 1], strides = [1, 1]} : vector<16x1xf32> to vector<8x1xf32>
    %13 = vector.extract_strided_slice %11 {offsets = [8, 0], sizes = [8, 1], strides = [1, 1]} : vector<16x1xf32> to vector<8x1xf32>
    %14 = arith.mulf %12, %12 : vector<8x1xf32>
    %15 = arith.subf %13, %14 : vector<8x1xf32>
    %cst_10 = arith.constant 0.000000e+00 : f32
    %16 = vector.broadcast %cst_10 : f32 to vector<8x1xf32>
    %17 = arith.maximumf %15, %16 : vector<8x1xf32>
    %18 = vector.broadcast %12 : vector<8x1xf32> to vector<8x512xf32>
    %19 = arith.subf %1, %18 : vector<8x512xf32>
    %cst_11 = arith.constant 9.99999974E-6 : f32
    %20 = vector.broadcast %cst_11 : f32 to vector<8x1xf32>
    %21 = arith.addf %17, %20 : vector<8x1xf32>
    %22 = math.rsqrt %21 : vector<8x1xf32>
    %23 = vector.broadcast %22 : vector<8x1xf32> to vector<8x512xf32>
    %24 = arith.mulf %19, %23 : vector<8x512xf32>
    %25 = vector.broadcast %3 : vector<8x1xf32> to vector<8x512xf32>
    %26 = arith.mulf %24, %25 : vector<8x512xf32>
    %27 = vector.broadcast %4 : vector<8x1xf32> to vector<8x512xf32>
    %28 = arith.addf %26, %27 : vector<8x512xf32>
    %cst_12 = arith.constant 0.000000e+00 : f32
    %29 = vector.broadcast %cst_12 : f32 to vector<8x512xf32>
    %30 = arith.cmpf oge, %28, %29 : vector<8x512xf32>
    %cst_13 = arith.constant 0.00999999977 : f32
    %31 = vector.broadcast %cst_13 : f32 to vector<8x512xf32>
    %32 = arith.mulf %31, %28 : vector<8x512xf32>
    %33 = arith.select %30, %28, %32 : vector<8x512xi1>, vector<8x512xf32>
    %c0_14 = arith.constant 0 : index
    %c0_15 = arith.constant 0 : index
    %34 = vector.load %arg7[%c0_14, %c0_15] : memref<8x1xf32, #tpu.memory_space<vmem>>, vector<8x1xf32>
    %c73_i32 = arith.constant 73 : i32
    %35 = tpu.dynamic_rotate %33 by %c73_i32 dim 1 : vector<8x512xf32>, i32 -> vector<8x512xf32>
    %c0_16 = arith.constant 0 : index
    %c0_17 = arith.constant 0 : index
    %36 = vector.load %arg2[%c0_16, %c0_17] : memref<27x512xf32, #tpu.memory_space<vmem>>, vector<1x512xf32>
    %37 = vector.broadcast %36 : vector<1x512xf32> to vector<8x512xf32>
    %38 = arith.mulf %35, %37 : vector<8x512xf32>
    %c72_i32 = arith.constant 72 : i32
    %39 = tpu.dynamic_rotate %33 by %c72_i32 dim 1 : vector<8x512xf32>, i32 -> vector<8x512xf32>
    %c1 = arith.constant 1 : index
    %c0_18 = arith.constant 0 : index
    %40 = vector.load %arg2[%c1, %c0_18] : memref<27x512xf32, #tpu.memory_space<vmem>>, vector<1x512xf32>
    %41 = vector.broadcast %40 : vector<1x512xf32> to vector<8x512xf32>
    %42 = arith.mulf %39, %41 : vector<8x512xf32>
    %43 = tpu.concatenate %38, %42 in 0 : vector<8x512xf32>, vector<8x512xf32> -> vector<16x512xf32>
    %44 = arith.truncf %43 : vector<16x512xf32> to vector<16x512xbf16>
    %c0_19 = arith.constant 0 : index
    %c0_20 = arith.constant 0 : index
    %45 = vector.load %arg13[%c0_19, %c0_20] : memref<224x512xbf16, #tpu.memory_space<vmem>>, vector<16x512xbf16>
    tpu.vector_store %arg13[%c0_19, %c0_20], %44 {strides = array<i32>} : memref<224x512xbf16, #tpu.memory_space<vmem>>, vector<16x512xbf16>,
    %c71_i32 = arith.constant 71 : i32
    %46 = tpu.dynamic_rotate %33 by %c71_i32 dim 1 : vector<8x512xf32>, i32 -> vector<8x512xf32>
    %c2 = arith.constant 2 : index
    %c0_21 = arith.constant 0 : index
    %47 = vector.load %arg2[%c2, %c0_21] : memref<27x512xf32, #tpu.memory_space<vmem>>, vector<1x512xf32>
    %48 = vector.broadcast %47 : vector<1x512xf32> to vector<8x512xf32>
    %49 = arith.mulf %46, %48 : vector<8x512xf32>
    %c65_i32 = arith.constant 65 : i32
    %50 = tpu.dynamic_rotate %33 by %c65_i32 dim 1 : vector<8x512xf32>, i32 -> vector<8x512xf32>
    %c3 = arith.constant 3 : index
    %c0_22 = arith.constant 0 : index
    %51 = vector.load %arg2[%c3, %c0_22] : memref<27x512xf32, #tpu.memory_space<vmem>>, vector<1x512xf32>
    %52 = vector.broadcast %51 : vector<1x512xf32> to vector<8x512xf32>
    %53 = arith.mulf %50, %52 : vector<8x512xf32>
    %54 = tpu.concatenate %49, %53 in 0 : vector<8x512xf32>, vector<8x512xf32> -> vector<16x512xf32>
    %55 = arith.truncf %54 : vector<16x512xf32> to vector<16x512xbf16>
    %c16 = arith.constant 16 : index
    %c0_23 = arith.constant 0 : index
    %56 = vector.load %arg13[%c16, %c0_23] : memref<224x512xbf16, #tpu.memory_space<vmem>>, vector<16x512xbf16>
    tpu.vector_store %arg13[%c16, %c0_23], %55 {strides = array<i32>} : memref<224x512xbf16, #tpu.memory_space<vmem>>, vector<16x512xbf16>,
    %c64_i32 = arith.constant 64 : i32
    %57 = tpu.dynamic_rotate %33 by %c64_i32 dim 1 : vector<8x512xf32>, i32 -> vector<8x512xf32>
    %c4 = arith.constant 4 : index
    %c0_24 = arith.constant 0 : index
    %58 = vector.load %arg2[%c4, %c0_24] : memref<27x512xf32, #tpu.memory_space<vmem>>, vector<1x512xf32>
    %59 = vector.broadcast %58 : vector<1x512xf32> to vector<8x512xf32>
    %60 = arith.mulf %57, %59 : vector<8x512xf32>
    %c63_i32 = arith.constant 63 : i32
    %61 = tpu.dynamic_rotate %33 by %c63_i32 dim 1 : vector<8x512xf32>, i32 -> vector<8x512xf32>
    %c5 = arith.constant 5 : index
    %c0_25 = arith.constant 0 : index
    %62 = vector.load %arg2[%c5, %c0_25] : memref<27x512xf32, #tpu.memory_space<vmem>>, vector<1x512xf32>
    %63 = vector.broadcast %62 : vector<1x512xf32> to vector<8x512xf32>
    %64 = arith.mulf %61, %63 : vector<8x512xf32>
    %65 = tpu.concatenate %60, %64 in 0 : vector<8x512xf32>, vector<8x512xf32> -> vector<16x512xf32>
    %66 = arith.truncf %65 : vector<16x512xf32> to vector<16x512xbf16>
    %c32 = arith.constant 32 : index
    %c0_26 = arith.constant 0 : index
    %67 = vector.load %arg13[%c32, %c0_26] : memref<224x512xbf16, #tpu.memory_space<vmem>>, vector<16x512xbf16>
    tpu.vector_store %arg13[%c32, %c0_26], %66 {strides = array<i32>} : memref<224x512xbf16, #tpu.memory_space<vmem>>, vector<16x512xbf16>,
    %c57_i32 = arith.constant 57 : i32
    %68 = tpu.dynamic_rotate %33 by %c57_i32 dim 1 : vector<8x512xf32>, i32 -> vector<8x512xf32>
    %c6 = arith.constant 6 : index
    %c0_27 = arith.constant 0 : index
    %69 = vector.load %arg2[%c6, %c0_27] : memref<27x512xf32, #tpu.memory_space<vmem>>, vector<1x512xf32>
    %70 = vector.broadcast %69 : vector<1x512xf32> to vector<8x512xf32>
    %71 = arith.mulf %68, %70 : vector<8x512xf32>
    %c56_i32 = arith.constant 56 : i32
    %72 = tpu.dynamic_rotate %33 by %c56_i32 dim 1 : vector<8x512xf32>, i32 -> vector<8x512xf32>
    %c7 = arith.constant 7 : index
    %c0_28 = arith.constant 0 : index
    %73 = vector.load %arg2[%c7, %c0_28] : memref<27x512xf32, #tpu.memory_space<vmem>>, vector<1x512xf32>
    %74 = vector.broadcast %73 : vector<1x512xf32> to vector<8x512xf32>
    %75 = arith.mulf %72, %74 : vector<8x512xf32>
    %76 = tpu.concatenate %71, %75 in 0 : vector<8x512xf32>, vector<8x512xf32> -> vector<16x512xf32>
    %77 = arith.truncf %76 : vector<16x512xf32> to vector<16x512xbf16>
    %c48 = arith.constant 48 : index
    %c0_29 = arith.constant 0 : index
    %78 = vector.load %arg13[%c48, %c0_29] : memref<224x512xbf16, #tpu.memory_space<vmem>>, vector<16x512xbf16>
    tpu.vector_store %arg13[%c48, %c0_29], %77 {strides = array<i32>} : memref<224x512xbf16, #tpu.memory_space<vmem>>, vector<16x512xbf16>,
    %c55_i32 = arith.constant 55 : i32
    %79 = tpu.dynamic_rotate %33 by %c55_i32 dim 1 : vector<8x512xf32>, i32 -> vector<8x512xf32>
    %c8 = arith.constant 8 : index
    %c0_30 = arith.constant 0 : index
    %80 = vector.load %arg2[%c8, %c0_30] : memref<27x512xf32, #tpu.memory_space<vmem>>, vector<1x512xf32>
    %81 = vector.broadcast %80 : vector<1x512xf32> to vector<8x512xf32>
    %82 = arith.mulf %79, %81 : vector<8x512xf32>
    %c9_i32 = arith.constant 9 : i32
    %83 = tpu.dynamic_rotate %33 by %c9_i32 dim 1 : vector<8x512xf32>, i32 -> vector<8x512xf32>
    %c9 = arith.constant 9 : index
    %c0_31 = arith.constant 0 : index
    %84 = vector.load %arg2[%c9, %c0_31] : memref<27x512xf32, #tpu.memory_space<vmem>>, vector<1x512xf32>
    %85 = vector.broadcast %84 : vector<1x512xf32> to vector<8x512xf32>
    %86 = arith.mulf %83, %85 : vector<8x512xf32>
    %87 = tpu.concatenate %82, %86 in 0 : vector<8x512xf32>, vector<8x512xf32> -> vector<16x512xf32>
    %88 = arith.truncf %87 : vector<16x512xf32> to vector<16x512xbf16>
    %c64 = arith.constant 64 : index
    %c0_32 = arith.constant 0 : index
    %89 = vector.load %arg13[%c64, %c0_32] : memref<224x512xbf16, #tpu.memory_space<vmem>>, vector<16x512xbf16>
    tpu.vector_store %arg13[%c64, %c0_32], %88 {strides = array<i32>} : memref<224x512xbf16, #tpu.memory_space<vmem>>, vector<16x512xbf16>,
    %c8_i32 = arith.constant 8 : i32
    %90 = tpu.dynamic_rotate %33 by %c8_i32 dim 1 : vector<8x512xf32>, i32 -> vector<8x512xf32>
    %c10 = arith.constant 10 : index
    %c0_33 = arith.constant 0 : index
    %91 = vector.load %arg2[%c10, %c0_33] : memref<27x512xf32, #tpu.memory_space<vmem>>, vector<1x512xf32>
    %92 = vector.broadcast %91 : vector<1x512xf32> to vector<8x512xf32>
    %93 = arith.mulf %90, %92 : vector<8x512xf32>
    %c7_i32 = arith.constant 7 : i32
    %94 = tpu.dynamic_rotate %33 by %c7_i32 dim 1 : vector<8x512xf32>, i32 -> vector<8x512xf32>
    %c11 = arith.constant 11 : index
    %c0_34 = arith.constant 0 : index
    %95 = vector.load %arg2[%c11, %c0_34] : memref<27x512xf32, #tpu.memory_space<vmem>>, vector<1x512xf32>
    %96 = vector.broadcast %95 : vector<1x512xf32> to vector<8x512xf32>
    %97 = arith.mulf %94, %96 : vector<8x512xf32>
    %98 = tpu.concatenate %93, %97 in 0 : vector<8x512xf32>, vector<8x512xf32> -> vector<16x512xf32>
    %99 = arith.truncf %98 : vector<16x512xf32> to vector<16x512xbf16>
    %c80 = arith.constant 80 : index
    %c0_35 = arith.constant 0 : index
    %100 = vector.load %arg13[%c80, %c0_35] : memref<224x512xbf16, #tpu.memory_space<vmem>>, vector<16x512xbf16>
    tpu.vector_store %arg13[%c80, %c0_35], %99 {strides = array<i32>} : memref<224x512xbf16, #tpu.memory_space<vmem>>, vector<16x512xbf16>,
    %c1_i32 = arith.constant 1 : i32
    %101 = tpu.dynamic_rotate %33 by %c1_i32 dim 1 : vector<8x512xf32>, i32 -> vector<8x512xf32>
    %c12 = arith.constant 12 : index
    %c0_36 = arith.constant 0 : index
    %102 = vector.load %arg2[%c12, %c0_36] : memref<27x512xf32, #tpu.memory_space<vmem>>, vector<1x512xf32>
    %103 = vector.broadcast %102 : vector<1x512xf32> to vector<8x512xf32>
    %104 = arith.mulf %101, %103 : vector<8x512xf32>
    %105 = tpu.concatenate %104, %33 in 0 : vector<8x512xf32>, vector<8x512xf32> -> vector<16x512xf32>
    %106 = arith.truncf %105 : vector<16x512xf32> to vector<16x512xbf16>
    %c96 = arith.constant 96 : index
    %c0_37 = arith.constant 0 : index
    %107 = vector.load %arg13[%c96, %c0_37] : memref<224x512xbf16, #tpu.memory_space<vmem>>, vector<16x512xbf16>
    tpu.vector_store %arg13[%c96, %c0_37], %106 {strides = array<i32>} : memref<224x512xbf16, #tpu.memory_space<vmem>>, vector<16x512xbf16>,
    %c511_i32 = arith.constant 511 : i32
    %108 = tpu.dynamic_rotate %33 by %c511_i32 dim 1 : vector<8x512xf32>, i32 -> vector<8x512xf32>
    %c14 = arith.constant 14 : index
    %c0_38 = arith.constant 0 : index
    %109 = vector.load %arg2[%c14, %c0_38] : memref<27x512xf32, #tpu.memory_space<vmem>>, vector<1x512xf32>
    %110 = vector.broadcast %109 : vector<1x512xf32> to vector<8x512xf32>
    %111 = arith.mulf %108, %110 : vector<8x512xf32>
    %c505_i32 = arith.constant 505 : i32
    %112 = tpu.dynamic_rotate %33 by %c505_i32 dim 1 : vector<8x512xf32>, i32 -> vector<8x512xf32>
    %c15 = arith.constant 15 : index
    %c0_39 = arith.constant 0 : index
    %113 = vector.load %arg2[%c15, %c0_39] : memref<27x512xf32, #tpu.memory_space<vmem>>, vector<1x512xf32>
    %114 = vector.broadcast %113 : vector<1x512xf32> to vector<8x512xf32>
    %115 = arith.mulf %112, %114 : vector<8x512xf32>
    %116 = tpu.concatenate %111, %115 in 0 : vector<8x512xf32>, vector<8x512xf32> -> vector<16x512xf32>
    %117 = arith.truncf %116 : vector<16x512xf32> to vector<16x512xbf16>
    %c112 = arith.constant 112 : index
    %c0_40 = arith.constant 0 : index
    %118 = vector.load %arg13[%c112, %c0_40] : memref<224x512xbf16, #tpu.memory_space<vmem>>, vector<16x512xbf16>
    tpu.vector_store %arg13[%c112, %c0_40], %117 {strides = array<i32>} : memref<224x512xbf16, #tpu.memory_space<vmem>>, vector<16x512xbf16>,
    %c504_i32 = arith.constant 504 : i32
    %119 = tpu.dynamic_rotate %33 by %c504_i32 dim 1 : vector<8x512xf32>, i32 -> vector<8x512xf32>
    %c16_41 = arith.constant 16 : index
    %c0_42 = arith.constant 0 : index
    %120 = vector.load %arg2[%c16_41, %c0_42] : memref<27x512xf32, #tpu.memory_space<vmem>>, vector<1x512xf32>
    %121 = vector.broadcast %120 : vector<1x512xf32> to vector<8x512xf32>
    %122 = arith.mulf %119, %121 : vector<8x512xf32>
    %c503_i32 = arith.constant 503 : i32
    %123 = tpu.dynamic_rotate %33 by %c503_i32 dim 1 : vector<8x512xf32>, i32 -> vector<8x512xf32>
    %c17 = arith.constant 17 : index
    %c0_43 = arith.constant 0 : index
    %124 = vector.load %arg2[%c17, %c0_43] : memref<27x512xf32, #tpu.memory_space<vmem>>, vector<1x512xf32>
    %125 = vector.broadcast %124 : vector<1x512xf32> to vector<8x512xf32>
    %126 = arith.mulf %123, %125 : vector<8x512xf32>
    %127 = tpu.concatenate %122, %126 in 0 : vector<8x512xf32>, vector<8x512xf32> -> vector<16x512xf32>
    %128 = arith.truncf %127 : vector<16x512xf32> to vector<16x512xbf16>
    %c128 = arith.constant 128 : index
    %c0_44 = arith.constant 0 : index
    %129 = vector.load %arg13[%c128, %c0_44] : memref<224x512xbf16, #tpu.memory_space<vmem>>, vector<16x512xbf16>
    tpu.vector_store %arg13[%c128, %c0_44], %128 {strides = array<i32>} : memref<224x512xbf16, #tpu.memory_space<vmem>>, vector<16x512xbf16>,
    %c457_i32 = arith.constant 457 : i32
    %130 = tpu.dynamic_rotate %33 by %c457_i32 dim 1 : vector<8x512xf32>, i32 -> vector<8x512xf32>
    %c18 = arith.constant 18 : index
    %c0_45 = arith.constant 0 : index
    %131 = vector.load %arg2[%c18, %c0_45] : memref<27x512xf32, #tpu.memory_space<vmem>>, vector<1x512xf32>
    %132 = vector.broadcast %131 : vector<1x512xf32> to vector<8x512xf32>
    %133 = arith.mulf %130, %132 : vector<8x512xf32>
    %c456_i32 = arith.constant 456 : i32
    %134 = tpu.dynamic_rotate %33 by %c456_i32 dim 1 : vector<8x512xf32>, i32 -> vector<8x512xf32>
    %c19 = arith.constant 19 : index
    %c0_46 = arith.constant 0 : index
    %135 = vector.load %arg2[%c19, %c0_46] : memref<27x512xf32, #tpu.memory_space<vmem>>, vector<1x512xf32>
    %136 = vector.broadcast %135 : vector<1x512xf32> to vector<8x512xf32>
    %137 = arith.mulf %134, %136 : vector<8x512xf32>
    %138 = tpu.concatenate %133, %137 in 0 : vector<8x512xf32>, vector<8x512xf32> -> vector<16x512xf32>
    %139 = arith.truncf %138 : vector<16x512xf32> to vector<16x512xbf16>
    %c144 = arith.constant 144 : index
    %c0_47 = arith.constant 0 : index
    %140 = vector.load %arg13[%c144, %c0_47] : memref<224x512xbf16, #tpu.memory_space<vmem>>, vector<16x512xbf16>
    tpu.vector_store %arg13[%c144, %c0_47], %139 {strides = array<i32>} : memref<224x512xbf16, #tpu.memory_space<vmem>>, vector<16x512xbf16>,
    %c455_i32 = arith.constant 455 : i32
    %141 = tpu.dynamic_rotate %33 by %c455_i32 dim 1 : vector<8x512xf32>, i32 -> vector<8x512xf32>
    %c20 = arith.constant 20 : index
    %c0_48 = arith.constant 0 : index
    %142 = vector.load %arg2[%c20, %c0_48] : memref<27x512xf32, #tpu.memory_space<vmem>>, vector<1x512xf32>
    %143 = vector.broadcast %142 : vector<1x512xf32> to vector<8x512xf32>
    %144 = arith.mulf %141, %143 : vector<8x512xf32>
    %c449_i32 = arith.constant 449 : i32
    %145 = tpu.dynamic_rotate %33 by %c449_i32 dim 1 : vector<8x512xf32>, i32 -> vector<8x512xf32>
    %c21 = arith.constant 21 : index
    %c0_49 = arith.constant 0 : index
    %146 = vector.load %arg2[%c21, %c0_49] : memref<27x512xf32, #tpu.memory_space<vmem>>, vector<1x512xf32>
    %147 = vector.broadcast %146 : vector<1x512xf32> to vector<8x512xf32>
    %148 = arith.mulf %145, %147 : vector<8x512xf32>
    %149 = tpu.concatenate %144, %148 in 0 : vector<8x512xf32>, vector<8x512xf32> -> vector<16x512xf32>
    %150 = arith.truncf %149 : vector<16x512xf32> to vector<16x512xbf16>
    %c160 = arith.constant 160 : index
    %c0_50 = arith.constant 0 : index
    %151 = vector.load %arg13[%c160, %c0_50] : memref<224x512xbf16, #tpu.memory_space<vmem>>, vector<16x512xbf16>
    tpu.vector_store %arg13[%c160, %c0_50], %150 {strides = array<i32>} : memref<224x512xbf16, #tpu.memory_space<vmem>>, vector<16x512xbf16>,
    %c448_i32 = arith.constant 448 : i32
    %152 = tpu.dynamic_rotate %33 by %c448_i32 dim 1 : vector<8x512xf32>, i32 -> vector<8x512xf32>
    %c22 = arith.constant 22 : index
    %c0_51 = arith.constant 0 : index
    %153 = vector.load %arg2[%c22, %c0_51] : memref<27x512xf32, #tpu.memory_space<vmem>>, vector<1x512xf32>
    %154 = vector.broadcast %153 : vector<1x512xf32> to vector<8x512xf32>
    %155 = arith.mulf %152, %154 : vector<8x512xf32>
    %c447_i32 = arith.constant 447 : i32
    %156 = tpu.dynamic_rotate %33 by %c447_i32 dim 1 : vector<8x512xf32>, i32 -> vector<8x512xf32>
    %c23 = arith.constant 23 : index
    %c0_52 = arith.constant 0 : index
    %157 = vector.load %arg2[%c23, %c0_52] : memref<27x512xf32, #tpu.memory_space<vmem>>, vector<1x512xf32>
    %158 = vector.broadcast %157 : vector<1x512xf32> to vector<8x512xf32>
    %159 = arith.mulf %156, %158 : vector<8x512xf32>
    %160 = tpu.concatenate %155, %159 in 0 : vector<8x512xf32>, vector<8x512xf32> -> vector<16x512xf32>
    %161 = arith.truncf %160 : vector<16x512xf32> to vector<16x512xbf16>
    %c176 = arith.constant 176 : index
    %c0_53 = arith.constant 0 : index
    %162 = vector.load %arg13[%c176, %c0_53] : memref<224x512xbf16, #tpu.memory_space<vmem>>, vector<16x512xbf16>
    tpu.vector_store %arg13[%c176, %c0_53], %161 {strides = array<i32>} : memref<224x512xbf16, #tpu.memory_space<vmem>>, vector<16x512xbf16>,
    %c441_i32 = arith.constant 441 : i32
    %163 = tpu.dynamic_rotate %33 by %c441_i32 dim 1 : vector<8x512xf32>, i32 -> vector<8x512xf32>
    %c24 = arith.constant 24 : index
    %c0_54 = arith.constant 0 : index
    %164 = vector.load %arg2[%c24, %c0_54] : memref<27x512xf32, #tpu.memory_space<vmem>>, vector<1x512xf32>
    %165 = vector.broadcast %164 : vector<1x512xf32> to vector<8x512xf32>
    %166 = arith.mulf %163, %165 : vector<8x512xf32>
    %c440_i32 = arith.constant 440 : i32
    %167 = tpu.dynamic_rotate %33 by %c440_i32 dim 1 : vector<8x512xf32>, i32 -> vector<8x512xf32>
    %c25 = arith.constant 25 : index
    %c0_55 = arith.constant 0 : index
    %168 = vector.load %arg2[%c25, %c0_55] : memref<27x512xf32, #tpu.memory_space<vmem>>, vector<1x512xf32>
    %169 = vector.broadcast %168 : vector<1x512xf32> to vector<8x512xf32>
    %170 = arith.mulf %167, %169 : vector<8x512xf32>
    %171 = tpu.concatenate %166, %170 in 0 : vector<8x512xf32>, vector<8x512xf32> -> vector<16x512xf32>
    %172 = arith.truncf %171 : vector<16x512xf32> to vector<16x512xbf16>
    %c192 = arith.constant 192 : index
    %c0_56 = arith.constant 0 : index
    %173 = vector.load %arg13[%c192, %c0_56] : memref<224x512xbf16, #tpu.memory_space<vmem>>, vector<16x512xbf16>
    tpu.vector_store %arg13[%c192, %c0_56], %172 {strides = array<i32>} : memref<224x512xbf16, #tpu.memory_space<vmem>>, vector<16x512xbf16>,
    %c439_i32 = arith.constant 439 : i32
    %174 = tpu.dynamic_rotate %33 by %c439_i32 dim 1 : vector<8x512xf32>, i32 -> vector<8x512xf32>
    %c26 = arith.constant 26 : index
    %c0_57 = arith.constant 0 : index
    %175 = vector.load %arg2[%c26, %c0_57] : memref<27x512xf32, #tpu.memory_space<vmem>>, vector<1x512xf32>
    %176 = vector.broadcast %175 : vector<1x512xf32> to vector<8x512xf32>
    %177 = arith.mulf %174, %176 : vector<8x512xf32>
    %cst_58 = arith.constant 0.000000e+00 : f32
    %178 = vector.broadcast %cst_58 : f32 to vector<8x512xf32>
    %179 = tpu.concatenate %177, %178 in 0 : vector<8x512xf32>, vector<8x512xf32> -> vector<16x512xf32>
    %180 = arith.truncf %179 : vector<16x512xf32> to vector<16x512xbf16>
    %c208 = arith.constant 208 : index
    %c0_59 = arith.constant 0 : index
    %181 = vector.load %arg13[%c208, %c0_59] : memref<224x512xbf16, #tpu.memory_space<vmem>>, vector<16x512xbf16>
    tpu.vector_store %arg13[%c208, %c0_59], %180 {strides = array<i32>} : memref<224x512xbf16, #tpu.memory_space<vmem>>, vector<16x512xbf16>,
    %c0_60 = arith.constant 0 : index
    %c0_61 = arith.constant 0 : index
    %182 = vector.load %arg6[%c0_60, %c0_61] : memref<8x224xbf16, #tpu.memory_space<vmem>>, vector<8x224xbf16>
    %c0_62 = arith.constant 0 : index
    %c0_63 = arith.constant 0 : index
    %183 = vector.load %arg13[%c0_62, %c0_63] : memref<224x512xbf16, #tpu.memory_space<vmem>>, vector<224x512xbf16>
    %cst_64 = arith.constant dense<0.000000e+00> : vector<8x512xf32>
    %184 = tpu.matmul %182, %183, %cst_64 {dimension_numbers = #tpu.dot_dimension_numbers<[1], [0], [0], [1], [0, 0, 1, 1], [], []>} : vector<8x224xbf16>, vector<224x512xbf16>, vector<8x512xf32> -> vector<8x512xf32>
    %185 = vector.broadcast %34 : vector<8x1xf32> to vector<8x512xf32>
    %186 = arith.addf %184, %185 : vector<8x512xf32>
    %c0_65 = arith.constant 0 : index
    %c0_66 = arith.constant 0 : index
    %187 = vector.load %arg8[%c0_65, %c0_66] : memref<8x1xf32, #tpu.memory_space<vmem>>, vector<8x1xf32>
    %c0_67 = arith.constant 0 : index
    %c0_68 = arith.constant 0 : index
    %188 = vector.load %arg9[%c0_67, %c0_68] : memref<8x1xf32, #tpu.memory_space<vmem>>, vector<8x1xf32>
    %cst_69 = arith.constant dense<0.000000e+00> : vector<8xf32>
    %189 = vector.multi_reduction <add>, %186, %cst_69 [1] : vector<8x512xf32> to vector<8xf32>
    %190 = vector.shape_cast %189 : vector<8xf32> to vector<8x1xf32>
    %191 = arith.mulf %186, %186 : vector<8x512xf32>
    %cst_70 = arith.constant dense<0.000000e+00> : vector<8xf32>
    %192 = vector.multi_reduction <add>, %191, %cst_70 [1] : vector<8x512xf32> to vector<8xf32>
    %193 = vector.shape_cast %192 : vector<8xf32> to vector<8x1xf32>
    %194 = tpu.concatenate %190, %193 in 0 : vector<8x1xf32>, vector<8x1xf32> -> vector<16x1xf32>
    %cst_71 = arith.constant dense<0.000000e+00> : vector<16x1xf32>
    %195 = tpu.matmul %2, %194, %cst_71 {dimension_numbers = #tpu.dot_dimension_numbers<[1], [0], [0], [1], [0, 0, 1, 1], [], []>} : vector<16x16xf32>, vector<16x1xf32>, vector<16x1xf32> -> vector<16x1xf32>
    %196 = vector.extract_strided_slice %195 {offsets = [0, 0], sizes = [8, 1], strides = [1, 1]} : vector<16x1xf32> to vector<8x1xf32>
    %197 = vector.extract_strided_slice %195 {offsets = [8, 0], sizes = [8, 1], strides = [1, 1]} : vector<16x1xf32> to vector<8x1xf32>
    %198 = arith.mulf %196, %196 : vector<8x1xf32>
    %199 = arith.subf %197, %198 : vector<8x1xf32>
    %cst_72 = arith.constant 0.000000e+00 : f32
    %200 = vector.broadcast %cst_72 : f32 to vector<8x1xf32>
    %201 = arith.maximumf %199, %200 : vector<8x1xf32>
    %202 = vector.broadcast %196 : vector<8x1xf32> to vector<8x512xf32>
    %203 = arith.subf %186, %202 : vector<8x512xf32>
    %cst_73 = arith.constant 9.99999974E-6 : f32
    %204 = vector.broadcast %cst_73 : f32 to vector<8x1xf32>
    %205 = arith.addf %201, %204 : vector<8x1xf32>
    %206 = math.rsqrt %205 : vector<8x1xf32>
    %207 = vector.broadcast %206 : vector<8x1xf32> to vector<8x512xf32>
    %208 = arith.mulf %203, %207 : vector<8x512xf32>
    %209 = vector.broadcast %187 : vector<8x1xf32> to vector<8x512xf32>
    %210 = arith.mulf %208, %209 : vector<8x512xf32>
    %211 = vector.broadcast %188 : vector<8x1xf32> to vector<8x512xf32>
    %212 = arith.addf %210, %211 : vector<8x512xf32>
    %cst_74 = arith.constant 0.000000e+00 : f32
    %213 = vector.broadcast %cst_74 : f32 to vector<8x512xf32>
    %214 = arith.cmpf oge, %212, %213 : vector<8x512xf32>
    %cst_75 = arith.constant 0.00999999977 : f32
    %215 = vector.broadcast %cst_75 : f32 to vector<8x512xf32>
    %216 = arith.mulf %215, %212 : vector<8x512xf32>
    %217 = arith.select %214, %212, %216 : vector<8x512xi1>, vector<8x512xf32>
    %c0_76 = arith.constant 0 : index
    %c0_77 = arith.constant 0 : index
    %218 = vector.load %arg11[%c0_76, %c0_77] : memref<8x1xf32, #tpu.memory_space<vmem>>, vector<8x1xf32>
    %c73_i32_78 = arith.constant 73 : i32
    %219 = tpu.dynamic_rotate %217 by %c73_i32_78 dim 1 : vector<8x512xf32>, i32 -> vector<8x512xf32>
    %c0_79 = arith.constant 0 : index
    %c0_80 = arith.constant 0 : index
    %220 = vector.load %arg2[%c0_79, %c0_80] : memref<27x512xf32, #tpu.memory_space<vmem>>, vector<1x512xf32>
    %221 = vector.broadcast %220 : vector<1x512xf32> to vector<8x512xf32>
    %222 = arith.mulf %219, %221 : vector<8x512xf32>
    %c72_i32_81 = arith.constant 72 : i32
    %223 = tpu.dynamic_rotate %217 by %c72_i32_81 dim 1 : vector<8x512xf32>, i32 -> vector<8x512xf32>
    %c1_82 = arith.constant 1 : index
    %c0_83 = arith.constant 0 : index
    %224 = vector.load %arg2[%c1_82, %c0_83] : memref<27x512xf32, #tpu.memory_space<vmem>>, vector<1x512xf32>
    %225 = vector.broadcast %224 : vector<1x512xf32> to vector<8x512xf32>
    %226 = arith.mulf %223, %225 : vector<8x512xf32>
    %227 = tpu.concatenate %222, %226 in 0 : vector<8x512xf32>, vector<8x512xf32> -> vector<16x512xf32>
    %228 = arith.truncf %227 : vector<16x512xf32> to vector<16x512xbf16>
    %c0_84 = arith.constant 0 : index
    %c0_85 = arith.constant 0 : index
    %229 = vector.load %arg13[%c0_84, %c0_85] : memref<224x512xbf16, #tpu.memory_space<vmem>>, vector<16x512xbf16>
    tpu.vector_store %arg13[%c0_84, %c0_85], %228 {strides = array<i32>} : memref<224x512xbf16, #tpu.memory_space<vmem>>, vector<16x512xbf16>,
    %c71_i32_86 = arith.constant 71 : i32
    %230 = tpu.dynamic_rotate %217 by %c71_i32_86 dim 1 : vector<8x512xf32>, i32 -> vector<8x512xf32>
    %c2_87 = arith.constant 2 : index
    %c0_88 = arith.constant 0 : index
    %231 = vector.load %arg2[%c2_87, %c0_88] : memref<27x512xf32, #tpu.memory_space<vmem>>, vector<1x512xf32>
    %232 = vector.broadcast %231 : vector<1x512xf32> to vector<8x512xf32>
    %233 = arith.mulf %230, %232 : vector<8x512xf32>
    %c65_i32_89 = arith.constant 65 : i32
    %234 = tpu.dynamic_rotate %217 by %c65_i32_89 dim 1 : vector<8x512xf32>, i32 -> vector<8x512xf32>
    %c3_90 = arith.constant 3 : index
    %c0_91 = arith.constant 0 : index
    %235 = vector.load %arg2[%c3_90, %c0_91] : memref<27x512xf32, #tpu.memory_space<vmem>>, vector<1x512xf32>
    %236 = vector.broadcast %235 : vector<1x512xf32> to vector<8x512xf32>
    %237 = arith.mulf %234, %236 : vector<8x512xf32>
    %238 = tpu.concatenate %233, %237 in 0 : vector<8x512xf32>, vector<8x512xf32> -> vector<16x512xf32>
    %239 = arith.truncf %238 : vector<16x512xf32> to vector<16x512xbf16>
    %c16_92 = arith.constant 16 : index
    %c0_93 = arith.constant 0 : index
    %240 = vector.load %arg13[%c16_92, %c0_93] : memref<224x512xbf16, #tpu.memory_space<vmem>>, vector<16x512xbf16>
    tpu.vector_store %arg13[%c16_92, %c0_93], %239 {strides = array<i32>} : memref<224x512xbf16, #tpu.memory_space<vmem>>, vector<16x512xbf16>,
    %c64_i32_94 = arith.constant 64 : i32
    %241 = tpu.dynamic_rotate %217 by %c64_i32_94 dim 1 : vector<8x512xf32>, i32 -> vector<8x512xf32>
    %c4_95 = arith.constant 4 : index
    %c0_96 = arith.constant 0 : index
    %242 = vector.load %arg2[%c4_95, %c0_96] : memref<27x512xf32, #tpu.memory_space<vmem>>, vector<1x512xf32>
    %243 = vector.broadcast %242 : vector<1x512xf32> to vector<8x512xf32>
    %244 = arith.mulf %241, %243 : vector<8x512xf32>
    %c63_i32_97 = arith.constant 63 : i32
    %245 = tpu.dynamic_rotate %217 by %c63_i32_97 dim 1 : vector<8x512xf32>, i32 -> vector<8x512xf32>
    %c5_98 = arith.constant 5 : index
    %c0_99 = arith.constant 0 : index
    %246 = vector.load %arg2[%c5_98, %c0_99] : memref<27x512xf32, #tpu.memory_space<vmem>>, vector<1x512xf32>
    %247 = vector.broadcast %246 : vector<1x512xf32> to vector<8x512xf32>
    %248 = arith.mulf %245, %247 : vector<8x512xf32>
    %249 = tpu.concatenate %244, %248 in 0 : vector<8x512xf32>, vector<8x512xf32> -> vector<16x512xf32>
    %250 = arith.truncf %249 : vector<16x512xf32> to vector<16x512xbf16>
    %c32_100 = arith.constant 32 : index
    %c0_101 = arith.constant 0 : index
    %251 = vector.load %arg13[%c32_100, %c0_101] : memref<224x512xbf16, #tpu.memory_space<vmem>>, vector<16x512xbf16>
    tpu.vector_store %arg13[%c32_100, %c0_101], %250 {strides = array<i32>} : memref<224x512xbf16, #tpu.memory_space<vmem>>, vector<16x512xbf16>,
    %c57_i32_102 = arith.constant 57 : i32
    %252 = tpu.dynamic_rotate %217 by %c57_i32_102 dim 1 : vector<8x512xf32>, i32 -> vector<8x512xf32>
    %c6_103 = arith.constant 6 : index
    %c0_104 = arith.constant 0 : index
    %253 = vector.load %arg2[%c6_103, %c0_104] : memref<27x512xf32, #tpu.memory_space<vmem>>, vector<1x512xf32>
    %254 = vector.broadcast %253 : vector<1x512xf32> to vector<8x512xf32>
    %255 = arith.mulf %252, %254 : vector<8x512xf32>
    %c56_i32_105 = arith.constant 56 : i32
    %256 = tpu.dynamic_rotate %217 by %c56_i32_105 dim 1 : vector<8x512xf32>, i32 -> vector<8x512xf32>
    %c7_106 = arith.constant 7 : index
    %c0_107 = arith.constant 0 : index
    %257 = vector.load %arg2[%c7_106, %c0_107] : memref<27x512xf32, #tpu.memory_space<vmem>>, vector<1x512xf32>
    %258 = vector.broadcast %257 : vector<1x512xf32> to vector<8x512xf32>
    %259 = arith.mulf %256, %258 : vector<8x512xf32>
    %260 = tpu.concatenate %255, %259 in 0 : vector<8x512xf32>, vector<8x512xf32> -> vector<16x512xf32>
    %261 = arith.truncf %260 : vector<16x512xf32> to vector<16x512xbf16>
    %c48_108 = arith.constant 48 : index
    %c0_109 = arith.constant 0 : index
    %262 = vector.load %arg13[%c48_108, %c0_109] : memref<224x512xbf16, #tpu.memory_space<vmem>>, vector<16x512xbf16>
    tpu.vector_store %arg13[%c48_108, %c0_109], %261 {strides = array<i32>} : memref<224x512xbf16, #tpu.memory_space<vmem>>, vector<16x512xbf16>,
    %c55_i32_110 = arith.constant 55 : i32
    %263 = tpu.dynamic_rotate %217 by %c55_i32_110 dim 1 : vector<8x512xf32>, i32 -> vector<8x512xf32>
    %c8_111 = arith.constant 8 : index
    %c0_112 = arith.constant 0 : index
    %264 = vector.load %arg2[%c8_111, %c0_112] : memref<27x512xf32, #tpu.memory_space<vmem>>, vector<1x512xf32>
    %265 = vector.broadcast %264 : vector<1x512xf32> to vector<8x512xf32>
    %266 = arith.mulf %263, %265 : vector<8x512xf32>
    %c9_i32_113 = arith.constant 9 : i32
    %267 = tpu.dynamic_rotate %217 by %c9_i32_113 dim 1 : vector<8x512xf32>, i32 -> vector<8x512xf32>
    %c9_114 = arith.constant 9 : index
    %c0_115 = arith.constant 0 : index
    %268 = vector.load %arg2[%c9_114, %c0_115] : memref<27x512xf32, #tpu.memory_space<vmem>>, vector<1x512xf32>
    %269 = vector.broadcast %268 : vector<1x512xf32> to vector<8x512xf32>
    %270 = arith.mulf %267, %269 : vector<8x512xf32>
    %271 = tpu.concatenate %266, %270 in 0 : vector<8x512xf32>, vector<8x512xf32> -> vector<16x512xf32>
    %272 = arith.truncf %271 : vector<16x512xf32> to vector<16x512xbf16>
    %c64_116 = arith.constant 64 : index
    %c0_117 = arith.constant 0 : index
    %273 = vector.load %arg13[%c64_116, %c0_117] : memref<224x512xbf16, #tpu.memory_space<vmem>>, vector<16x512xbf16>
    tpu.vector_store %arg13[%c64_116, %c0_117], %272 {strides = array<i32>} : memref<224x512xbf16, #tpu.memory_space<vmem>>, vector<16x512xbf16>,
    %c8_i32_118 = arith.constant 8 : i32
    %274 = tpu.dynamic_rotate %217 by %c8_i32_118 dim 1 : vector<8x512xf32>, i32 -> vector<8x512xf32>
    %c10_119 = arith.constant 10 : index
    %c0_120 = arith.constant 0 : index
    %275 = vector.load %arg2[%c10_119, %c0_120] : memref<27x512xf32, #tpu.memory_space<vmem>>, vector<1x512xf32>
    %276 = vector.broadcast %275 : vector<1x512xf32> to vector<8x512xf32>
    %277 = arith.mulf %274, %276 : vector<8x512xf32>
    %c7_i32_121 = arith.constant 7 : i32
    %278 = tpu.dynamic_rotate %217 by %c7_i32_121 dim 1 : vector<8x512xf32>, i32 -> vector<8x512xf32>
    %c11_122 = arith.constant 11 : index
    %c0_123 = arith.constant 0 : index
    %279 = vector.load %arg2[%c11_122, %c0_123] : memref<27x512xf32, #tpu.memory_space<vmem>>, vector<1x512xf32>
    %280 = vector.broadcast %279 : vector<1x512xf32> to vector<8x512xf32>
    %281 = arith.mulf %278, %280 : vector<8x512xf32>
    %282 = tpu.concatenate %277, %281 in 0 : vector<8x512xf32>, vector<8x512xf32> -> vector<16x512xf32>
    %283 = arith.truncf %282 : vector<16x512xf32> to vector<16x512xbf16>
    %c80_124 = arith.constant 80 : index
    %c0_125 = arith.constant 0 : index
    %284 = vector.load %arg13[%c80_124, %c0_125] : memref<224x512xbf16, #tpu.memory_space<vmem>>, vector<16x512xbf16>
    tpu.vector_store %arg13[%c80_124, %c0_125], %283 {strides = array<i32>} : memref<224x512xbf16, #tpu.memory_space<vmem>>, vector<16x512xbf16>,
    %c1_i32_126 = arith.constant 1 : i32
    %285 = tpu.dynamic_rotate %217 by %c1_i32_126 dim 1 : vector<8x512xf32>, i32 -> vector<8x512xf32>
    %c12_127 = arith.constant 12 : index
    %c0_128 = arith.constant 0 : index
    %286 = vector.load %arg2[%c12_127, %c0_128] : memref<27x512xf32, #tpu.memory_space<vmem>>, vector<1x512xf32>
    %287 = vector.broadcast %286 : vector<1x512xf32> to vector<8x512xf32>
    %288 = arith.mulf %285, %287 : vector<8x512xf32>
    %289 = tpu.concatenate %288, %217 in 0 : vector<8x512xf32>, vector<8x512xf32> -> vector<16x512xf32>
    %290 = arith.truncf %289 : vector<16x512xf32> to vector<16x512xbf16>
    %c96_129 = arith.constant 96 : index
    %c0_130 = arith.constant 0 : index
    %291 = vector.load %arg13[%c96_129, %c0_130] : memref<224x512xbf16, #tpu.memory_space<vmem>>, vector<16x512xbf16>
    tpu.vector_store %arg13[%c96_129, %c0_130], %290 {strides = array<i32>} : memref<224x512xbf16, #tpu.memory_space<vmem>>, vector<16x512xbf16>,
    %c511_i32_131 = arith.constant 511 : i32
    %292 = tpu.dynamic_rotate %217 by %c511_i32_131 dim 1 : vector<8x512xf32>, i32 -> vector<8x512xf32>
    %c14_132 = arith.constant 14 : index
    %c0_133 = arith.constant 0 : index
    %293 = vector.load %arg2[%c14_132, %c0_133] : memref<27x512xf32, #tpu.memory_space<vmem>>, vector<1x512xf32>
    %294 = vector.broadcast %293 : vector<1x512xf32> to vector<8x512xf32>
    %295 = arith.mulf %292, %294 : vector<8x512xf32>
    %c505_i32_134 = arith.constant 505 : i32
    %296 = tpu.dynamic_rotate %217 by %c505_i32_134 dim 1 : vector<8x512xf32>, i32 -> vector<8x512xf32>
    %c15_135 = arith.constant 15 : index
    %c0_136 = arith.constant 0 : index
    %297 = vector.load %arg2[%c15_135, %c0_136] : memref<27x512xf32, #tpu.memory_space<vmem>>, vector<1x512xf32>
    %298 = vector.broadcast %297 : vector<1x512xf32> to vector<8x512xf32>
    %299 = arith.mulf %296, %298 : vector<8x512xf32>
    %300 = tpu.concatenate %295, %299 in 0 : vector<8x512xf32>, vector<8x512xf32> -> vector<16x512xf32>
    %301 = arith.truncf %300 : vector<16x512xf32> to vector<16x512xbf16>
    %c112_137 = arith.constant 112 : index
    %c0_138 = arith.constant 0 : index
    %302 = vector.load %arg13[%c112_137, %c0_138] : memref<224x512xbf16, #tpu.memory_space<vmem>>, vector<16x512xbf16>
    tpu.vector_store %arg13[%c112_137, %c0_138], %301 {strides = array<i32>} : memref<224x512xbf16, #tpu.memory_space<vmem>>, vector<16x512xbf16>,
    %c504_i32_139 = arith.constant 504 : i32
    %303 = tpu.dynamic_rotate %217 by %c504_i32_139 dim 1 : vector<8x512xf32>, i32 -> vector<8x512xf32>
    %c16_140 = arith.constant 16 : index
    %c0_141 = arith.constant 0 : index
    %304 = vector.load %arg2[%c16_140, %c0_141] : memref<27x512xf32, #tpu.memory_space<vmem>>, vector<1x512xf32>
    %305 = vector.broadcast %304 : vector<1x512xf32> to vector<8x512xf32>
    %306 = arith.mulf %303, %305 : vector<8x512xf32>
    %c503_i32_142 = arith.constant 503 : i32
    %307 = tpu.dynamic_rotate %217 by %c503_i32_142 dim 1 : vector<8x512xf32>, i32 -> vector<8x512xf32>
    %c17_143 = arith.constant 17 : index
    %c0_144 = arith.constant 0 : index
    %308 = vector.load %arg2[%c17_143, %c0_144] : memref<27x512xf32, #tpu.memory_space<vmem>>, vector<1x512xf32>
    %309 = vector.broadcast %308 : vector<1x512xf32> to vector<8x512xf32>
    %310 = arith.mulf %307, %309 : vector<8x512xf32>
    %311 = tpu.concatenate %306, %310 in 0 : vector<8x512xf32>, vector<8x512xf32> -> vector<16x512xf32>
    %312 = arith.truncf %311 : vector<16x512xf32> to vector<16x512xbf16>
    %c128_145 = arith.constant 128 : index
    %c0_146 = arith.constant 0 : index
    %313 = vector.load %arg13[%c128_145, %c0_146] : memref<224x512xbf16, #tpu.memory_space<vmem>>, vector<16x512xbf16>
    tpu.vector_store %arg13[%c128_145, %c0_146], %312 {strides = array<i32>} : memref<224x512xbf16, #tpu.memory_space<vmem>>, vector<16x512xbf16>,
    %c457_i32_147 = arith.constant 457 : i32
    %314 = tpu.dynamic_rotate %217 by %c457_i32_147 dim 1 : vector<8x512xf32>, i32 -> vector<8x512xf32>
    %c18_148 = arith.constant 18 : index
    %c0_149 = arith.constant 0 : index
    %315 = vector.load %arg2[%c18_148, %c0_149] : memref<27x512xf32, #tpu.memory_space<vmem>>, vector<1x512xf32>
    %316 = vector.broadcast %315 : vector<1x512xf32> to vector<8x512xf32>
    %317 = arith.mulf %314, %316 : vector<8x512xf32>
    %c456_i32_150 = arith.constant 456 : i32
    %318 = tpu.dynamic_rotate %217 by %c456_i32_150 dim 1 : vector<8x512xf32>, i32 -> vector<8x512xf32>
    %c19_151 = arith.constant 19 : index
    %c0_152 = arith.constant 0 : index
    %319 = vector.load %arg2[%c19_151, %c0_152] : memref<27x512xf32, #tpu.memory_space<vmem>>, vector<1x512xf32>
    %320 = vector.broadcast %319 : vector<1x512xf32> to vector<8x512xf32>
    %321 = arith.mulf %318, %320 : vector<8x512xf32>
    %322 = tpu.concatenate %317, %321 in 0 : vector<8x512xf32>, vector<8x512xf32> -> vector<16x512xf32>
    %323 = arith.truncf %322 : vector<16x512xf32> to vector<16x512xbf16>
    %c144_153 = arith.constant 144 : index
    %c0_154 = arith.constant 0 : index
    %324 = vector.load %arg13[%c144_153, %c0_154] : memref<224x512xbf16, #tpu.memory_space<vmem>>, vector<16x512xbf16>
    tpu.vector_store %arg13[%c144_153, %c0_154], %323 {strides = array<i32>} : memref<224x512xbf16, #tpu.memory_space<vmem>>, vector<16x512xbf16>,
    %c455_i32_155 = arith.constant 455 : i32
    %325 = tpu.dynamic_rotate %217 by %c455_i32_155 dim 1 : vector<8x512xf32>, i32 -> vector<8x512xf32>
    %c20_156 = arith.constant 20 : index
    %c0_157 = arith.constant 0 : index
    %326 = vector.load %arg2[%c20_156, %c0_157] : memref<27x512xf32, #tpu.memory_space<vmem>>, vector<1x512xf32>
    %327 = vector.broadcast %326 : vector<1x512xf32> to vector<8x512xf32>
    %328 = arith.mulf %325, %327 : vector<8x512xf32>
    %c449_i32_158 = arith.constant 449 : i32
    %329 = tpu.dynamic_rotate %217 by %c449_i32_158 dim 1 : vector<8x512xf32>, i32 -> vector<8x512xf32>
    %c21_159 = arith.constant 21 : index
    %c0_160 = arith.constant 0 : index
    %330 = vector.load %arg2[%c21_159, %c0_160] : memref<27x512xf32, #tpu.memory_space<vmem>>, vector<1x512xf32>
    %331 = vector.broadcast %330 : vector<1x512xf32> to vector<8x512xf32>
    %332 = arith.mulf %329, %331 : vector<8x512xf32>
    %333 = tpu.concatenate %328, %332 in 0 : vector<8x512xf32>, vector<8x512xf32> -> vector<16x512xf32>
    %334 = arith.truncf %333 : vector<16x512xf32> to vector<16x512xbf16>
    %c160_161 = arith.constant 160 : index
    %c0_162 = arith.constant 0 : index
    %335 = vector.load %arg13[%c160_161, %c0_162] : memref<224x512xbf16, #tpu.memory_space<vmem>>, vector<16x512xbf16>
    tpu.vector_store %arg13[%c160_161, %c0_162], %334 {strides = array<i32>} : memref<224x512xbf16, #tpu.memory_space<vmem>>, vector<16x512xbf16>,
    %c448_i32_163 = arith.constant 448 : i32
    %336 = tpu.dynamic_rotate %217 by %c448_i32_163 dim 1 : vector<8x512xf32>, i32 -> vector<8x512xf32>
    %c22_164 = arith.constant 22 : index
    %c0_165 = arith.constant 0 : index
    %337 = vector.load %arg2[%c22_164, %c0_165] : memref<27x512xf32, #tpu.memory_space<vmem>>, vector<1x512xf32>
    %338 = vector.broadcast %337 : vector<1x512xf32> to vector<8x512xf32>
    %339 = arith.mulf %336, %338 : vector<8x512xf32>
    %c447_i32_166 = arith.constant 447 : i32
    %340 = tpu.dynamic_rotate %217 by %c447_i32_166 dim 1 : vector<8x512xf32>, i32 -> vector<8x512xf32>
    %c23_167 = arith.constant 23 : index
    %c0_168 = arith.constant 0 : index
    %341 = vector.load %arg2[%c23_167, %c0_168] : memref<27x512xf32, #tpu.memory_space<vmem>>, vector<1x512xf32>
    %342 = vector.broadcast %341 : vector<1x512xf32> to vector<8x512xf32>
    %343 = arith.mulf %340, %342 : vector<8x512xf32>
    %344 = tpu.concatenate %339, %343 in 0 : vector<8x512xf32>, vector<8x512xf32> -> vector<16x512xf32>
    %345 = arith.truncf %344 : vector<16x512xf32> to vector<16x512xbf16>
    %c176_169 = arith.constant 176 : index
    %c0_170 = arith.constant 0 : index
    %346 = vector.load %arg13[%c176_169, %c0_170] : memref<224x512xbf16, #tpu.memory_space<vmem>>, vector<16x512xbf16>
    tpu.vector_store %arg13[%c176_169, %c0_170], %345 {strides = array<i32>} : memref<224x512xbf16, #tpu.memory_space<vmem>>, vector<16x512xbf16>,
    %c441_i32_171 = arith.constant 441 : i32
    %347 = tpu.dynamic_rotate %217 by %c441_i32_171 dim 1 : vector<8x512xf32>, i32 -> vector<8x512xf32>
    %c24_172 = arith.constant 24 : index
    %c0_173 = arith.constant 0 : index
    %348 = vector.load %arg2[%c24_172, %c0_173] : memref<27x512xf32, #tpu.memory_space<vmem>>, vector<1x512xf32>
    %349 = vector.broadcast %348 : vector<1x512xf32> to vector<8x512xf32>
    %350 = arith.mulf %347, %349 : vector<8x512xf32>
    %c440_i32_174 = arith.constant 440 : i32
    %351 = tpu.dynamic_rotate %217 by %c440_i32_174 dim 1 : vector<8x512xf32>, i32 -> vector<8x512xf32>
    %c25_175 = arith.constant 25 : index
    %c0_176 = arith.constant 0 : index
    %352 = vector.load %arg2[%c25_175, %c0_176] : memref<27x512xf32, #tpu.memory_space<vmem>>, vector<1x512xf32>
    %353 = vector.broadcast %352 : vector<1x512xf32> to vector<8x512xf32>
    %354 = arith.mulf %351, %353 : vector<8x512xf32>
    %355 = tpu.concatenate %350, %354 in 0 : vector<8x512xf32>, vector<8x512xf32> -> vector<16x512xf32>
    %356 = arith.truncf %355 : vector<16x512xf32> to vector<16x512xbf16>
    %c192_177 = arith.constant 192 : index
    %c0_178 = arith.constant 0 : index
    %357 = vector.load %arg13[%c192_177, %c0_178] : memref<224x512xbf16, #tpu.memory_space<vmem>>, vector<16x512xbf16>
    tpu.vector_store %arg13[%c192_177, %c0_178], %356 {strides = array<i32>} : memref<224x512xbf16, #tpu.memory_space<vmem>>, vector<16x512xbf16>,
    %c439_i32_179 = arith.constant 439 : i32
    %358 = tpu.dynamic_rotate %217 by %c439_i32_179 dim 1 : vector<8x512xf32>, i32 -> vector<8x512xf32>
    %c26_180 = arith.constant 26 : index
    %c0_181 = arith.constant 0 : index
    %359 = vector.load %arg2[%c26_180, %c0_181] : memref<27x512xf32, #tpu.memory_space<vmem>>, vector<1x512xf32>
    %360 = vector.broadcast %359 : vector<1x512xf32> to vector<8x512xf32>
    %361 = arith.mulf %358, %360 : vector<8x512xf32>
    %cst_182 = arith.constant 0.000000e+00 : f32
    %362 = vector.broadcast %cst_182 : f32 to vector<8x512xf32>
    %363 = tpu.concatenate %361, %362 in 0 : vector<8x512xf32>, vector<8x512xf32> -> vector<16x512xf32>
    %364 = arith.truncf %363 : vector<16x512xf32> to vector<16x512xbf16>
    %c208_183 = arith.constant 208 : index
    %c0_184 = arith.constant 0 : index
    %365 = vector.load %arg13[%c208_183, %c0_184] : memref<224x512xbf16, #tpu.memory_space<vmem>>, vector<16x512xbf16>
    tpu.vector_store %arg13[%c208_183, %c0_184], %364 {strides = array<i32>} : memref<224x512xbf16, #tpu.memory_space<vmem>>, vector<16x512xbf16>,
    %c0_185 = arith.constant 0 : index
    %c0_186 = arith.constant 0 : index
    %366 = vector.load %arg10[%c0_185, %c0_186] : memref<8x224xbf16, #tpu.memory_space<vmem>>, vector<8x224xbf16>
    %c0_187 = arith.constant 0 : index
    %c0_188 = arith.constant 0 : index
    %367 = vector.load %arg13[%c0_187, %c0_188] : memref<224x512xbf16, #tpu.memory_space<vmem>>, vector<224x512xbf16>
    %cst_189 = arith.constant dense<0.000000e+00> : vector<8x512xf32>
    %368 = tpu.matmul %366, %367, %cst_189 {dimension_numbers = #tpu.dot_dimension_numbers<[1], [0], [0], [1], [0, 0, 1, 1], [], []>} : vector<8x224xbf16>, vector<224x512xbf16>, vector<8x512xf32> -> vector<8x512xf32>
    %369 = vector.broadcast %218 : vector<8x1xf32> to vector<8x512xf32>
    %370 = arith.addf %368, %369 : vector<8x512xf32>
    %371 = arith.addf %370, %1 : vector<8x512xf32>
    %c0_190 = arith.constant 0 : index
    %c0_191 = arith.constant 0 : index
    %c0_192 = arith.constant 0 : index
    %372 = vector.load %arg12[%c0_190, %c0_191, %c0_192] : memref<1x8x512xf32, #tpu.memory_space<vmem>>, vector<1x8x512xf32>
    %373 = vector.shape_cast %372 : vector<1x8x512xf32> to vector<8x512xf32>
    %374 = vector.shape_cast %371 : vector<8x512xf32> to vector<1x8x512xf32>
    tpu.vector_store %arg12[%c0_190, %c0_191, %c0_192], %374 {strides = array<i32>} : memref<1x8x512xf32, #tpu.memory_space<vmem>>, vector<1x8x512xf32>,
    return
  }
  func.func @transform_0(%arg0: i32) -> (i32, i32, i32) {
    %c0_i32 = arith.constant 0 : i32
    %c0_i32_0 = arith.constant 0 : i32
    %c0_i32_1 = arith.constant 0 : i32
    return %arg0, %c0_i32, %c0_i32_0 : i32, i32, i32
  }
  func.func @transform_1(%arg0: i32) -> (i32, i32) {
    %c0_i32 = arith.constant 0 : i32
    %c0_i32_0 = arith.constant 0 : i32
    %c0_i32_1 = arith.constant 0 : i32
    return %c0_i32, %c0_i32_0 : i32, i32
  }
  func.func @transform_2(%arg0: i32) -> (i32, i32) {
    %c0_i32 = arith.constant 0 : i32
    %c0_i32_0 = arith.constant 0 : i32
    %c0_i32_1 = arith.constant 0 : i32
    return %c0_i32, %c0_i32_0 : i32, i32
  }
  func.func @transform_3(%arg0: i32) -> (i32, i32) {
    %c0_i32 = arith.constant 0 : i32
    %c0_i32_0 = arith.constant 0 : i32
    %c0_i32_1 = arith.constant 0 : i32
    return %c0_i32, %c0_i32_0 : i32, i32
  }
  func.func @transform_4(%arg0: i32) -> (i32, i32) {
    %c0_i32 = arith.constant 0 : i32
    %c0_i32_0 = arith.constant 0 : i32
    %c0_i32_1 = arith.constant 0 : i32
    return %c0_i32, %c0_i32_0 : i32, i32
  }
  func.func @transform_5(%arg0: i32) -> (i32, i32) {
    %c0_i32 = arith.constant 0 : i32
    %c0_i32_0 = arith.constant 0 : i32
    %c0_i32_1 = arith.constant 0 : i32
    return %c0_i32, %c0_i32_0 : i32, i32
  }
  func.func @transform_6(%arg0: i32) -> (i32, i32) {
    %c0_i32 = arith.constant 0 : i32
    %c0_i32_0 = arith.constant 0 : i32
    %c0_i32_1 = arith.constant 0 : i32
    return %c0_i32, %c0_i32_0 : i32, i32
  }
  func.func @transform_7(%arg0: i32) -> (i32, i32) {
    %c0_i32 = arith.constant 0 : i32
    %c0_i32_0 = arith.constant 0 : i32
    %c0_i32_1 = arith.constant 0 : i32
    return %c0_i32, %c0_i32_0 : i32, i32
  }
  func.func @transform_8(%arg0: i32) -> (i32, i32) {
    %c0_i32 = arith.constant 0 : i32
    %c0_i32_0 = arith.constant 0 : i32
    %c0_i32_1 = arith.constant 0 : i32
    return %c0_i32, %c0_i32_0 : i32, i32
  }
  func.func @transform_9(%arg0: i32) -> (i32, i32) {
    %c0_i32 = arith.constant 0 : i32
    %c0_i32_0 = arith.constant 0 : i32
    %c0_i32_1 = arith.constant 0 : i32
    return %c0_i32, %c0_i32_0 : i32, i32
  }
  func.func @transform_10(%arg0: i32) -> (i32, i32) {
    %c0_i32 = arith.constant 0 : i32
    %c0_i32_0 = arith.constant 0 : i32
    %c0_i32_1 = arith.constant 0 : i32
    return %c0_i32, %c0_i32_0 : i32, i32
  }
  func.func @transform_11(%arg0: i32) -> (i32, i32, i32) {
    %c0_i32 = arith.constant 0 : i32
    %c0_i32_0 = arith.constant 0 : i32
    %c0_i32_1 = arith.constant 0 : i32
    return %arg0, %c0_i32, %c0_i32_0 : i32, i32, i32
  }
}

</mosaic_0001>

<llo_original>
// kernel: tpu_custom_call.1
$region0: #{tpu_custom_call.1}
  #allocation0 [shape = 'u32[]', space=smem, size = 0x4, offset = 0x4, fixed_abs, tag = 'smem constant byte address 0x4 - core index']
  #allocation1 [shape = 'u32[72,128]{1,0:T(1,128)}', space=vmem, size = 0x9000, scoped, tag = 'internal scratch']
  #allocation2 [shape = 'bf16[224,512]{1,0:T(8,128)(2,1)}', space=vmem, size = 0x38000, scoped, tag = 'scratch operand']
  %s0 = inlined_call_operand.hbm [shape: f32[2,8,512], index: 0, kind: input, shape index: {}]
  %s1 = inlined_call_operand.hbm [shape: f32[27,512], index: 1, kind: input, shape index: {}]
  %s2 = inlined_call_operand.vmem [shape: f32[16,16], index: 2, kind: input, shape index: {}]
  %s3 = inlined_call_operand.vmem [shape: f32[8,1], index: 3, kind: input, shape index: {}]
  %s4 = inlined_call_operand.vmem [shape: f32[8,1], index: 4, kind: input, shape index: {}]
  %s5 = inlined_call_operand.vmem [shape: bf16[8,224], index: 5, kind: input, shape index: {}]
  %s6 = inlined_call_operand.vmem [shape: f32[8,1], index: 6, kind: input, shape index: {}]
  %s7 = inlined_call_operand.vmem [shape: f32[8,1], index: 7, kind: input, shape index: {}]
  %s8 = inlined_call_operand.vmem [shape: f32[8,1], index: 8, kind: input, shape index: {}]
  %s9 = inlined_call_operand.vmem [shape: bf16[8,224], index: 9, kind: input, shape index: {}]
  %s10 = inlined_call_operand.vmem [shape: f32[8,1], index: 10, kind: input, shape index: {}]
  %s11 = inlined_call_operand.hbm [shape: f32[2,8,512], index: 11, kind: output, shape index: {}]
  %s12 = sld [smem:[#allocation0]]
  $region85: #{tpu_custom_call.1} parent=0
    _
  %s14 = ssub.s32 1, %s12
  %s15 = scalar_select 0, %s14, %s12
  $region1: #{tpu_custom_call.1} parent=0
    #allocation3 [shape = 'u8[32768]{0}', space=vmem, size = 0x8000, scoped, tag = 'input window, operand 0']
    #allocation4 [shape = 's32[2]{0}', space=sflag, size = 0x8, scoped, tag = 'scoped memory for tpu_custom_call.1']
    #allocation5 [shape = 's32[2]{0}', space=sflag, size = 0x8, scoped, tag = 'scoped memory for tpu_custom_call.1']
    #allocation6 [shape = 'u8[65536]{0}', space=vmem, size = 0x10000, scoped, tag = 'input window, operand 1, single buffered']
    #allocation7 [shape = 's32[1]{0}', space=sflag, size = 0x4, scoped, tag = 'scoped memory for tpu_custom_call.1']
    #allocation8 [shape = 'u8[32768]{0}', space=vmem, size = 0x8000, scoped, tag = 'output window, operand 0']
    %16 = vsyncpa [#allocation4], 0
    %s17 = scalar_lea.sflag [#allocation4], 1
    %18 = vsyncpa %s17, 0
    %19 = vsyncpa [#allocation7], 0
    %20 = vsyncpa [#allocation5], 0
    %s21 = scalar_lea.sflag [#allocation5], 1
    %22 = vsyncpa %s21, 0
    loop: start=0, step=1, limit=4
    $region2: #{tpu_custom_call.1} parent=1 // loop_pre_header
      _
    $region3: #{tpu_custom_call.1} parent=1 // loop_header
      %s24 = sphi 0, %s28
      %p25 = scmp.ge.s32.totalorder %s24, 4
      %s34 = sphi 0, %s36
      %s37 = sphi 0, %s34
      %s38 = sphi 0, %s37
      %s54 = sphi 0, %s38
      %s58 = sphi 0, %s58
      %s60 = sphi 0, %s58
      %s61 = sphi 0, %s60
      %s75 = sphi 0, %s61
      %s79 = sphi 0, %s79
      %s81 = sphi 0, %s79
      %s82 = sphi 0, %s81
      %s96 = sphi 0, %s82
      %s100 = sphi 0, %s100
      %s102 = sphi 0, %s100
      %s103 = sphi 0, %s102
      %s117 = sphi 0, %s103
      %s121 = sphi 0, %s121
      %s123 = sphi 0, %s121
      %s124 = sphi 0, %s123
      %s138 = sphi 0, %s124
      %s142 = sphi 0, %s142
      %s144 = sphi 0, %s142
      %s145 = sphi 0, %s144
      %s159 = sphi 0, %s145
      %s163 = sphi 0, %s163
      %s165 = sphi 0, %s163
      %s166 = sphi 0, %s165
      %s180 = sphi 0, %s166
      %s184 = sphi 0, %s184
      %s186 = sphi 0, %s184
      %s187 = sphi 0, %s186
      %s201 = sphi 0, %s187
      %s205 = sphi 0, %s205
      %s207 = sphi 0, %s205
      %s208 = sphi 0, %s207
      %s222 = sphi 0, %s208
      %s226 = sphi 0, %s226
      %s228 = sphi 0, %s226
      %s229 = sphi 0, %s228
      %s243 = sphi 0, %s229
      %s247 = sphi 0, %s247
      %s249 = sphi 0, %s247
      %s250 = sphi 0, %s249
      %s264 = sphi 0, %s250
      %s270 = sphi 0, %s272
      %s273 = sphi 0, %s270
      %s274 = sphi 0, %s273
      %s290 = sphi 0, %s274
    $region4: #{tpu_custom_call.1} parent=1 // loop_header_branch
      %27 = sbr.rel (%p25) target = $region8
    $region5: #{tpu_custom_call.1} parent=1 // loop_body
      %s29 = ssub.s32 %s24, 1
      %s30 = ssub.s32 %s24, 2
      %s31 = sadd.s32 %s24, 1
      %s32 = ssub.s32 %s24, %s31
      %p33 = scmp.eq.s32.totalorder %s32, 0
      %s35 = sadd.s32 %s34, 1
      %s36 = scalar_select %p33, %s34, %s35
      %p39 = pneg %p33
      %p40 = scmp.eq.s32.totalorder %s24, 1
      %p41 = por %p39, %p40
      %p42 = scmp.ne.s32.totalorder %s34, %s37
      %p43 = scmp.eq.s32.totalorder %s24, 0
      %p44 = por %p42, %p43
      %p45 = scmp.ne.s32.totalorder %s34, %s37
      %p46 = scmp.eq.s32.totalorder %s29, 1
      %p47 = por %p45, %p46
      %p48 = scmp.ne.s32.totalorder %s37, %s38
      %p49 = scmp.eq.s32.totalorder %s29, 0
      %p50 = por %p48, %p49
      %p51 = scmp.ne.s32.totalorder %s37, %s38
      %p52 = scmp.eq.s32.totalorder %s30, 1
      %p53 = por %p51, %p52
      %p55 = scmp.ne.s32.totalorder %s38, %s54
      %p56 = scmp.eq.s32.totalorder %s30, 0
      %p57 = por %p55, %p56
      %s59 = sadd.s32 %s58, 1
      %p62 = scmp.eq.s32.totalorder %s24, 1
      %p63 = scmp.ne.s32.totalorder %s58, %s60
      %p64 = scmp.eq.s32.totalorder %s24, 0
      %p65 = por %p63, %p64
      %p66 = scmp.ne.s32.totalorder %s58, %s60
      %p67 = scmp.eq.s32.totalorder %s29, 1
      %p68 = por %p66, %p67
      %p69 = scmp.ne.s32.totalorder %s60, %s61
      %p70 = scmp.eq.s32.totalorder %s29, 0
      %p71 = por %p69, %p70
      %p72 = scmp.ne.s32.totalorder %s60, %s61
      %p73 = scmp.eq.s32.totalorder %s30, 1
      %p74 = por %p72, %p73
      %p76 = scmp.ne.s32.totalorder %s61, %s75
      %p77 = scmp.eq.s32.totalorder %s30, 0
      %p78 = por %p76, %p77
      %s80 = sadd.s32 %s79, 1
      %p83 = scmp.eq.s32.totalorder %s24, 1
      %p84 = scmp.ne.s32.totalorder %s79, %s81
      %p85 = scmp.eq.s32.totalorder %s24, 0
      %p86 = por %p84, %p85
      %p87 = scmp.ne.s32.totalorder %s79, %s81
      %p88 = scmp.eq.s32.totalorder %s29, 1
      %p89 = por %p87, %p88
      %p90 = scmp.ne.s32.totalorder %s81, %s82
      %p91 = scmp.eq.s32.totalorder %s29, 0
      %p92 = por %p90, %p91
      %p93 = scmp.ne.s32.totalorder %s81, %s82
      %p94 = scmp.eq.s32.totalorder %s30, 1
      %p95 = por %p93, %p94
      %p97 = scmp.ne.s32.totalorder %s82, %s96
      %p98 = scmp.eq.s32.totalorder %s30, 0
      %p99 = por %p97, %p98
      %s101 = sadd.s32 %s100, 1
      %p104 = scmp.eq.s32.totalorder %s24, 1
      %p105 = scmp.ne.s32.totalorder %s100, %s102
      %p106 = scmp.eq.s32.totalorder %s24, 0
      %p107 = por %p105, %p106
      %p108 = scmp.ne.s32.totalorder %s100, %s102
      %p109 = scmp.eq.s32.totalorder %s29, 1
      %p110 = por %p108, %p109
      %p111 = scmp.ne.s32.totalorder %s102, %s103
      %p112 = scmp.eq.s32.totalorder %s29, 0
      %p113 = por %p111, %p112
      %p114 = scmp.ne.s32.totalorder %s102, %s103
      %p115 = scmp.eq.s32.totalorder %s30, 1
      %p116 = por %p114, %p115
      %p118 = scmp.ne.s32.totalorder %s103, %s117
      %p119 = scmp.eq.s32.totalorder %s30, 0
      %p120 = por %p118, %p119
      %s122 = sadd.s32 %s121, 1
      %p125 = scmp.eq.s32.totalorder %s24, 1
      %p126 = scmp.ne.s32.totalorder %s121, %s123
      %p127 = scmp.eq.s32.totalorder %s24, 0
      %p128 = por %p126, %p127
      %p129 = scmp.ne.s32.totalorder %s121, %s123
      %p130 = scmp.eq.s32.totalorder %s29, 1
      %p131 = por %p129, %p130
      %p132 = scmp.ne.s32.totalorder %s123, %s124
      %p133 = scmp.eq.s32.totalorder %s29, 0
      %p134 = por %p132, %p133
      %p135 = scmp.ne.s32.totalorder %s123, %s124
      %p136 = scmp.eq.s32.totalorder %s30, 1
      %p137 = por %p135, %p136
      %p139 = scmp.ne.s32.totalorder %s124, %s138
      %p140 = scmp.eq.s32.totalorder %s30, 0
      %p141 = por %p139, %p140
      %s143 = sadd.s32 %s142, 1
      %p146 = scmp.eq.s32.totalorder %s24, 1
      %p147 = scmp.ne.s32.totalorder %s142, %s144
      %p148 = scmp.eq.s32.totalorder %s24, 0
      %p149 = por %p147, %p148
      %p150 = scmp.ne.s32.totalorder %s142, %s144
      %p151 = scmp.eq.s32.totalorder %s29, 1
      %p152 = por %p150, %p151
      %p153 = scmp.ne.s32.totalorder %s144, %s145
      %p154 = scmp.eq.s32.totalorder %s29, 0
      %p155 = por %p153, %p154
      %p156 = scmp.ne.s32.totalorder %s144, %s145
      %p157 = scmp.eq.s32.totalorder %s30, 1
      %p158 = por %p156, %p157
      %p160 = scmp.ne.s32.totalorder %s145, %s159
      %p161 = scmp.eq.s32.totalorder %s30, 0
      %p162 = por %p160, %p161
      %s164 = sadd.s32 %s163, 1
      %p167 = scmp.eq.s32.totalorder %s24, 1
      %p168 = scmp.ne.s32.totalorder %s163, %s165
      %p169 = scmp.eq.s32.totalorder %s24, 0
      %p170 = por %p168, %p169
      %p171 = scmp.ne.s32.totalorder %s163, %s165
      %p172 = scmp.eq.s32.totalorder %s29, 1
      %p173 = por %p171, %p172
      %p174 = scmp.ne.s32.totalorder %s165, %s166
      %p175 = scmp.eq.s32.totalorder %s29, 0
      %p176 = por %p174, %p175
      %p177 = scmp.ne.s32.totalorder %s165, %s166
      %p178 = scmp.eq.s32.totalorder %s30, 1
      %p179 = por %p177, %p178
      %p181 = scmp.ne.s32.totalorder %s166, %s180
      %p182 = scmp.eq.s32.totalorder %s30, 0
      %p183 = por %p181, %p182
      %s185 = sadd.s32 %s184, 1
      %p188 = scmp.eq.s32.totalorder %s24, 1
      %p189 = scmp.ne.s32.totalorder %s184, %s186
      %p190 = scmp.eq.s32.totalorder %s24, 0
      %p191 = por %p189, %p190
      %p192 = scmp.ne.s32.totalorder %s184, %s186
      %p193 = scmp.eq.s32.totalorder %s29, 1
      %p194 = por %p192, %p193
      %p195 = scmp.ne.s32.totalorder %s186, %s187
      %p196 = scmp.eq.s32.totalorder %s29, 0
      %p197 = por %p195, %p196
      %p198 = scmp.ne.s32.totalorder %s186, %s187
      %p199 = scmp.eq.s32.totalorder %s30, 1
      %p200 = por %p198, %p199
      %p202 = scmp.ne.s32.totalorder %s187, %s201
      %p203 = scmp.eq.s32.totalorder %s30, 0
      %p204 = por %p202, %p203
      %s206 = sadd.s32 %s205, 1
      %p209 = scmp.eq.s32.totalorder %s24, 1
      %p210 = scmp.ne.s32.totalorder %s205, %s207
      %p211 = scmp.eq.s32.totalorder %s24, 0
      %p212 = por %p210, %p211
      %p213 = scmp.ne.s32.totalorder %s205, %s207
      %p214 = scmp.eq.s32.totalorder %s29, 1
      %p215 = por %p213, %p214
      %p216 = scmp.ne.s32.totalorder %s207, %s208
      %p217 = scmp.eq.s32.totalorder %s29, 0
      %p218 = por %p216, %p217
      %p219 = scmp.ne.s32.totalorder %s207, %s208
      %p220 = scmp.eq.s32.totalorder %s30, 1
      %p221 = por %p219, %p220
      %p223 = scmp.ne.s32.totalorder %s208, %s222
      %p224 = scmp.eq.s32.totalorder %s30, 0
      %p225 = por %p223, %p224
      %s227 = sadd.s32 %s226, 1
      %p230 = scmp.eq.s32.totalorder %s24, 1
      %p231 = scmp.ne.s32.totalorder %s226, %s228
      %p232 = scmp.eq.s32.totalorder %s24, 0
      %p233 = por %p231, %p232
      %p234 = scmp.ne.s32.totalorder %s226, %s228
      %p235 = scmp.eq.s32.totalorder %s29, 1
      %p236 = por %p234, %p235
      %p237 = scmp.ne.s32.totalorder %s228, %s229
      %p238 = scmp.eq.s32.totalorder %s29, 0
      %p239 = por %p237, %p238
      %p240 = scmp.ne.s32.totalorder %s228, %s229
      %p241 = scmp.eq.s32.totalorder %s30, 1
      %p242 = por %p240, %p241
      %p244 = scmp.ne.s32.totalorder %s229, %s243
      %p245 = scmp.eq.s32.totalorder %s30, 0
      %p246 = por %p244, %p245
      %s248 = sadd.s32 %s247, 1
      %p251 = scmp.eq.s32.totalorder %s24, 1
      %p252 = scmp.ne.s32.totalorder %s247, %s249
      %p253 = scmp.eq.s32.totalorder %s24, 0
      %p254 = por %p252, %p253
      %p255 = scmp.ne.s32.totalorder %s247, %s249
      %p256 = scmp.eq.s32.totalorder %s29, 1
      %p257 = por %p255, %p256
      %p258 = scmp.ne.s32.totalorder %s249, %s250
      %p259 = scmp.eq.s32.totalorder %s29, 0
      %p260 = por %p258, %p259
      %p261 = scmp.ne.s32.totalorder %s249, %s250
      %p262 = scmp.eq.s32.totalorder %s30, 1
      %p263 = por %p261, %p262
      %p265 = scmp.ne.s32.totalorder %s250, %s264
      %p266 = scmp.eq.s32.totalorder %s30, 0
      %p267 = por %p265, %p266
      %s268 = ssub.s32 %s24, %s31
      %p269 = scmp.eq.s32.totalorder %s268, 0
      %s271 = sadd.s32 %s270, 1
      %s272 = scalar_select %p269, %s270, %s271
      %p275 = pneg %p269
      %p276 = scmp.eq.s32.totalorder %s24, 1
      %p277 = por %p275, %p276
      %p278 = scmp.ne.s32.totalorder %s270, %s273
      %p279 = scmp.eq.s32.totalorder %s24, 0
      %p280 = por %p278, %p279
      %p281 = scmp.ne.s32.totalorder %s270, %s273
      %p282 = scmp.eq.s32.totalorder %s29, 1
      %p283 = por %p281, %p282
      %p284 = scmp.ne.s32.totalorder %s273, %s274
      %p285 = scmp.eq.s32.totalorder %s29, 0
      %p286 = por %p284, %p285
      %p287 = scmp.ne.s32.totalorder %s273, %s274
      %p288 = scmp.eq.s32.totalorder %s30, 1
      %p289 = por %p287, %p288
      %p291 = scmp.ne.s32.totalorder %s274, %s290
      %p292 = scmp.eq.s32.totalorder %s30, 0
      %p293 = por %p291, %p292
      %p294 = scmp.le.s32.totalorder 1, %s24
      %p295 = scmp.lt.s32.totalorder %s24, 3
      %p296 = pnand %p294, %p295
      %p297 = pneg %p296
      // Predicated region
      $region9: #{tpu_custom_call.1} parent=5 // pred_check
        _
      $region10: #{tpu_custom_call.1} parent=5 // pred_check_branch
        %299 = sbr.rel (%p296) target = $region12
      $region11: #{tpu_custom_call.1} parent=5 // pred_region
        %s300 = ssub.s32 %s24, 1
        // Predicated region
        $region13: #{tpu_custom_call.1} parent=11 // pred_check
          %p301 = pneg %p71
        $region14: #{tpu_custom_call.1} parent=11 // pred_check_branch
          %303 = sbr.rel (%p301) target = $region16
        $region15: #{tpu_custom_call.1} parent=11 // pred_region
          %305 = vsyncadd [#allocation7], 0
          %s306 = sshll.u32 %s1, 4
          %s307 = int_to_ptr.hbm [resolvable:$true] %s306
          %s308 = sshll.u32 [#allocation6], 4
          %s309 = int_to_ptr.vmem [resolvable:$true] %s308
          %314 = dma.hbm_to_vmem [thread:$0]  %s307, 2048, %s309, [#allocation7], 512, 512, 32
        $region16: #{tpu_custom_call.1} parent=11 // pred_fallthru
          _
        // Predicated region
        $region17: #{tpu_custom_call.1} parent=11 // pred_check
          %p315 = pneg %p92
        $region18: #{tpu_custom_call.1} parent=11 // pred_check_branch
          %317 = sbr.rel (%p315) target = $region20
        $region19: #{tpu_custom_call.1} parent=11 // pred_region
          _
        $region20: #{tpu_custom_call.1} parent=11 // pred_fallthru
          _
        // Predicated region
        $region21: #{tpu_custom_call.1} parent=11 // pred_check
          %p318 = pneg %p113
        $region22: #{tpu_custom_call.1} parent=11 // pred_check_branch
          %320 = sbr.rel (%p318) target = $region24
        $region23: #{tpu_custom_call.1} parent=11 // pred_region
          _
        $region24: #{tpu_custom_call.1} parent=11 // pred_fallthru
          _
        // Predicated region
        $region25: #{tpu_custom_call.1} parent=11 // pred_check
          %p321 = pneg %p134
        $region26: #{tpu_custom_call.1} parent=11 // pred_check_branch
          %323 = sbr.rel (%p321) target = $region28
        $region27: #{tpu_custom_call.1} parent=11 // pred_region
          _
        $region28: #{tpu_custom_call.1} parent=11 // pred_fallthru
          _
        // Predicated region
        $region29: #{tpu_custom_call.1} parent=11 // pred_check
          %p324 = pneg %p155
        $region30: #{tpu_custom_call.1} parent=11 // pred_check_branch
          %326 = sbr.rel (%p324) target = $region32
        $region31: #{tpu_custom_call.1} parent=11 // pred_region
          _
        $region32: #{tpu_custom_call.1} parent=11 // pred_fallthru
          _
        // Predicated region
        $region33: #{tpu_custom_call.1} parent=11 // pred_check
          %p327 = pneg %p176
        $region34: #{tpu_custom_call.1} parent=11 // pred_check_branch
          %329 = sbr.rel (%p327) target = $region36
        $region35: #{tpu_custom_call.1} parent=11 // pred_region
          _
        $region36: #{tpu_custom_call.1} parent=11 // pred_fallthru
          _
        // Predicated region
        $region37: #{tpu_custom_call.1} parent=11 // pred_check
          %p330 = pneg %p197
        $region38: #{tpu_custom_call.1} parent=11 // pred_check_branch
          %332 = sbr.rel (%p330) target = $region40
        $region39: #{tpu_custom_call.1} parent=11 // pred_region
          _
        $region40: #{tpu_custom_call.1} parent=11 // pred_fallthru
          _
        // Predicated region
        $region41: #{tpu_custom_call.1} parent=11 // pred_check
          %p333 = pneg %p218
        $region42: #{tpu_custom_call.1} parent=11 // pred_check_branch
          %335 = sbr.rel (%p333) target = $region44
        $region43: #{tpu_custom_call.1} parent=11 // pred_region
          _
        $region44: #{tpu_custom_call.1} parent=11 // pred_fallthru
          _
        // Predicated region
        $region45: #{tpu_custom_call.1} parent=11 // pred_check
          %p336 = pneg %p239
        $region46: #{tpu_custom_call.1} parent=11 // pred_check_branch
          %338 = sbr.rel (%p336) target = $region48
        $region47: #{tpu_custom_call.1} parent=11 // pred_region
          _
        $region48: #{tpu_custom_call.1} parent=11 // pred_fallthru
          _
        // Predicated region
        $region49: #{tpu_custom_call.1} parent=11 // pred_check
          %p339 = pneg %p260
        $region50: #{tpu_custom_call.1} parent=11 // pred_check_branch
          %341 = sbr.rel (%p339) target = $region52
        $region51: #{tpu_custom_call.1} parent=11 // pred_region
          _
        $region52: #{tpu_custom_call.1} parent=11 // pred_fallthru
          _
      $region12: #{tpu_custom_call.1} parent=5 // pred_fallthru
        _
      %p342 = scmp.lt.s32.totalorder %s24, 2
      // Predicated region
      $region53: #{tpu_custom_call.1} parent=5 // pred_check
        %p343 = pneg %p342
      $region54: #{tpu_custom_call.1} parent=5 // pred_check_branch
        %345 = sbr.rel (%p343) target = $region56
      $region55: #{tpu_custom_call.1} parent=5 // pred_region
        // Predicated region
        $region57: #{tpu_custom_call.1} parent=55 // pred_check
          %p346 = pneg %p44
        $region58: #{tpu_custom_call.1} parent=55 // pred_check_branch
          %348 = sbr.rel (%p346) target = $region60
        $region59: #{tpu_custom_call.1} parent=55 // pred_region
          %s349 = sand.u32 %s34, 1
          %s350 = scalar_lea.sflag [#allocation4], %s349
          %s351 = sand.u32 %s34, 1
          %s352 = smul.addr %s351, 32
          %s353 = scalar_lea.vmem [#allocation3], %s352
          %355 = vsyncadd %s350, 0
          %s356 = smul.addr %s24, 4
          %s357 = smul.addr %s356, 8
          %s358 = scalar_lea.hbm %s0, %s357
          %s360 = sshll.u32 %s358, 4
          %s361 = int_to_ptr.hbm [resolvable:$true] %s360
          %s362 = sshll.u32 %s353, 4
          %s363 = int_to_ptr.vmem [resolvable:$true] %s362
          %365 = dma.hbm_to_vmem [thread:$0]  %s361, 512, %s363, %s350
        $region60: #{tpu_custom_call.1} parent=55 // pred_fallthru
          _
      $region56: #{tpu_custom_call.1} parent=5 // pred_fallthru
        _
      %p366 = scmp.le.s32.totalorder 1, %s24
      %p367 = scmp.lt.s32.totalorder %s24, 3
      %p368 = pnand %p366, %p367
      %p369 = pneg %p368
      // Predicated region
      $region61: #{tpu_custom_call.1} parent=5 // pred_check
        _
      $region62: #{tpu_custom_call.1} parent=5 // pred_check_branch
        %371 = sbr.rel (%p368) target = $region64
      $region63: #{tpu_custom_call.1} parent=5 // pred_region
        %s372 = ssub.s32 %s24, 1
        %s373 = sand.u32 %s37, 1
        %s374 = scalar_lea.sflag [#allocation4], %s373
        %s375 = sand.u32 %s37, 1
        %s376 = smul.addr %s375, 32
        %s377 = scalar_lea.vmem [#allocation3], %s376
        // Predicated region
        $region65: #{tpu_custom_call.1} parent=63 // pred_check
          %p378 = pneg %p50
        $region66: #{tpu_custom_call.1} parent=63 // pred_check_branch
          %380 = sbr.rel (%p378) target = $region68
        $region67: #{tpu_custom_call.1} parent=63 // pred_region
          %382 = dma.done %s374, 512
        $region68: #{tpu_custom_call.1} parent=63 // pred_fallthru
          _
        // Predicated region
        $region69: #{tpu_custom_call.1} parent=63 // pred_check
          %p383 = pneg %p71
        $region70: #{tpu_custom_call.1} parent=63 // pred_check_branch
          %385 = sbr.rel (%p383) target = $region72
        $region71: #{tpu_custom_call.1} parent=63 // pred_region
          %387 = dma.done [#allocation7], 2048
        $region72: #{tpu_custom_call.1} parent=63 // pred_fallthru
          _
        %s388 = sand.u32 %s37, 1
        %s389 = scalar_lea.sflag [#allocation4], %s388
        %s390 = sand.u32 %s37, 1
        %s391 = smul.addr %s390, 32
        %s392 = scalar_lea.vmem [#allocation3], %s391
        %p393 = pneg %p50
        %p394 = pneg %p47
        %p395 = pneg %p71
        %p396 = pneg %p68
        %p397 = pneg %p92
        %p398 = pneg %p89
        %p399 = pneg %p113
        %p400 = pneg %p110
        %p401 = pneg %p134
        %p402 = pneg %p131
        %p403 = pneg %p155
        %p404 = pneg %p152
        %p405 = pneg %p176
        %p406 = pneg %p173
        %p407 = pneg %p197
        %p408 = pneg %p194
        %p409 = pneg %p218
        %p410 = pneg %p215
        %p411 = pneg %p239
        %p412 = pneg %p236
        %p413 = pneg %p260
        %p414 = pneg %p257
        %p415 = pneg %p286
        %p416 = pneg %p283
        %s417 = sand.u32 %s273, 1
        %s418 = scalar_lea.sflag [#allocation5], %s417
        %s419 = sand.u32 %s273, 1
        %s420 = smul.addr %s419, 32
        %s421 = scalar_lea.vmem [#allocation8], %s420
        %v423 = vld [vmem:[%s377] sm:$0xff]
        %v424 = vld [vmem:[%s377 + $0x8] sm:$0xff]
        %v425 = vld [vmem:[%s377 + $0x10] sm:$0xff]
        %v426 = vld [vmem:[%s377 + $0x18] sm:$0xff]
        %v427 = vld [vmem:[%s2] sm:$0xff]
        %v428 = vld [vmem:[%s2 + $0x8] sm:$0xff]
        %v429 = vld [vmem:[%s3] sm:$0xff]
        %v430 = vld [vmem:[%s4] sm:$0xff]
        %v431 = vadd.f32 %v423, %v424
        %v432 = vadd.f32 %v431, %v425
        %v433 = vadd.f32 %v432, %v426
        %434 = vadd.xlane.f32.xlu0 %v433
        %v435 = vpop.xlane.xlu0 %434
        %v436 = vmul.f32 %v423, %v423
        %v437 = vmul.f32 %v424, %v424
        %v438 = vmul.f32 %v425, %v425
        %v439 = vmul.f32 %v426, %v426
        %v440 = vadd.f32 %v436, %v437
        %v441 = vadd.f32 %v440, %v438
        %v442 = vadd.f32 %v441, %v439
        %443 = vadd.xlane.f32.xlu0 %v442
        %v444 = vpop.xlane.xlu0 %443
        %vm445 = vcmask 130048
        %v447 = vsel %vm445, %v427, 0
        %v450 = vsel %vm445, %v428, 0
        %452 = vmatpush.msra.mxu0 0.0
        %453 = vmatpush.msra.mxu0 0.0
        %454 = vmatpush.msra.mxu0 0.0
        %455 = vmatpush.msra.mxu0 0.0
        %456 = vmatpush.msra.mxu0 0.0
        %457 = vmatpush.msra.mxu0 0.0
        %458 = vmatpush.msra.mxu0 0.0
        %459 = vmatpush.msra.mxu0 0.0
        %460 = vmatpush.msra.mxu0 0.0
        %461 = vmatpush.msra.mxu0 0.0
        %462 = vmatpush.msra.mxu0 0.0
        %463 = vmatpush.msra.mxu0 0.0
        %464 = vmatpush.msra.mxu0 0.0
        %465 = vmatpush.msra.mxu0 0.0
        %466 = vmatpush.msra.mxu0 %v444
        %467 = vmatpush.msra.mxu0 %v435
        %468 = vmatmul.f32.gmra.mxu0 %v447
        %v469 = vpop.f32.mrf.mxu0
        %v470 = vadd.f32 0.0, %v469
        %471 = vmatmul.f32.gmra.mxu0 %v450
        %v472 = vpop.f32.mrf.mxu0
        %v473 = vadd.f32 0.0, %v472
        %474 = vdwg.mxu0
        %v475 = vmul.f32 %v470, %v470
        %v476 = vsub.f32 %v473, %v475
        %v477 = vmax.f32 %v476, 0.0
        %479 = vset.pattern.permute.xlu0 0
        %480 = vperm.xlu0 %479, %v470
        %v481 = vpop.permute.xlu0 %480
        %v483 = vsub.f32 %v423, %v481
        %v484 = vsub.f32 %v424, %v481
        %v485 = vsub.f32 %v425, %v481
        %v486 = vsub.f32 %v426, %v481
        %v487 = vadd.f32 %v477, 1e-05
        %v488 = vrsqrt.pop %v487
        %v489 = vmul.f32 %v488, %v487
        %v490 = vmul.f32 %v489, %v488
        %v491 = vmul.f32 0.5, %v490
        %v492 = vsub.f32 1.5, %v491
        %v493 = vmul.f32 %v488, %v492
        %vm494 = vweird.f32 %v487
        %vm495 = vweird.f32 %v488
        %vm496 = vmor %vm494, %vm495
        %v497 = vsel %vm496, %v488, %v493
        %499 = vset.pattern.permute.xlu0 0
        %500 = vperm.xlu0 %499, %v497
        %v501 = vpop.permute.xlu0 %500
        %v503 = vmul.f32 %v483, %v501
        %v504 = vmul.f32 %v484, %v501
        %v505 = vmul.f32 %v485, %v501
        %v506 = vmul.f32 %v486, %v501
        %508 = vset.pattern.permute.xlu0 0
        %509 = vperm.xlu0 %508, %v429
        %v510 = vpop.permute.xlu0 %509
        %v512 = vmul.f32 %v503, %v510
        %v513 = vmul.f32 %v504, %v510
        %v514 = vmul.f32 %v505, %v510
        %v515 = vmul.f32 %v506, %v510
        %517 = vset.pattern.permute.xlu0 0
        %518 = vperm.xlu0 %517, %v430
        %v519 = vpop.permute.xlu0 %518
        %v521 = vadd.f32 %v512, %v519
        %v522 = vadd.f32 %v513, %v519
        %v523 = vadd.f32 %v514, %v519
        %v524 = vadd.f32 %v515, %v519
        %vm525 = vcmp.ge.f32.partialorder %v521, 0.0
        %vm526 = vcmp.ge.f32.partialorder %v522, 0.0
        %vm527 = vcmp.ge.f32.partialorder %v523, 0.0
        %vm528 = vcmp.ge.f32.partialorder %v524, 0.0
        %v529 = vmul.f32 %v521, 0.01
        %v530 = vmul.f32 %v522, 0.01
        %v531 = vmul.f32 %v523, 0.01
        %v532 = vmul.f32 %v524, 0.01
        %v533 = vsel %vm525, %v521, %v529
        %v534 = vsel %vm526, %v522, %v530
        %v535 = vsel %vm527, %v523, %v531
        %v536 = vsel %vm528, %v524, %v532
        %v537 = vld [vmem:[%s6] sm:$0xff]
        %538 = vrot.lane.b32.xlu0 %v533, 73
        %v539 = vpop.permute.xlu0 %538
        %540 = vrot.lane.b32.xlu0 %v534, 73
        %v541 = vpop.permute.xlu0 %540
        %542 = vrot.lane.b32.xlu0 %v535, 73
        %v543 = vpop.permute.xlu0 %542
        %544 = vrot.lane.b32.xlu0 %v536, 73
        %v545 = vpop.permute.xlu0 %544
        %v546 = vlaneseq
        %v547 = vand.u32 %v546, 127
        %vm548 = vcmp.lt.s32.totalorder %v547, 73
        %v549 = vsel %vm548, %v543, %v545
        %v550 = vsel %vm548, %v541, %v543
        %v551 = vsel %vm548, %v539, %v541
        %v552 = vsel %vm548, %v545, %v539
        %v553 = vld [vmem:[#allocation6] ss:$8 sm:$0xf]
        %v555 = vperm.slane %v553, 0
        %v556 = vperm.slane %v553, 1
        %v557 = vperm.slane %v553, 2
        %v558 = vperm.slane %v553, 3
        %v563 = vmul.f32 %v552, %v555
        %v564 = vmul.f32 %v551, %v556
        %v565 = vmul.f32 %v550, %v557
        %v566 = vmul.f32 %v549, %v558
        %567 = vrot.lane.b32.xlu0 %v533, 72
        %v568 = vpop.permute.xlu0 %567
        %569 = vrot.lane.b32.xlu0 %v534, 72
        %v570 = vpop.permute.xlu0 %569
        %571 = vrot.lane.b32.xlu0 %v535, 72
        %v572 = vpop.permute.xlu0 %571
        %573 = vrot.lane.b32.xlu0 %v536, 72
        %v574 = vpop.permute.xlu0 %573
        %vm575 = vcmp.lt.s32.totalorder %v547, 72
        %v576 = vsel %vm575, %v572, %v574
        %v577 = vsel %vm575, %v570, %v572
        %v578 = vsel %vm575, %v568, %v570
        %v579 = vsel %vm575, %v574, %v568
        %s580 = scalar_lea.vmem [#allocation6], 1
        %v581 = vld [vmem:[%s580] ss:$8 sm:$0xf]
        %v583 = vperm.slane %v581, 0
        %v584 = vperm.slane %v581, 1
        %v585 = vperm.slane %v581, 2
        %v586 = vperm.slane %v581, 3
        %v591 = vmul.f32 %v579, %v583
        %v592 = vmul.f32 %v578, %v584
        %v593 = vmul.f32 %v577, %v585
        %v594 = vmul.f32 %v576, %v586
        %v595 = vpack.c.bf16 %v564, %v563
        %v596 = vpack.c.bf16 %v566, %v565
        %v597 = vpack.c.bf16 %v592, %v591
        %v598 = vpack.c.bf16 %v594, %v593
        %599 = vst [vmem:[#allocation2] sm:$0xff] %v595
        %600 = vst [vmem:[#allocation2 + $0x8] sm:$0xff] %v596
        %601 = vst [vmem:[#allocation2 + $0x10] sm:$0xff] %v597
        %602 = vst [vmem:[#allocation2 + $0x18] sm:$0xff] %v598
        %603 = vrot.lane.b32.xlu0 %v533, 71
        %v604 = vpop.permute.xlu0 %603
        %605 = vrot.lane.b32.xlu0 %v534, 71
        %v606 = vpop.permute.xlu0 %605
        %607 = vrot.lane.b32.xlu0 %v535, 71
        %v608 = vpop.permute.xlu0 %607
        %609 = vrot.lane.b32.xlu0 %v536, 71
        %v610 = vpop.permute.xlu0 %609
        %vm611 = vcmp.lt.s32.totalorder %v547, 71
        %v612 = vsel %vm611, %v608, %v610
        %v613 = vsel %vm611, %v606, %v608
        %v614 = vsel %vm611, %v604, %v606
        %v615 = vsel %vm611, %v610, %v604
        %s616 = scalar_lea.vmem [#allocation6], 2
        %v617 = vld [vmem:[%s616] ss:$8 sm:$0xf]
        %v619 = vperm.slane %v617, 0
        %v620 = vperm.slane %v617, 1
        %v621 = vperm.slane %v617, 2
        %v622 = vperm.slane %v617, 3
        %v627 = vmul.f32 %v615, %v619
        %v628 = vmul.f32 %v614, %v620
        %v629 = vmul.f32 %v613, %v621
        %v630 = vmul.f32 %v612, %v622
        %631 = vrot.lane.b32.xlu0 %v533, 65
        %v632 = vpop.permute.xlu0 %631
        %633 = vrot.lane.b32.xlu0 %v534, 65
        %v634 = vpop.permute.xlu0 %633
        %635 = vrot.lane.b32.xlu0 %v535, 65
        %v636 = vpop.permute.xlu0 %635
        %637 = vrot.lane.b32.xlu0 %v536, 65
        %v638 = vpop.permute.xlu0 %637
        %vm639 = vcmp.lt.s32.totalorder %v547, 65
        %v640 = vsel %vm639, %v636, %v638
        %v641 = vsel %vm639, %v634, %v636
        %v642 = vsel %vm639, %v632, %v634
        %v643 = vsel %vm639, %v638, %v632
        %s644 = scalar_lea.vmem [#allocation6], 3
        %v645 = vld [vmem:[%s644] ss:$8 sm:$0xf]
        %v647 = vperm.slane %v645, 0
        %v648 = vperm.slane %v645, 1
        %v649 = vperm.slane %v645, 2
        %v650 = vperm.slane %v645, 3
        %v655 = vmul.f32 %v643, %v647
        %v656 = vmul.f32 %v642, %v648
        %v657 = vmul.f32 %v641, %v649
        %v658 = vmul.f32 %v640, %v650
        %v659 = vpack.c.bf16 %v628, %v627
        %v660 = vpack.c.bf16 %v630, %v629
        %v661 = vpack.c.bf16 %v656, %v655
        %v662 = vpack.c.bf16 %v658, %v657
        %663 = vst [vmem:[#allocation2 + $0x20] sm:$0xff] %v659
        %664 = vst [vmem:[#allocation2 + $0x28] sm:$0xff] %v660
        %665 = vst [vmem:[#allocation2 + $0x30] sm:$0xff] %v661
        %666 = vst [vmem:[#allocation2 + $0x38] sm:$0xff] %v662
        %667 = vrot.lane.b32.xlu0 %v533, 64
        %v668 = vpop.permute.xlu0 %667
        %669 = vrot.lane.b32.xlu0 %v534, 64
        %v670 = vpop.permute.xlu0 %669
        %671 = vrot.lane.b32.xlu0 %v535, 64
        %v672 = vpop.permute.xlu0 %671
        %673 = vrot.lane.b32.xlu0 %v536, 64
        %v674 = vpop.permute.xlu0 %673
        %vm675 = vcmp.lt.s32.totalorder %v547, 64
        %v676 = vsel %vm675, %v672, %v674
        %v677 = vsel %vm675, %v670, %v672
        %v678 = vsel %vm675, %v668, %v670
        %v679 = vsel %vm675, %v674, %v668
        %s680 = scalar_lea.vmem [#allocation6], 4
        %v681 = vld [vmem:[%s680] ss:$8 sm:$0xf]
        %v683 = vperm.slane %v681, 0
        %v684 = vperm.slane %v681, 1
        %v685 = vperm.slane %v681, 2
        %v686 = vperm.slane %v681, 3
        %v691 = vmul.f32 %v679, %v683
        %v692 = vmul.f32 %v678, %v684
        %v693 = vmul.f32 %v677, %v685
        %v694 = vmul.f32 %v676, %v686
        %695 = vrot.lane.b32.xlu0 %v533, 63
        %v696 = vpop.permute.xlu0 %695
        %697 = vrot.lane.b32.xlu0 %v534, 63
        %v698 = vpop.permute.xlu0 %697
        %699 = vrot.lane.b32.xlu0 %v535, 63
        %v700 = vpop.permute.xlu0 %699
        %701 = vrot.lane.b32.xlu0 %v536, 63
        %v702 = vpop.permute.xlu0 %701
        %vm703 = vcmp.lt.s32.totalorder %v547, 63
        %v704 = vsel %vm703, %v700, %v702
        %v705 = vsel %vm703, %v698, %v700
        %v706 = vsel %vm703, %v696, %v698
        %v707 = vsel %vm703, %v702, %v696
        %s708 = scalar_lea.vmem [#allocation6], 5
        %v709 = vld [vmem:[%s708] ss:$8 sm:$0xf]
        %v711 = vperm.slane %v709, 0
        %v712 = vperm.slane %v709, 1
        %v713 = vperm.slane %v709, 2
        %v714 = vperm.slane %v709, 3
        %v719 = vmul.f32 %v707, %v711
        %v720 = vmul.f32 %v706, %v712
        %v721 = vmul.f32 %v705, %v713
        %v722 = vmul.f32 %v704, %v714
        %v723 = vpack.c.bf16 %v692, %v691
        %v724 = vpack.c.bf16 %v694, %v693
        %v725 = vpack.c.bf16 %v720, %v719
        %v726 = vpack.c.bf16 %v722, %v721
        %727 = vst [vmem:[#allocation2 + $0x40] sm:$0xff] %v723
        %728 = vst [vmem:[#allocation2 + $0x48] sm:$0xff] %v724
        %729 = vst [vmem:[#allocation2 + $0x50] sm:$0xff] %v725
        %730 = vst [vmem:[#allocation2 + $0x58] sm:$0xff] %v726
        %731 = vrot.lane.b32.xlu0 %v533, 57
        %v732 = vpop.permute.xlu0 %731
        %733 = vrot.lane.b32.xlu0 %v534, 57
        %v734 = vpop.permute.xlu0 %733
        %735 = vrot.lane.b32.xlu0 %v535, 57
        %v736 = vpop.permute.xlu0 %735
        %737 = vrot.lane.b32.xlu0 %v536, 57
        %v738 = vpop.permute.xlu0 %737
        %vm739 = vcmp.lt.s32.totalorder %v547, 57
        %v740 = vsel %vm739, %v736, %v738
        %v741 = vsel %vm739, %v734, %v736
        %v742 = vsel %vm739, %v732, %v734
        %v743 = vsel %vm739, %v738, %v732
        %s744 = scalar_lea.vmem [#allocation6], 6
        %v745 = vld [vmem:[%s744] ss:$8 sm:$0xf]
        %v747 = vperm.slane %v745, 0
        %v748 = vperm.slane %v745, 1
        %v749 = vperm.slane %v745, 2
        %v750 = vperm.slane %v745, 3
        %v755 = vmul.f32 %v743, %v747
        %v756 = vmul.f32 %v742, %v748
        %v757 = vmul.f32 %v741, %v749
        %v758 = vmul.f32 %v740, %v750
        %759 = vrot.lane.b32.xlu0 %v533, 56
        %v760 = vpop.permute.xlu0 %759
        %761 = vrot.lane.b32.xlu0 %v534, 56
        %v762 = vpop.permute.xlu0 %761
        %763 = vrot.lane.b32.xlu0 %v535, 56
        %v764 = vpop.permute.xlu0 %763
        %765 = vrot.lane.b32.xlu0 %v536, 56
        %v766 = vpop.permute.xlu0 %765
        %vm767 = vcmp.lt.s32.totalorder %v547, 56
        %v768 = vsel %vm767, %v764, %v766
        %v769 = vsel %vm767, %v762, %v764
        %v770 = vsel %vm767, %v760, %v762
        %v771 = vsel %vm767, %v766, %v760
        %s772 = scalar_lea.vmem [#allocation6], 7
        %v773 = vld [vmem:[%s772] ss:$8 sm:$0xf]
        %v775 = vperm.slane %v773, 0
        %v776 = vperm.slane %v773, 1
        %v777 = vperm.slane %v773, 2
        %v778 = vperm.slane %v773, 3
        %v783 = vmul.f32 %v771, %v775
        %v784 = vmul.f32 %v770, %v776
        %v785 = vmul.f32 %v769, %v777
        %v786 = vmul.f32 %v768, %v778
        %v787 = vpack.c.bf16 %v756, %v755
        %v788 = vpack.c.bf16 %v758, %v757
        %v789 = vpack.c.bf16 %v784, %v783
        %v790 = vpack.c.bf16 %v786, %v785
        %791 = vst [vmem:[#allocation2 + $0x60] sm:$0xff] %v787
        %792 = vst [vmem:[#allocation2 + $0x68] sm:$0xff] %v788
        %793 = vst [vmem:[#allocation2 + $0x70] sm:$0xff] %v789
        %794 = vst [vmem:[#allocation2 + $0x78] sm:$0xff] %v790
        %795 = vrot.lane.b32.xlu0 %v533, 55
        %v796 = vpop.permute.xlu0 %795
        %797 = vrot.lane.b32.xlu0 %v534, 55
        %v798 = vpop.permute.xlu0 %797
        %799 = vrot.lane.b32.xlu0 %v535, 55
        %v800 = vpop.permute.xlu0 %799
        %801 = vrot.lane.b32.xlu0 %v536, 55
        %v802 = vpop.permute.xlu0 %801
        %vm803 = vcmp.lt.s32.totalorder %v547, 55
        %v804 = vsel %vm803, %v800, %v802
        %v805 = vsel %vm803, %v798, %v800
        %v806 = vsel %vm803, %v796, %v798
        %v807 = vsel %vm803, %v802, %v796
        %s808 = scalar_lea.vmem [#allocation6], 32
        %v809 = vld [vmem:[%s808] ss:$8 sm:$0xf]
        %v811 = vperm.slane %v809, 0
        %v812 = vperm.slane %v809, 1
        %v813 = vperm.slane %v809, 2
        %v814 = vperm.slane %v809, 3
        %v819 = vmul.f32 %v807, %v811
        %v820 = vmul.f32 %v806, %v812
        %v821 = vmul.f32 %v805, %v813
        %v822 = vmul.f32 %v804, %v814
        %823 = vrot.lane.b32.xlu0 %v533, 9
        %v824 = vpop.permute.xlu0 %823
        %825 = vrot.lane.b32.xlu0 %v534, 9
        %v826 = vpop.permute.xlu0 %825
        %827 = vrot.lane.b32.xlu0 %v535, 9
        %v828 = vpop.permute.xlu0 %827
        %829 = vrot.lane.b32.xlu0 %v536, 9
        %v830 = vpop.permute.xlu0 %829
        %vm831 = vcmp.lt.s32.totalorder %v547, 9
        %v832 = vsel %vm831, %v828, %v830
        %v833 = vsel %vm831, %v826, %v828
        %v834 = vsel %vm831, %v824, %v826
        %v835 = vsel %vm831, %v830, %v824
        %s836 = scalar_lea.vmem [#allocation6], 33
        %v837 = vld [vmem:[%s836] ss:$8 sm:$0xf]
        %v839 = vperm.slane %v837, 0
        %v840 = vperm.slane %v837, 1
        %v841 = vperm.slane %v837, 2
        %v842 = vperm.slane %v837, 3
        %v847 = vmul.f32 %v835, %v839
        %v848 = vmul.f32 %v834, %v840
        %v849 = vmul.f32 %v833, %v841
        %v850 = vmul.f32 %v832, %v842
        %v851 = vpack.c.bf16 %v820, %v819
        %v852 = vpack.c.bf16 %v822, %v821
        %v853 = vpack.c.bf16 %v848, %v847
        %v854 = vpack.c.bf16 %v850, %v849
        %855 = vst [vmem:[#allocation2 + $0x80] sm:$0xff] %v851
        %856 = vst [vmem:[#allocation2 + $0x88] sm:$0xff] %v852
        %857 = vst [vmem:[#allocation2 + $0x90] sm:$0xff] %v853
        %858 = vst [vmem:[#allocation2 + $0x98] sm:$0xff] %v854
        %859 = vrot.lane.b32.xlu0 %v533, 8
        %v860 = vpop.permute.xlu0 %859
        %861 = vrot.lane.b32.xlu0 %v534, 8
        %v862 = vpop.permute.xlu0 %861
        %863 = vrot.lane.b32.xlu0 %v535, 8
        %v864 = vpop.permute.xlu0 %863
        %865 = vrot.lane.b32.xlu0 %v536, 8
        %v866 = vpop.permute.xlu0 %865
        %vm867 = vcmp.lt.s32.totalorder %v547, 8
        %v868 = vsel %vm867, %v864, %v866
        %v869 = vsel %vm867, %v862, %v864
        %v870 = vsel %vm867, %v860, %v862
        %v871 = vsel %vm867, %v866, %v860
        %s872 = scalar_lea.vmem [#allocation6], 34
        %v873 = vld [vmem:[%s872] ss:$8 sm:$0xf]
        %v875 = vperm.slane %v873, 0
        %v876 = vperm.slane %v873, 1
        %v877 = vperm.slane %v873, 2
        %v878 = vperm.slane %v873, 3
        %v883 = vmul.f32 %v871, %v875
        %v884 = vmul.f32 %v870, %v876
        %v885 = vmul.f32 %v869, %v877
        %v886 = vmul.f32 %v868, %v878
        %887 = vrot.lane.b32.xlu0 %v533, 7
        %v888 = vpop.permute.xlu0 %887
        %889 = vrot.lane.b32.xlu0 %v534, 7
        %v890 = vpop.permute.xlu0 %889
        %891 = vrot.lane.b32.xlu0 %v535, 7
        %v892 = vpop.permute.xlu0 %891
        %893 = vrot.lane.b32.xlu0 %v536, 7
        %v894 = vpop.permute.xlu0 %893
        %vm895 = vcmp.lt.s32.totalorder %v547, 7
        %v896 = vsel %vm895, %v892, %v894
        %v897 = vsel %vm895, %v890, %v892
        %v898 = vsel %vm895, %v888, %v890
        %v899 = vsel %vm895, %v894, %v888
        %s900 = scalar_lea.vmem [#allocation6], 35
        %v901 = vld [vmem:[%s900] ss:$8 sm:$0xf]
        %v903 = vperm.slane %v901, 0
        %v904 = vperm.slane %v901, 1
        %v905 = vperm.slane %v901, 2
        %v906 = vperm.slane %v901, 3
        %v911 = vmul.f32 %v899, %v903
        %v912 = vmul.f32 %v898, %v904
        %v913 = vmul.f32 %v897, %v905
        %v914 = vmul.f32 %v896, %v906
        %v915 = vpack.c.bf16 %v884, %v883
        %v916 = vpack.c.bf16 %v886, %v885
        %v917 = vpack.c.bf16 %v912, %v911
        %v918 = vpack.c.bf16 %v914, %v913
        %919 = vst [vmem:[#allocation2 + $0xa0] sm:$0xff] %v915
        %920 = vst [vmem:[#allocation2 + $0xa8] sm:$0xff] %v916
        %921 = vst [vmem:[#allocation2 + $0xb0] sm:$0xff] %v917
        %922 = vst [vmem:[#allocation2 + $0xb8] sm:$0xff] %v918
        %923 = vrot.lane.b32.xlu0 %v533, 1
        %v924 = vpop.permute.xlu0 %923
        %925 = vrot.lane.b32.xlu0 %v534, 1
        %v926 = vpop.permute.xlu0 %925
        %927 = vrot.lane.b32.xlu0 %v535, 1
        %v928 = vpop.permute.xlu0 %927
        %929 = vrot.lane.b32.xlu0 %v536, 1
        %v930 = vpop.permute.xlu0 %929
        %vm931 = vcmp.lt.s32.totalorder %v547, 1
        %v932 = vsel %vm931, %v928, %v930
        %v933 = vsel %vm931, %v926, %v928
        %v934 = vsel %vm931, %v924, %v926
        %v935 = vsel %vm931, %v930, %v924
        %s936 = scalar_lea.vmem [#allocation6], 36
        %v937 = vld [vmem:[%s936] ss:$8 sm:$0xf]
        %v939 = vperm.slane %v937, 0
        %v940 = vperm.slane %v937, 1
        %v941 = vperm.slane %v937, 2
        %v942 = vperm.slane %v937, 3
        %v947 = vmul.f32 %v935, %v939
        %v948 = vmul.f32 %v934, %v940
        %v949 = vmul.f32 %v933, %v941
        %v950 = vmul.f32 %v932, %v942
        %v951 = vpack.c.bf16 %v948, %v947
        %v952 = vpack.c.bf16 %v950, %v949
        %v953 = vpack.c.bf16 %v534, %v533
        %v954 = vpack.c.bf16 %v536, %v535
        %955 = vst [vmem:[#allocation2 + $0xc0] sm:$0xff] %v951
        %956 = vst [vmem:[#allocation2 + $0xc8] sm:$0xff] %v952
        %957 = vst [vmem:[#allocation2 + $0xd0] sm:$0xff] %v953
        %958 = vst [vmem:[#allocation2 + $0xd8] sm:$0xff] %v954
        %959 = vrot.lane.b32.xlu0 %v533, 127
        %v960 = vpop.permute.xlu0 %959
        %961 = vrot.lane.b32.xlu0 %v534, 127
        %v962 = vpop.permute.xlu0 %961
        %963 = vrot.lane.b32.xlu0 %v535, 127
        %v964 = vpop.permute.xlu0 %963
        %965 = vrot.lane.b32.xlu0 %v536, 127
        %v966 = vpop.permute.xlu0 %965
        %vm967 = vcmp.lt.s32.totalorder %v547, 127
        %v968 = vsel %vm967, %v964, %v966
        %v969 = vsel %vm967, %v962, %v964
        %v970 = vsel %vm967, %v960, %v962
        %v971 = vsel %vm967, %v966, %v960
        %s972 = scalar_lea.vmem [#allocation6], 38
        %v973 = vld [vmem:[%s972] ss:$8 sm:$0xf]
        %v975 = vperm.slane %v973, 0
        %v976 = vperm.slane %v973, 1
        %v977 = vperm.slane %v973, 2
        %v978 = vperm.slane %v973, 3
        %v983 = vmul.f32 %v970, %v975
        %v984 = vmul.f32 %v969, %v976
        %v985 = vmul.f32 %v968, %v977
        %v986 = vmul.f32 %v971, %v978
        %987 = vrot.lane.b32.xlu0 %v533, 121
        %v988 = vpop.permute.xlu0 %987
        %989 = vrot.lane.b32.xlu0 %v534, 121
        %v990 = vpop.permute.xlu0 %989
        %991 = vrot.lane.b32.xlu0 %v535, 121
        %v992 = vpop.permute.xlu0 %991
        %993 = vrot.lane.b32.xlu0 %v536, 121
        %v994 = vpop.permute.xlu0 %993
        %vm995 = vcmp.lt.s32.totalorder %v547, 121
        %v996 = vsel %vm995, %v992, %v994
        %v997 = vsel %vm995, %v990, %v992
        %v998 = vsel %vm995, %v988, %v990
        %v999 = vsel %vm995, %v994, %v988
        %s1000 = scalar_lea.vmem [#allocation6], 39
        %v1001 = vld [vmem:[%s1000] ss:$8 sm:$0xf]
        %v1003 = vperm.slane %v1001, 0
        %v1004 = vperm.slane %v1001, 1
        %v1005 = vperm.slane %v1001, 2
        %v1006 = vperm.slane %v1001, 3
        %v1011 = vmul.f32 %v998, %v1003
        %v1012 = vmul.f32 %v997, %v1004
        %v1013 = vmul.f32 %v996, %v1005
        %v1014 = vmul.f32 %v999, %v1006
        %v1015 = vpack.c.bf16 %v984, %v983
        %v1016 = vpack.c.bf16 %v986, %v985
        %v1017 = vpack.c.bf16 %v1012, %v1011
        %v1018 = vpack.c.bf16 %v1014, %v1013
        %1019 = vst [vmem:[#allocation2 + $0xe0] sm:$0xff] %v1015
        %1020 = vst [vmem:[#allocation2 + $0xe8] sm:$0xff] %v1016
        %1021 = vst [vmem:[#allocation2 + $0xf0] sm:$0xff] %v1017
        %1022 = vst [vmem:[#allocation2 + $0xf8] sm:$0xff] %v1018
        %1023 = vrot.lane.b32.xlu0 %v533, 120
        %v1024 = vpop.permute.xlu0 %1023
        %1025 = vrot.lane.b32.xlu0 %v534, 120
        %v1026 = vpop.permute.xlu0 %1025
        %1027 = vrot.lane.b32.xlu0 %v535, 120
        %v1028 = vpop.permute.xlu0 %1027
        %1029 = vrot.lane.b32.xlu0 %v536, 120
        %v1030 = vpop.permute.xlu0 %1029
        %vm1031 = vcmp.lt.s32.totalorder %v547, 120
        %v1032 = vsel %vm1031, %v1028, %v1030
        %v1033 = vsel %vm1031, %v1026, %v1028
        %v1034 = vsel %vm1031, %v1024, %v1026
        %v1035 = vsel %vm1031, %v1030, %v1024
        %s1036 = scalar_lea.vmem [#allocation6], 64
        %v1037 = vld [vmem:[%s1036] ss:$8 sm:$0xf]
        %v1039 = vperm.slane %v1037, 0
        %v1040 = vperm.slane %v1037, 1
        %v1041 = vperm.slane %v1037, 2
        %v1042 = vperm.slane %v1037, 3
        %v1047 = vmul.f32 %v1034, %v1039
        %v1048 = vmul.f32 %v1033, %v1040
        %v1049 = vmul.f32 %v1032, %v1041
        %v1050 = vmul.f32 %v1035, %v1042
        %1051 = vrot.lane.b32.xlu0 %v533, 119
        %v1052 = vpop.permute.xlu0 %1051
        %1053 = vrot.lane.b32.xlu0 %v534, 119
        %v1054 = vpop.permute.xlu0 %1053
        %1055 = vrot.lane.b32.xlu0 %v535, 119
        %v1056 = vpop.permute.xlu0 %1055
        %1057 = vrot.lane.b32.xlu0 %v536, 119
        %v1058 = vpop.permute.xlu0 %1057
        %vm1059 = vcmp.lt.s32.totalorder %v547, 119
        %v1060 = vsel %vm1059, %v1056, %v1058
        %v1061 = vsel %vm1059, %v1054, %v1056
        %v1062 = vsel %vm1059, %v1052, %v1054
        %v1063 = vsel %vm1059, %v1058, %v1052
        %s1064 = scalar_lea.vmem [#allocation6], 65
        %v1065 = vld [vmem:[%s1064] ss:$8 sm:$0xf]
        %v1067 = vperm.slane %v1065, 0
        %v1068 = vperm.slane %v1065, 1
        %v1069 = vperm.slane %v1065, 2
        %v1070 = vperm.slane %v1065, 3
        %v1075 = vmul.f32 %v1062, %v1067
        %v1076 = vmul.f32 %v1061, %v1068
        %v1077 = vmul.f32 %v1060, %v1069
        %v1078 = vmul.f32 %v1063, %v1070
        %v1079 = vpack.c.bf16 %v1048, %v1047
        %v1080 = vpack.c.bf16 %v1050, %v1049
        %v1081 = vpack.c.bf16 %v1076, %v1075
        %v1082 = vpack.c.bf16 %v1078, %v1077
        %1083 = vst [vmem:[#allocation2 + $0x100] sm:$0xff] %v1079
        %1084 = vst [vmem:[#allocation2 + $0x108] sm:$0xff] %v1080
        %1085 = vst [vmem:[#allocation2 + $0x110] sm:$0xff] %v1081
        %1086 = vst [vmem:[#allocation2 + $0x118] sm:$0xff] %v1082
        %s1087 = scalar_lea.vmem [#allocation6], 66
        %v1088 = vld [vmem:[%s1087] ss:$8 sm:$0xf]
        %v1090 = vperm.slane %v1088, 0
        %v1091 = vperm.slane %v1088, 1
        %v1092 = vperm.slane %v1088, 2
        %v1093 = vperm.slane %v1088, 3
        %v1098 = vmul.f32 %v551, %v1090
        %v1099 = vmul.f32 %v550, %v1091
        %v1100 = vmul.f32 %v549, %v1092
        %v1101 = vmul.f32 %v552, %v1093
        %s1102 = scalar_lea.vmem [#allocation6], 67
        %v1103 = vld [vmem:[%s1102] ss:$8 sm:$0xf]
        %v1105 = vperm.slane %v1103, 0
        %v1106 = vperm.slane %v1103, 1
        %v1107 = vperm.slane %v1103, 2
        %v1108 = vperm.slane %v1103, 3
        %v1113 = vmul.f32 %v578, %v1105
        %v1114 = vmul.f32 %v577, %v1106
        %v1115 = vmul.f32 %v576, %v1107
        %v1116 = vmul.f32 %v579, %v1108
        %v1117 = vpack.c.bf16 %v1099, %v1098
        %v1118 = vpack.c.bf16 %v1101, %v1100
        %v1119 = vpack.c.bf16 %v1114, %v1113
        %v1120 = vpack.c.bf16 %v1116, %v1115
        %1121 = vst [vmem:[#allocation2 + $0x120] sm:$0xff] %v1117
        %1122 = vst [vmem:[#allocation2 + $0x128] sm:$0xff] %v1118
        %1123 = vst [vmem:[#allocation2 + $0x130] sm:$0xff] %v1119
        %1124 = vst [vmem:[#allocation2 + $0x138] sm:$0xff] %v1120
        %s1125 = scalar_lea.vmem [#allocation6], 68
        %v1126 = vld [vmem:[%s1125] ss:$8 sm:$0xf]
        %v1128 = vperm.slane %v1126, 0
        %v1129 = vperm.slane %v1126, 1
        %v1130 = vperm.slane %v1126, 2
        %v1131 = vperm.slane %v1126, 3
        %v1136 = vmul.f32 %v614, %v1128
        %v1137 = vmul.f32 %v613, %v1129
        %v1138 = vmul.f32 %v612, %v1130
        %v1139 = vmul.f32 %v615, %v1131
        %s1140 = scalar_lea.vmem [#allocation6], 69
        %v1141 = vld [vmem:[%s1140] ss:$8 sm:$0xf]
        %v1143 = vperm.slane %v1141, 0
        %v1144 = vperm.slane %v1141, 1
        %v1145 = vperm.slane %v1141, 2
        %v1146 = vperm.slane %v1141, 3
        %v1151 = vmul.f32 %v642, %v1143
        %v1152 = vmul.f32 %v641, %v1144
        %v1153 = vmul.f32 %v640, %v1145
        %v1154 = vmul.f32 %v643, %v1146
        %v1155 = vpack.c.bf16 %v1137, %v1136
        %v1156 = vpack.c.bf16 %v1139, %v1138
        %v1157 = vpack.c.bf16 %v1152, %v1151
        %v1158 = vpack.c.bf16 %v1154, %v1153
        %1159 = vst [vmem:[#allocation2 + $0x140] sm:$0xff] %v1155
        %1160 = vst [vmem:[#allocation2 + $0x148] sm:$0xff] %v1156
        %1161 = vst [vmem:[#allocation2 + $0x150] sm:$0xff] %v1157
        %1162 = vst [vmem:[#allocation2 + $0x158] sm:$0xff] %v1158
        %s1163 = scalar_lea.vmem [#allocation6], 70
        %v1164 = vld [vmem:[%s1163] ss:$8 sm:$0xf]
        %v1166 = vperm.slane %v1164, 0
        %v1167 = vperm.slane %v1164, 1
        %v1168 = vperm.slane %v1164, 2
        %v1169 = vperm.slane %v1164, 3
        %v1174 = vmul.f32 %v678, %v1166
        %v1175 = vmul.f32 %v677, %v1167
        %v1176 = vmul.f32 %v676, %v1168
        %v1177 = vmul.f32 %v679, %v1169
        %s1178 = scalar_lea.vmem [#allocation6], 71
        %v1179 = vld [vmem:[%s1178] ss:$8 sm:$0xf]
        %v1181 = vperm.slane %v1179, 0
        %v1182 = vperm.slane %v1179, 1
        %v1183 = vperm.slane %v1179, 2
        %v1184 = vperm.slane %v1179, 3
        %v1189 = vmul.f32 %v706, %v1181
        %v1190 = vmul.f32 %v705, %v1182
        %v1191 = vmul.f32 %v704, %v1183
        %v1192 = vmul.f32 %v707, %v1184
        %v1193 = vpack.c.bf16 %v1175, %v1174
        %v1194 = vpack.c.bf16 %v1177, %v1176
        %v1195 = vpack.c.bf16 %v1190, %v1189
        %v1196 = vpack.c.bf16 %v1192, %v1191
        %1197 = vst [vmem:[#allocation2 + $0x160] sm:$0xff] %v1193
        %1198 = vst [vmem:[#allocation2 + $0x168] sm:$0xff] %v1194
        %1199 = vst [vmem:[#allocation2 + $0x170] sm:$0xff] %v1195
        %1200 = vst [vmem:[#allocation2 + $0x178] sm:$0xff] %v1196
        %s1201 = scalar_lea.vmem [#allocation6], 96
        %v1202 = vld [vmem:[%s1201] ss:$8 sm:$0xf]
        %v1204 = vperm.slane %v1202, 0
        %v1205 = vperm.slane %v1202, 1
        %v1206 = vperm.slane %v1202, 2
        %v1207 = vperm.slane %v1202, 3
        %v1212 = vmul.f32 %v742, %v1204
        %v1213 = vmul.f32 %v741, %v1205
        %v1214 = vmul.f32 %v740, %v1206
        %v1215 = vmul.f32 %v743, %v1207
        %s1216 = scalar_lea.vmem [#allocation6], 97
        %v1217 = vld [vmem:[%s1216] ss:$8 sm:$0xf]
        %v1219 = vperm.slane %v1217, 0
        %v1220 = vperm.slane %v1217, 1
        %v1221 = vperm.slane %v1217, 2
        %v1222 = vperm.slane %v1217, 3
        %v1227 = vmul.f32 %v770, %v1219
        %v1228 = vmul.f32 %v769, %v1220
        %v1229 = vmul.f32 %v768, %v1221
        %v1230 = vmul.f32 %v771, %v1222
        %v1231 = vpack.c.bf16 %v1213, %v1212
        %v1232 = vpack.c.bf16 %v1215, %v1214
        %v1233 = vpack.c.bf16 %v1228, %v1227
        %v1234 = vpack.c.bf16 %v1230, %v1229
        %1235 = vst [vmem:[#allocation2 + $0x180] sm:$0xff] %v1231
        %1236 = vst [vmem:[#allocation2 + $0x188] sm:$0xff] %v1232
        %1237 = vst [vmem:[#allocation2 + $0x190] sm:$0xff] %v1233
        %1238 = vst [vmem:[#allocation2 + $0x198] sm:$0xff] %v1234
        %s1239 = scalar_lea.vmem [#allocation6], 98
        %v1240 = vld [vmem:[%s1239] ss:$8 sm:$0xf]
        %v1242 = vperm.slane %v1240, 0
        %v1243 = vperm.slane %v1240, 1
        %v1244 = vperm.slane %v1240, 2
        %v1245 = vperm.slane %v1240, 3
        %v1250 = vmul.f32 %v806, %v1242
        %v1251 = vmul.f32 %v805, %v1243
        %v1252 = vmul.f32 %v804, %v1244
        %v1253 = vmul.f32 %v807, %v1245
        %v1254 = vpack.c.bf16 %v1251, %v1250
        %v1255 = vpack.c.bf16 %v1253, %v1252
        %v1256 = vpack.c.bf16 0.0, 0.0
        %1257 = vst [vmem:[#allocation2 + $0x1a0] sm:$0xff] %v1254
        %1258 = vst [vmem:[#allocation2 + $0x1a8] sm:$0xff] %v1255
        %1259 = vst [vmem:[#allocation2 + $0x1b0] sm:$0xff] %v1256
        %1260 = vst [vmem:[#allocation2 + $0x1b8] sm:$0xff] %v1256
        %v1261 = vld [vmem:[%s5] sm:$0xff]
        %v1262 = vld [vmem:[#allocation2] sm:$0xff]
        %v1263 = vld [vmem:[#allocation2 + $0x8] sm:$0xff]
        %v1264 = vld [vmem:[#allocation2 + $0x10] sm:$0xff]
        %v1265 = vld [vmem:[#allocation2 + $0x18] sm:$0xff]
        %v1266 = vld [vmem:[#allocation2 + $0x20] sm:$0xff]
        %v1267 = vld [vmem:[#allocation2 + $0x28] sm:$0xff]
        %v1268 = vld [vmem:[#allocation2 + $0x30] sm:$0xff]
        %v1269 = vld [vmem:[#allocation2 + $0x38] sm:$0xff]
        %v1270 = vld [vmem:[#allocation2 + $0x40] sm:$0xff]
        %v1271 = vld [vmem:[#allocation2 + $0x48] sm:$0xff]
        %v1272 = vld [vmem:[#allocation2 + $0x50] sm:$0xff]
        %v1273 = vld [vmem:[#allocation2 + $0x58] sm:$0xff]
        %v1274 = vld [vmem:[#allocation2 + $0x60] sm:$0xff]
        %v1275 = vld [vmem:[#allocation2 + $0x68] sm:$0xff]
        %v1276 = vld [vmem:[#allocation2 + $0x70] sm:$0xff]
        %v1277 = vld [vmem:[#allocation2 + $0x78] sm:$0xff]
        %v1278 = vld [vmem:[#allocation2 + $0x80] sm:$0xff]
        %v1279 = vld [vmem:[#allocation2 + $0x88] sm:$0xff]
        %v1280 = vld [vmem:[#allocation2 + $0x90] sm:$0xff]
        %v1281 = vld [vmem:[#allocation2 + $0x98] sm:$0xff]
        %v1282 = vld [vmem:[#allocation2 + $0xa0] sm:$0xff]
        %v1283 = vld [vmem:[#allocation2 + $0xa8] sm:$0xff]
        %v1284 = vld [vmem:[#allocation2 + $0xb0] sm:$0xff]
        %v1285 = vld [vmem:[#allocation2 + $0xb8] sm:$0xff]
        %v1286 = vld [vmem:[#allocation2 + $0xc0] sm:$0xff]
        %v1287 = vld [vmem:[#allocation2 + $0xc8] sm:$0xff]
        %v1288 = vld [vmem:[#allocation2 + $0xd0] sm:$0xff]
        %v1289 = vld [vmem:[#allocation2 + $0xd8] sm:$0xff]
        %v1290 = vld [vmem:[#allocation2 + $0xe0] sm:$0xff]
        %v1291 = vld [vmem:[#allocation2 + $0xe8] sm:$0xff]
        %v1292 = vld [vmem:[#allocation2 + $0xf0] sm:$0xff]
        %v1293 = vld [vmem:[#allocation2 + $0xf8] sm:$0xff]
        %v1294 = vld [vmem:[#allocation2 + $0x100] sm:$0xff]
        %v1295 = vld [vmem:[#allocation2 + $0x108] sm:$0xff]
        %v1296 = vld [vmem:[#allocation2 + $0x110] sm:$0xff]
        %v1297 = vld [vmem:[#allocation2 + $0x118] sm:$0xff]
        %v1298 = vld [vmem:[#allocation2 + $0x120] sm:$0xff]
        %v1299 = vld [vmem:[#allocation2 + $0x128] sm:$0xff]
        %v1300 = vld [vmem:[#allocation2 + $0x130] sm:$0xff]
        %v1301 = vld [vmem:[#allocation2 + $0x138] sm:$0xff]
        %v1302 = vld [vmem:[#allocation2 + $0x140] sm:$0xff]
        %v1303 = vld [vmem:[#allocation2 + $0x148] sm:$0xff]
        %v1304 = vld [vmem:[#allocation2 + $0x150] sm:$0xff]
        %v1305 = vld [vmem:[#allocation2 + $0x158] sm:$0xff]
        %v1306 = vld [vmem:[#allocation2 + $0x160] sm:$0xff]
        %v1307 = vld [vmem:[#allocation2 + $0x168] sm:$0xff]
        %v1308 = vld [vmem:[#allocation2 + $0x170] sm:$0xff]
        %v1309 = vld [vmem:[#allocation2 + $0x178] sm:$0xff]
        %v1310 = vld [vmem:[#allocation2 + $0x180] sm:$0xff]
        %v1311 = vld [vmem:[#allocation2 + $0x188] sm:$0xff]
        %v1312 = vld [vmem:[#allocation2 + $0x190] sm:$0xff]
        %v1313 = vld [vmem:[#allocation2 + $0x198] sm:$0xff]
        %v1314 = vld [vmem:[#allocation2 + $0x1a0] sm:$0xff]
        %v1315 = vld [vmem:[#allocation2 + $0x1a8] sm:$0xff]
        %v1316 = vld [vmem:[#allocation2 + $0x1b0] sm:$0xff]
        %v1317 = vld [vmem:[#allocation2 + $0x1b8] sm:$0xff]
        %1319 = vset.pattern.permute.xlu0 0
        %1320 = vperm.xlu0 %1319, %v537
        %v1321 = vpop.permute.xlu0 %1320
        %v1324 = vunpack.c.l.b16 %v1261
        %v1325 = vunpack.c.h.b16 %v1261
        %v1326 = vpack.c.b16 %v1324, %v1324
        %v1327 = vpack.c.b16 %v1325, %v1325
        %v1385 = vunpack.c.l.b16 %v1262
        %v1386 = vunpack.c.h.b16 %v1262
        %v1387 = vunpack.c.l.b16 %v1263
        %v1388 = vunpack.c.h.b16 %v1263
        %v1389 = vunpack.c.l.b16 %v1264
        %v1390 = vunpack.c.h.b16 %v1264
        %v1391 = vunpack.c.l.b16 %v1265
        %v1392 = vunpack.c.h.b16 %v1265
        %v1393 = vunpack.c.l.b16 %v1266
        %v1394 = vunpack.c.h.b16 %v1266
        %v1395 = vunpack.c.l.b16 %v1267
        %v1396 = vunpack.c.h.b16 %v1267
        %v1397 = vunpack.c.l.b16 %v1268
        %v1398 = vunpack.c.h.b16 %v1268
        %v1399 = vunpack.c.l.b16 %v1269
        %v1400 = vunpack.c.h.b16 %v1269
        %v1401 = vunpack.c.l.b16 %v1270
        %v1402 = vunpack.c.h.b16 %v1270
        %v1403 = vunpack.c.l.b16 %v1271
        %v1404 = vunpack.c.h.b16 %v1271
        %v1405 = vunpack.c.l.b16 %v1272
        %v1406 = vunpack.c.h.b16 %v1272
        %v1407 = vunpack.c.l.b16 %v1273
        %v1408 = vunpack.c.h.b16 %v1273
        %v1409 = vunpack.c.l.b16 %v1274
        %v1410 = vunpack.c.h.b16 %v1274
        %v1411 = vunpack.c.l.b16 %v1275
        %v1412 = vunpack.c.h.b16 %v1275
        %v1413 = vunpack.c.l.b16 %v1276
        %v1414 = vunpack.c.h.b16 %v1276
        %v1415 = vunpack.c.l.b16 %v1277
        %v1416 = vunpack.c.h.b16 %v1277
        %v1417 = vunpack.c.l.b16 %v1278
        %v1418 = vunpack.c.h.b16 %v1278
        %v1419 = vunpack.c.l.b16 %v1279
        %v1420 = vunpack.c.h.b16 %v1279
        %v1421 = vunpack.c.l.b16 %v1280
        %v1422 = vunpack.c.h.b16 %v1280
        %v1423 = vunpack.c.l.b16 %v1281
        %v1424 = vunpack.c.h.b16 %v1281
        %v1425 = vunpack.c.l.b16 %v1282
        %v1426 = vunpack.c.h.b16 %v1282
        %v1427 = vunpack.c.l.b16 %v1283
        %v1428 = vunpack.c.h.b16 %v1283
        %v1429 = vunpack.c.l.b16 %v1284
        %v1430 = vunpack.c.h.b16 %v1284
        %v1431 = vunpack.c.l.b16 %v1285
        %v1432 = vunpack.c.h.b16 %v1285
        %v1433 = vunpack.c.l.b16 %v1286
        %v1434 = vunpack.c.h.b16 %v1286
        %v1435 = vunpack.c.l.b16 %v1287
        %v1436 = vunpack.c.h.b16 %v1287
        %v1437 = vunpack.c.l.b16 %v1288
        %v1438 = vunpack.c.h.b16 %v1288
        %v1439 = vunpack.c.l.b16 %v1289
        %v1440 = vunpack.c.h.b16 %v1289
        %v1441 = vunpack.c.l.b16 %v1290
        %v1442 = vunpack.c.h.b16 %v1290
        %v1443 = vunpack.c.l.b16 %v1291
        %v1444 = vunpack.c.h.b16 %v1291
        %v1445 = vunpack.c.l.b16 %v1292
        %v1446 = vunpack.c.h.b16 %v1292
        %v1447 = vunpack.c.l.b16 %v1293
        %v1448 = vunpack.c.h.b16 %v1293
        %v1449 = vunpack.c.l.b16 %v1294
        %v1450 = vunpack.c.h.b16 %v1294
        %v1451 = vunpack.c.l.b16 %v1295
        %v1452 = vunpack.c.h.b16 %v1295
        %v1453 = vunpack.c.l.b16 %v1296
        %v1454 = vunpack.c.h.b16 %v1296
        %v1455 = vunpack.c.l.b16 %v1297
        %v1456 = vunpack.c.h.b16 %v1297
        %v1457 = vunpack.c.l.b16 %v1298
        %v1458 = vunpack.c.h.b16 %v1298
        %v1459 = vunpack.c.l.b16 %v1299
        %v1460 = vunpack.c.h.b16 %v1299
        %v1461 = vunpack.c.l.b16 %v1300
        %v1462 = vunpack.c.h.b16 %v1300
        %v1463 = vunpack.c.l.b16 %v1301
        %v1464 = vunpack.c.h.b16 %v1301
        %v1465 = vunpack.c.l.b16 %v1302
        %v1466 = vunpack.c.h.b16 %v1302
        %v1467 = vunpack.c.l.b16 %v1303
        %v1468 = vunpack.c.h.b16 %v1303
        %v1469 = vunpack.c.l.b16 %v1304
        %v1470 = vunpack.c.h.b16 %v1304
        %v1471 = vunpack.c.l.b16 %v1305
        %v1472 = vunpack.c.h.b16 %v1305
        %v1473 = vunpack.c.l.b16 %v1306
        %v1474 = vunpack.c.h.b16 %v1306
        %v1475 = vunpack.c.l.b16 %v1307
        %v1476 = vunpack.c.h.b16 %v1307
        %v1477 = vunpack.c.l.b16 %v1308
        %v1478 = vunpack.c.h.b16 %v1308
        %v1479 = vunpack.c.l.b16 %v1309
        %v1480 = vunpack.c.h.b16 %v1309
        %v1481 = vunpack.c.l.b16 %v1310
        %v1482 = vunpack.c.h.b16 %v1310
        %v1483 = vunpack.c.l.b16 %v1311
        %v1484 = vunpack.c.h.b16 %v1311
        %v1485 = vunpack.c.l.b16 %v1312
        %v1486 = vunpack.c.h.b16 %v1312
        %v1487 = vunpack.c.l.b16 %v1313
        %v1488 = vunpack.c.h.b16 %v1313
        %v1489 = vunpack.c.l.b16 %v1314
        %v1490 = vunpack.c.h.b16 %v1314
        %v1491 = vunpack.c.l.b16 %v1315
        %v1492 = vunpack.c.h.b16 %v1315
        %v1493 = vunpack.c.l.b16 %v1316
        %v1494 = vunpack.c.h.b16 %v1316
        %v1495 = vunpack.c.l.b16 %v1317
        %v1496 = vunpack.c.h.b16 %v1317
        %v1497 = vpack.c.b16 %v1389, %v1385
        %v1498 = vpack.c.b16 %v1390, %v1386
        %v1499 = vpack.c.b16 %v1391, %v1387
        %v1500 = vpack.c.b16 %v1392, %v1388
        %v1501 = vpack.c.b16 %v1397, %v1393
        %v1502 = vpack.c.b16 %v1398, %v1394
        %v1503 = vpack.c.b16 %v1399, %v1395
        %v1504 = vpack.c.b16 %v1400, %v1396
        %v1505 = vpack.c.b16 %v1405, %v1401
        %v1506 = vpack.c.b16 %v1406, %v1402
        %v1507 = vpack.c.b16 %v1407, %v1403
        %v1508 = vpack.c.b16 %v1408, %v1404
        %v1509 = vpack.c.b16 %v1413, %v1409
        %v1510 = vpack.c.b16 %v1414, %v1410
        %v1511 = vpack.c.b16 %v1415, %v1411
        %v1512 = vpack.c.b16 %v1416, %v1412
        %v1513 = vpack.c.b16 %v1421, %v1417
        %v1514 = vpack.c.b16 %v1422, %v1418
        %v1515 = vpack.c.b16 %v1423, %v1419
        %v1516 = vpack.c.b16 %v1424, %v1420
        %v1517 = vpack.c.b16 %v1429, %v1425
        %v1518 = vpack.c.b16 %v1430, %v1426
        %v1519 = vpack.c.b16 %v1431, %v1427
        %v1520 = vpack.c.b16 %v1432, %v1428
        %v1521 = vpack.c.b16 %v1437, %v1433
        %v1522 = vpack.c.b16 %v1438, %v1434
        %v1523 = vpack.c.b16 %v1439, %v1435
        %v1524 = vpack.c.b16 %v1440, %v1436
        %v1525 = vpack.c.b16 %v1445, %v1441
        %v1526 = vpack.c.b16 %v1446, %v1442
        %v1527 = vpack.c.b16 %v1447, %v1443
        %v1528 = vpack.c.b16 %v1448, %v1444
        %v1529 = vpack.c.b16 %v1453, %v1449
        %v1530 = vpack.c.b16 %v1454, %v1450
        %v1531 = vpack.c.b16 %v1455, %v1451
        %v1532 = vpack.c.b16 %v1456, %v1452
        %v1533 = vpack.c.b16 %v1461, %v1457
        %v1534 = vpack.c.b16 %v1462, %v1458
        %v1535 = vpack.c.b16 %v1463, %v1459
        %v1536 = vpack.c.b16 %v1464, %v1460
        %v1537 = vpack.c.b16 %v1469, %v1465
        %v1538 = vpack.c.b16 %v1470, %v1466
        %v1539 = vpack.c.b16 %v1471, %v1467
        %v1540 = vpack.c.b16 %v1472, %v1468
        %v1541 = vpack.c.b16 %v1477, %v1473
        %v1542 = vpack.c.b16 %v1478, %v1474
        %v1543 = vpack.c.b16 %v1479, %v1475
        %v1544 = vpack.c.b16 %v1480, %v1476
        %v1545 = vpack.c.b16 %v1485, %v1481
        %v1546 = vpack.c.b16 %v1486, %v1482
        %v1547 = vpack.c.b16 %v1487, %v1483
        %v1548 = vpack.c.b16 %v1488, %v1484
        %v1549 = vpack.c.b16 %v1493, %v1489
        %v1550 = vpack.c.b16 %v1494, %v1490
        %v1551 = vpack.c.b16 %v1495, %v1491
        %v1552 = vpack.c.b16 %v1496, %v1492
        %vm1609 = vcmask 785408
        %v1611 = vsel %vm1609, %v1327, 0
        %1613 = vmatpush.bf16.msra.mxu0 %v1525
        %1614 = vmatpush.bf16.msra.mxu0 %v1521
        %1615 = vmatpush.bf16.msra.mxu0 %v1517
        %1616 = vmatpush.bf16.msra.mxu0 %v1513
        %1617 = vmatpush.bf16.msra.mxu0 %v1509
        %1618 = vmatpush.bf16.msra.mxu0 %v1505
        %1619 = vmatpush.bf16.msra.mxu0 %v1501
        %1620 = vmatpush.bf16.msra.mxu0 %v1497
        %1621 = vmatmul.bf16.gmra.mxu0 %v1326
        %v1622 = vpop.f32.mrf.mxu0
        %v1623 = vadd.f32 %v1321, %v1622
        %v1624 = vpop.f32.mrf.mxu0
        %1625 = vdwg.mxu0
        %1626 = vmatpush.bf16.msra.mxu0 0
        %1627 = vmatpush.bf16.msra.mxu0 0
        %1628 = vmatpush.bf16.msra.mxu0 %v1549
        %1629 = vmatpush.bf16.msra.mxu0 %v1545
        %1630 = vmatpush.bf16.msra.mxu0 %v1541
        %1631 = vmatpush.bf16.msra.mxu0 %v1537
        %1632 = vmatpush.bf16.msra.mxu0 %v1533
        %1633 = vmatpush.bf16.msra.mxu0 %v1529
        %1634 = vmatmul.bf16.gmra.mxu0 %v1611
        %v1635 = vpop.f32.mrf.mxu0
        %v1636 = vadd.f32 %v1623, %v1635
        %v1637 = vpop.f32.mrf.mxu0
        %1638 = vdwg.mxu0
        %1639 = vmatpush.bf16.msra.mxu0 %v1526
        %1640 = vmatpush.bf16.msra.mxu0 %v1522
        %1641 = vmatpush.bf16.msra.mxu0 %v1518
        %1642 = vmatpush.bf16.msra.mxu0 %v1514
        %1643 = vmatpush.bf16.msra.mxu0 %v1510
        %1644 = vmatpush.bf16.msra.mxu0 %v1506
        %1645 = vmatpush.bf16.msra.mxu0 %v1502
        %1646 = vmatpush.bf16.msra.mxu0 %v1498
        %1647 = vmatmul.bf16.gmra.mxu0 %v1326
        %v1648 = vpop.f32.mrf.mxu0
        %v1649 = vadd.f32 %v1321, %v1648
        %v1650 = vpop.f32.mrf.mxu0
        %1651 = vdwg.mxu0
        %1652 = vmatpush.bf16.msra.mxu0 0
        %1653 = vmatpush.bf16.msra.mxu0 0
        %1654 = vmatpush.bf16.msra.mxu0 %v1550
        %1655 = vmatpush.bf16.msra.mxu0 %v1546
        %1656 = vmatpush.bf16.msra.mxu0 %v1542
        %1657 = vmatpush.bf16.msra.mxu0 %v1538
        %1658 = vmatpush.bf16.msra.mxu0 %v1534
        %1659 = vmatpush.bf16.msra.mxu0 %v1530
        %1660 = vmatmul.bf16.gmra.mxu0 %v1611
        %v1661 = vpop.f32.mrf.mxu0
        %v1662 = vadd.f32 %v1649, %v1661
        %v1663 = vpop.f32.mrf.mxu0
        %1664 = vdwg.mxu0
        %1665 = vmatpush.bf16.msra.mxu0 %v1527
        %1666 = vmatpush.bf16.msra.mxu0 %v1523
        %1667 = vmatpush.bf16.msra.mxu0 %v1519
        %1668 = vmatpush.bf16.msra.mxu0 %v1515
        %1669 = vmatpush.bf16.msra.mxu0 %v1511
        %1670 = vmatpush.bf16.msra.mxu0 %v1507
        %1671 = vmatpush.bf16.msra.mxu0 %v1503
        %1672 = vmatpush.bf16.msra.mxu0 %v1499
        %1673 = vmatmul.bf16.gmra.mxu0 %v1326
        %v1674 = vpop.f32.mrf.mxu0
        %v1675 = vadd.f32 %v1321, %v1674
        %v1676 = vpop.f32.mrf.mxu0
        %1677 = vdwg.mxu0
        %1678 = vmatpush.bf16.msra.mxu0 0
        %1679 = vmatpush.bf16.msra.mxu0 0
        %1680 = vmatpush.bf16.msra.mxu0 %v1551
        %1681 = vmatpush.bf16.msra.mxu0 %v1547
        %1682 = vmatpush.bf16.msra.mxu0 %v1543
        %1683 = vmatpush.bf16.msra.mxu0 %v1539
        %1684 = vmatpush.bf16.msra.mxu0 %v1535
        %1685 = vmatpush.bf16.msra.mxu0 %v1531
        %1686 = vmatmul.bf16.gmra.mxu0 %v1611
        %v1687 = vpop.f32.mrf.mxu0
        %v1688 = vadd.f32 %v1675, %v1687
        %v1689 = vpop.f32.mrf.mxu0
        %1690 = vdwg.mxu0
        %1691 = vmatpush.bf16.msra.mxu0 %v1528
        %1692 = vmatpush.bf16.msra.mxu0 %v1524
        %1693 = vmatpush.bf16.msra.mxu0 %v1520
        %1694 = vmatpush.bf16.msra.mxu0 %v1516
        %1695 = vmatpush.bf16.msra.mxu0 %v1512
        %1696 = vmatpush.bf16.msra.mxu0 %v1508
        %1697 = vmatpush.bf16.msra.mxu0 %v1504
        %1698 = vmatpush.bf16.msra.mxu0 %v1500
        %1699 = vmatmul.bf16.gmra.mxu0 %v1326
        %v1700 = vpop.f32.mrf.mxu0
        %v1701 = vadd.f32 %v1321, %v1700
        %v1702 = vpop.f32.mrf.mxu0
        %1703 = vdwg.mxu0
        %1704 = vmatpush.bf16.msra.mxu0 0
        %1705 = vmatpush.bf16.msra.mxu0 0
        %1706 = vmatpush.bf16.msra.mxu0 %v1552
        %1707 = vmatpush.bf16.msra.mxu0 %v1548
        %1708 = vmatpush.bf16.msra.mxu0 %v1544
        %1709 = vmatpush.bf16.msra.mxu0 %v1540
        %1710 = vmatpush.bf16.msra.mxu0 %v1536
        %1711 = vmatpush.bf16.msra.mxu0 %v1532
        %1712 = vmatmul.bf16.gmra.mxu0 %v1611
        %v1713 = vpop.f32.mrf.mxu0
        %v1714 = vadd.f32 %v1701, %v1713
        %v1715 = vpop.f32.mrf.mxu0
        %1716 = vdwg.mxu0
        %v1717 = vld [vmem:[%s7] sm:$0xff]
        %v1718 = vld [vmem:[%s8] sm:$0xff]
        %v1719 = vadd.f32 %v1636, %v1662
        %v1720 = vadd.f32 %v1719, %v1688
        %v1721 = vadd.f32 %v1720, %v1714
        %1722 = vadd.xlane.f32.xlu0 %v1721
        %v1723 = vpop.xlane.xlu0 %1722
        %v1724 = vmul.f32 %v1636, %v1636
        %v1725 = vmul.f32 %v1662, %v1662
        %v1726 = vmul.f32 %v1688, %v1688
        %v1727 = vmul.f32 %v1714, %v1714
        %v1728 = vadd.f32 %v1724, %v1725
        %v1729 = vadd.f32 %v1728, %v1726
        %v1730 = vadd.f32 %v1729, %v1727
        %1731 = vadd.xlane.f32.xlu0 %v1730
        %v1732 = vpop.xlane.xlu0 %1731
        %1733 = vmatpush.msra.mxu0 0.0
        %1734 = vmatpush.msra.mxu0 0.0
        %1735 = vmatpush.msra.mxu0 0.0
        %1736 = vmatpush.msra.mxu0 0.0
        %1737 = vmatpush.msra.mxu0 0.0
        %1738 = vmatpush.msra.mxu0 0.0
        %1739 = vmatpush.msra.mxu0 0.0
        %1740 = vmatpush.msra.mxu0 0.0
        %1741 = vmatpush.msra.mxu0 0.0
        %1742 = vmatpush.msra.mxu0 0.0
        %1743 = vmatpush.msra.mxu0 0.0
        %1744 = vmatpush.msra.mxu0 0.0
        %1745 = vmatpush.msra.mxu0 0.0
        %1746 = vmatpush.msra.mxu0 0.0
        %1747 = vmatpush.msra.mxu0 %v1732
        %1748 = vmatpush.msra.mxu0 %v1723
        %1749 = vmatmul.f32.gmra.mxu0 %v447
        %v1750 = vpop.f32.mrf.mxu0
        %v1751 = vadd.f32 0.0, %v1750
        %1752 = vmatmul.f32.gmra.mxu0 %v450
        %v1753 = vpop.f32.mrf.mxu0
        %v1754 = vadd.f32 0.0, %v1753
        %1755 = vdwg.mxu0
        %v1756 = vmul.f32 %v1751, %v1751
        %v1757 = vsub.f32 %v1754, %v1756
        %v1758 = vmax.f32 %v1757, 0.0
        %1760 = vset.pattern.permute.xlu0 0
        %1761 = vperm.xlu0 %1760, %v1751
        %v1762 = vpop.permute.xlu0 %1761
        %v1764 = vsub.f32 %v1636, %v1762
        %v1765 = vsub.f32 %v1662, %v1762
        %v1766 = vsub.f32 %v1688, %v1762
        %v1767 = vsub.f32 %v1714, %v1762
        %v1768 = vadd.f32 %v1758, 1e-05
        %v1769 = vrsqrt.pop %v1768
        %v1770 = vmul.f32 %v1769, %v1768
        %v1771 = vmul.f32 %v1770, %v1769
        %v1772 = vmul.f32 0.5, %v1771
        %v1773 = vsub.f32 1.5, %v1772
        %v1774 = vmul.f32 %v1769, %v1773
        %vm1775 = vweird.f32 %v1768
        %vm1776 = vweird.f32 %v1769
        %vm1777 = vmor %vm1775, %vm1776
        %v1778 = vsel %vm1777, %v1769, %v1774
        %1780 = vset.pattern.permute.xlu0 0
        %1781 = vperm.xlu0 %1780, %v1778
        %v1782 = vpop.permute.xlu0 %1781
        %v1784 = vmul.f32 %v1764, %v1782
        %v1785 = vmul.f32 %v1765, %v1782
        %v1786 = vmul.f32 %v1766, %v1782
        %v1787 = vmul.f32 %v1767, %v1782
        %1789 = vset.pattern.permute.xlu0 0
        %1790 = vperm.xlu0 %1789, %v1717
        %v1791 = vpop.permute.xlu0 %1790
        %v1793 = vmul.f32 %v1784, %v1791
        %v1794 = vmul.f32 %v1785, %v1791
        %v1795 = vmul.f32 %v1786, %v1791
        %v1796 = vmul.f32 %v1787, %v1791
        %1798 = vset.pattern.permute.xlu0 0
        %1799 = vperm.xlu0 %1798, %v1718
        %v1800 = vpop.permute.xlu0 %1799
        %v1802 = vadd.f32 %v1793, %v1800
        %v1803 = vadd.f32 %v1794, %v1800
        %v1804 = vadd.f32 %v1795, %v1800
        %v1805 = vadd.f32 %v1796, %v1800
        %vm1806 = vcmp.ge.f32.partialorder %v1802, 0.0
        %vm1807 = vcmp.ge.f32.partialorder %v1803, 0.0
        %vm1808 = vcmp.ge.f32.partialorder %v1804, 0.0
        %vm1809 = vcmp.ge.f32.partialorder %v1805, 0.0
        %v1810 = vmul.f32 %v1802, 0.01
        %v1811 = vmul.f32 %v1803, 0.01
        %v1812 = vmul.f32 %v1804, 0.01
        %v1813 = vmul.f32 %v1805, 0.01
        %v1814 = vsel %vm1806, %v1802, %v1810
        %v1815 = vsel %vm1807, %v1803, %v1811
        %v1816 = vsel %vm1808, %v1804, %v1812
        %v1817 = vsel %vm1809, %v1805, %v1813
        %v1818 = vld [vmem:[%s10] sm:$0xff]
        %1819 = vrot.lane.b32.xlu0 %v1814, 73
        %v1820 = vpop.permute.xlu0 %1819
        %1821 = vrot.lane.b32.xlu0 %v1815, 73
        %v1822 = vpop.permute.xlu0 %1821
        %1823 = vrot.lane.b32.xlu0 %v1816, 73
        %v1824 = vpop.permute.xlu0 %1823
        %1825 = vrot.lane.b32.xlu0 %v1817, 73
        %v1826 = vpop.permute.xlu0 %1825
        %v1827 = vsel %vm548, %v1824, %v1826
        %v1828 = vsel %vm548, %v1822, %v1824
        %v1829 = vsel %vm548, %v1820, %v1822
        %v1830 = vsel %vm548, %v1826, %v1820
        %v1831 = vld [vmem:[#allocation6] ss:$8 sm:$0xf]
        %v1833 = vperm.slane %v1831, 0
        %v1834 = vperm.slane %v1831, 1
        %v1835 = vperm.slane %v1831, 2
        %v1836 = vperm.slane %v1831, 3
        %v1841 = vmul.f32 %v1830, %v1833
        %v1842 = vmul.f32 %v1829, %v1834
        %v1843 = vmul.f32 %v1828, %v1835
        %v1844 = vmul.f32 %v1827, %v1836
        %1845 = vrot.lane.b32.xlu0 %v1814, 72
        %v1846 = vpop.permute.xlu0 %1845
        %1847 = vrot.lane.b32.xlu0 %v1815, 72
        %v1848 = vpop.permute.xlu0 %1847
        %1849 = vrot.lane.b32.xlu0 %v1816, 72
        %v1850 = vpop.permute.xlu0 %1849
        %1851 = vrot.lane.b32.xlu0 %v1817, 72
        %v1852 = vpop.permute.xlu0 %1851
        %v1853 = vsel %vm575, %v1850, %v1852
        %v1854 = vsel %vm575, %v1848, %v1850
        %v1855 = vsel %vm575, %v1846, %v1848
        %v1856 = vsel %vm575, %v1852, %v1846
        %v1857 = vld [vmem:[%s580] ss:$8 sm:$0xf]
        %v1859 = vperm.slane %v1857, 0
        %v1860 = vperm.slane %v1857, 1
        %v1861 = vperm.slane %v1857, 2
        %v1862 = vperm.slane %v1857, 3
        %v1867 = vmul.f32 %v1856, %v1859
        %v1868 = vmul.f32 %v1855, %v1860
        %v1869 = vmul.f32 %v1854, %v1861
        %v1870 = vmul.f32 %v1853, %v1862
        %v1871 = vpack.c.bf16 %v1842, %v1841
        %v1872 = vpack.c.bf16 %v1844, %v1843
        %v1873 = vpack.c.bf16 %v1868, %v1867
        %v1874 = vpack.c.bf16 %v1870, %v1869
        %1875 = vst [vmem:[#allocation2] sm:$0xff] %v1871
        %1876 = vst [vmem:[#allocation2 + $0x8] sm:$0xff] %v1872
        %1877 = vst [vmem:[#allocation2 + $0x10] sm:$0xff] %v1873
        %1878 = vst [vmem:[#allocation2 + $0x18] sm:$0xff] %v1874
        %1879 = vrot.lane.b32.xlu0 %v1814, 71
        %v1880 = vpop.permute.xlu0 %1879
        %1881 = vrot.lane.b32.xlu0 %v1815, 71
        %v1882 = vpop.permute.xlu0 %1881
        %1883 = vrot.lane.b32.xlu0 %v1816, 71
        %v1884 = vpop.permute.xlu0 %1883
        %1885 = vrot.lane.b32.xlu0 %v1817, 71
        %v1886 = vpop.permute.xlu0 %1885
        %v1887 = vsel %vm611, %v1884, %v1886
        %v1888 = vsel %vm611, %v1882, %v1884
        %v1889 = vsel %vm611, %v1880, %v1882
        %v1890 = vsel %vm611, %v1886, %v1880
        %v1891 = vld [vmem:[%s616] ss:$8 sm:$0xf]
        %v1893 = vperm.slane %v1891, 0
        %v1894 = vperm.slane %v1891, 1
        %v1895 = vperm.slane %v1891, 2
        %v1896 = vperm.slane %v1891, 3
        %v1901 = vmul.f32 %v1890, %v1893
        %v1902 = vmul.f32 %v1889, %v1894
        %v1903 = vmul.f32 %v1888, %v1895
        %v1904 = vmul.f32 %v1887, %v1896
        %1905 = vrot.lane.b32.xlu0 %v1814, 65
        %v1906 = vpop.permute.xlu0 %1905
        %1907 = vrot.lane.b32.xlu0 %v1815, 65
        %v1908 = vpop.permute.xlu0 %1907
        %1909 = vrot.lane.b32.xlu0 %v1816, 65
        %v1910 = vpop.permute.xlu0 %1909
        %1911 = vrot.lane.b32.xlu0 %v1817, 65
        %v1912 = vpop.permute.xlu0 %1911
        %v1913 = vsel %vm639, %v1910, %v1912
        %v1914 = vsel %vm639, %v1908, %v1910
        %v1915 = vsel %vm639, %v1906, %v1908
        %v1916 = vsel %vm639, %v1912, %v1906
        %v1917 = vld [vmem:[%s644] ss:$8 sm:$0xf]
        %v1919 = vperm.slane %v1917, 0
        %v1920 = vperm.slane %v1917, 1
        %v1921 = vperm.slane %v1917, 2
        %v1922 = vperm.slane %v1917, 3
        %v1927 = vmul.f32 %v1916, %v1919
        %v1928 = vmul.f32 %v1915, %v1920
        %v1929 = vmul.f32 %v1914, %v1921
        %v1930 = vmul.f32 %v1913, %v1922
        %v1931 = vpack.c.bf16 %v1902, %v1901
        %v1932 = vpack.c.bf16 %v1904, %v1903
        %v1933 = vpack.c.bf16 %v1928, %v1927
        %v1934 = vpack.c.bf16 %v1930, %v1929
        %1935 = vst [vmem:[#allocation2 + $0x20] sm:$0xff] %v1931
        %1936 = vst [vmem:[#allocation2 + $0x28] sm:$0xff] %v1932
        %1937 = vst [vmem:[#allocation2 + $0x30] sm:$0xff] %v1933
        %1938 = vst [vmem:[#allocation2 + $0x38] sm:$0xff] %v1934
        %1939 = vrot.lane.b32.xlu0 %v1814, 64
        %v1940 = vpop.permute.xlu0 %1939
        %1941 = vrot.lane.b32.xlu0 %v1815, 64
        %v1942 = vpop.permute.xlu0 %1941
        %1943 = vrot.lane.b32.xlu0 %v1816, 64
        %v1944 = vpop.permute.xlu0 %1943
        %1945 = vrot.lane.b32.xlu0 %v1817, 64
        %v1946 = vpop.permute.xlu0 %1945
        %v1947 = vsel %vm675, %v1944, %v1946
        %v1948 = vsel %vm675, %v1942, %v1944
        %v1949 = vsel %vm675, %v1940, %v1942
        %v1950 = vsel %vm675, %v1946, %v1940
        %v1951 = vld [vmem:[%s680] ss:$8 sm:$0xf]
        %v1953 = vperm.slane %v1951, 0
        %v1954 = vperm.slane %v1951, 1
        %v1955 = vperm.slane %v1951, 2
        %v1956 = vperm.slane %v1951, 3
        %v1961 = vmul.f32 %v1950, %v1953
        %v1962 = vmul.f32 %v1949, %v1954
        %v1963 = vmul.f32 %v1948, %v1955
        %v1964 = vmul.f32 %v1947, %v1956
        %1965 = vrot.lane.b32.xlu0 %v1814, 63
        %v1966 = vpop.permute.xlu0 %1965
        %1967 = vrot.lane.b32.xlu0 %v1815, 63
        %v1968 = vpop.permute.xlu0 %1967
        %1969 = vrot.lane.b32.xlu0 %v1816, 63
        %v1970 = vpop.permute.xlu0 %1969
        %1971 = vrot.lane.b32.xlu0 %v1817, 63
        %v1972 = vpop.permute.xlu0 %1971
        %v1973 = vsel %vm703, %v1970, %v1972
        %v1974 = vsel %vm703, %v1968, %v1970
        %v1975 = vsel %vm703, %v1966, %v1968
        %v1976 = vsel %vm703, %v1972, %v1966
        %v1977 = vld [vmem:[%s708] ss:$8 sm:$0xf]
        %v1979 = vperm.slane %v1977, 0
        %v1980 = vperm.slane %v1977, 1
        %v1981 = vperm.slane %v1977, 2
        %v1982 = vperm.slane %v1977, 3
        %v1987 = vmul.f32 %v1976, %v1979
        %v1988 = vmul.f32 %v1975, %v1980
        %v1989 = vmul.f32 %v1974, %v1981
        %v1990 = vmul.f32 %v1973, %v1982
        %v1991 = vpack.c.bf16 %v1962, %v1961
        %v1992 = vpack.c.bf16 %v1964, %v1963
        %v1993 = vpack.c.bf16 %v1988, %v1987
        %v1994 = vpack.c.bf16 %v1990, %v1989
        %1995 = vst [vmem:[#allocation2 + $0x40] sm:$0xff] %v1991
        %1996 = vst [vmem:[#allocation2 + $0x48] sm:$0xff] %v1992
        %1997 = vst [vmem:[#allocation2 + $0x50] sm:$0xff] %v1993
        %1998 = vst [vmem:[#allocation2 + $0x58] sm:$0xff] %v1994
        %1999 = vrot.lane.b32.xlu0 %v1814, 57
        %v2000 = vpop.permute.xlu0 %1999
        %2001 = vrot.lane.b32.xlu0 %v1815, 57
        %v2002 = vpop.permute.xlu0 %2001
        %2003 = vrot.lane.b32.xlu0 %v1816, 57
        %v2004 = vpop.permute.xlu0 %2003
        %2005 = vrot.lane.b32.xlu0 %v1817, 57
        %v2006 = vpop.permute.xlu0 %2005
        %v2007 = vsel %vm739, %v2004, %v2006
        %v2008 = vsel %vm739, %v2002, %v2004
        %v2009 = vsel %vm739, %v2000, %v2002
        %v2010 = vsel %vm739, %v2006, %v2000
        %v2011 = vld [vmem:[%s744] ss:$8 sm:$0xf]
        %v2013 = vperm.slane %v2011, 0
        %v2014 = vperm.slane %v2011, 1
        %v2015 = vperm.slane %v2011, 2
        %v2016 = vperm.slane %v2011, 3
        %v2021 = vmul.f32 %v2010, %v2013
        %v2022 = vmul.f32 %v2009, %v2014
        %v2023 = vmul.f32 %v2008, %v2015
        %v2024 = vmul.f32 %v2007, %v2016
        %2025 = vrot.lane.b32.xlu0 %v1814, 56
        %v2026 = vpop.permute.xlu0 %2025
        %2027 = vrot.lane.b32.xlu0 %v1815, 56
        %v2028 = vpop.permute.xlu0 %2027
        %2029 = vrot.lane.b32.xlu0 %v1816, 56
        %v2030 = vpop.permute.xlu0 %2029
        %2031 = vrot.lane.b32.xlu0 %v1817, 56
        %v2032 = vpop.permute.xlu0 %2031
        %v2033 = vsel %vm767, %v2030, %v2032
        %v2034 = vsel %vm767, %v2028, %v2030
        %v2035 = vsel %vm767, %v2026, %v2028
        %v2036 = vsel %vm767, %v2032, %v2026
        %v2037 = vld [vmem:[%s772] ss:$8 sm:$0xf]
        %v2039 = vperm.slane %v2037, 0
        %v2040 = vperm.slane %v2037, 1
        %v2041 = vperm.slane %v2037, 2
        %v2042 = vperm.slane %v2037, 3
        %v2047 = vmul.f32 %v2036, %v2039
        %v2048 = vmul.f32 %v2035, %v2040
        %v2049 = vmul.f32 %v2034, %v2041
        %v2050 = vmul.f32 %v2033, %v2042
        %v2051 = vpack.c.bf16 %v2022, %v2021
        %v2052 = vpack.c.bf16 %v2024, %v2023
        %v2053 = vpack.c.bf16 %v2048, %v2047
        %v2054 = vpack.c.bf16 %v2050, %v2049
        %2055 = vst [vmem:[#allocation2 + $0x60] sm:$0xff] %v2051
        %2056 = vst [vmem:[#allocation2 + $0x68] sm:$0xff] %v2052
        %2057 = vst [vmem:[#allocation2 + $0x70] sm:$0xff] %v2053
        %2058 = vst [vmem:[#allocation2 + $0x78] sm:$0xff] %v2054
        %2059 = vrot.lane.b32.xlu0 %v1814, 55
        %v2060 = vpop.permute.xlu0 %2059
        %2061 = vrot.lane.b32.xlu0 %v1815, 55
        %v2062 = vpop.permute.xlu0 %2061
        %2063 = vrot.lane.b32.xlu0 %v1816, 55
        %v2064 = vpop.permute.xlu0 %2063
        %2065 = vrot.lane.b32.xlu0 %v1817, 55
        %v2066 = vpop.permute.xlu0 %2065
        %v2067 = vsel %vm803, %v2064, %v2066
        %v2068 = vsel %vm803, %v2062, %v2064
        %v2069 = vsel %vm803, %v2060, %v2062
        %v2070 = vsel %vm803, %v2066, %v2060
        %v2071 = vld [vmem:[%s808] ss:$8 sm:$0xf]
        %v2073 = vperm.slane %v2071, 0
        %v2074 = vperm.slane %v2071, 1
        %v2075 = vperm.slane %v2071, 2
        %v2076 = vperm.slane %v2071, 3
        %v2081 = vmul.f32 %v2070, %v2073
        %v2082 = vmul.f32 %v2069, %v2074
        %v2083 = vmul.f32 %v2068, %v2075
        %v2084 = vmul.f32 %v2067, %v2076
        %2085 = vrot.lane.b32.xlu0 %v1814, 9
        %v2086 = vpop.permute.xlu0 %2085
        %2087 = vrot.lane.b32.xlu0 %v1815, 9
        %v2088 = vpop.permute.xlu0 %2087
        %2089 = vrot.lane.b32.xlu0 %v1816, 9
        %v2090 = vpop.permute.xlu0 %2089
        %2091 = vrot.lane.b32.xlu0 %v1817, 9
        %v2092 = vpop.permute.xlu0 %2091
        %v2093 = vsel %vm831, %v2090, %v2092
        %v2094 = vsel %vm831, %v2088, %v2090
        %v2095 = vsel %vm831, %v2086, %v2088
        %v2096 = vsel %vm831, %v2092, %v2086
        %v2097 = vld [vmem:[%s836] ss:$8 sm:$0xf]
        %v2099 = vperm.slane %v2097, 0
        %v2100 = vperm.slane %v2097, 1
        %v2101 = vperm.slane %v2097, 2
        %v2102 = vperm.slane %v2097, 3
        %v2107 = vmul.f32 %v2096, %v2099
        %v2108 = vmul.f32 %v2095, %v2100
        %v2109 = vmul.f32 %v2094, %v2101
        %v2110 = vmul.f32 %v2093, %v2102
        %v2111 = vpack.c.bf16 %v2082, %v2081
        %v2112 = vpack.c.bf16 %v2084, %v2083
        %v2113 = vpack.c.bf16 %v2108, %v2107
        %v2114 = vpack.c.bf16 %v2110, %v2109
        %2115 = vst [vmem:[#allocation2 + $0x80] sm:$0xff] %v2111
        %2116 = vst [vmem:[#allocation2 + $0x88] sm:$0xff] %v2112
        %2117 = vst [vmem:[#allocation2 + $0x90] sm:$0xff] %v2113
        %2118 = vst [vmem:[#allocation2 + $0x98] sm:$0xff] %v2114
        %2119 = vrot.lane.b32.xlu0 %v1814, 8
        %v2120 = vpop.permute.xlu0 %2119
        %2121 = vrot.lane.b32.xlu0 %v1815, 8
        %v2122 = vpop.permute.xlu0 %2121
        %2123 = vrot.lane.b32.xlu0 %v1816, 8
        %v2124 = vpop.permute.xlu0 %2123
        %2125 = vrot.lane.b32.xlu0 %v1817, 8
        %v2126 = vpop.permute.xlu0 %2125
        %v2127 = vsel %vm867, %v2124, %v2126
        %v2128 = vsel %vm867, %v2122, %v2124
        %v2129 = vsel %vm867, %v2120, %v2122
        %v2130 = vsel %vm867, %v2126, %v2120
        %v2131 = vld [vmem:[%s872] ss:$8 sm:$0xf]
        %v2133 = vperm.slane %v2131, 0
        %v2134 = vperm.slane %v2131, 1
        %v2135 = vperm.slane %v2131, 2
        %v2136 = vperm.slane %v2131, 3
        %v2141 = vmul.f32 %v2130, %v2133
        %v2142 = vmul.f32 %v2129, %v2134
        %v2143 = vmul.f32 %v2128, %v2135
        %v2144 = vmul.f32 %v2127, %v2136
        %2145 = vrot.lane.b32.xlu0 %v1814, 7
        %v2146 = vpop.permute.xlu0 %2145
        %2147 = vrot.lane.b32.xlu0 %v1815, 7
        %v2148 = vpop.permute.xlu0 %2147
        %2149 = vrot.lane.b32.xlu0 %v1816, 7
        %v2150 = vpop.permute.xlu0 %2149
        %2151 = vrot.lane.b32.xlu0 %v1817, 7
        %v2152 = vpop.permute.xlu0 %2151
        %v2153 = vsel %vm895, %v2150, %v2152
        %v2154 = vsel %vm895, %v2148, %v2150
        %v2155 = vsel %vm895, %v2146, %v2148
        %v2156 = vsel %vm895, %v2152, %v2146
        %v2157 = vld [vmem:[%s900] ss:$8 sm:$0xf]
        %v2159 = vperm.slane %v2157, 0
        %v2160 = vperm.slane %v2157, 1
        %v2161 = vperm.slane %v2157, 2
        %v2162 = vperm.slane %v2157, 3
        %v2167 = vmul.f32 %v2156, %v2159
        %v2168 = vmul.f32 %v2155, %v2160
        %v2169 = vmul.f32 %v2154, %v2161
        %v2170 = vmul.f32 %v2153, %v2162
        %v2171 = vpack.c.bf16 %v2142, %v2141
        %v2172 = vpack.c.bf16 %v2144, %v2143
        %v2173 = vpack.c.bf16 %v2168, %v2167
        %v2174 = vpack.c.bf16 %v2170, %v2169
        %2175 = vst [vmem:[#allocation2 + $0xa0] sm:$0xff] %v2171
        %2176 = vst [vmem:[#allocation2 + $0xa8] sm:$0xff] %v2172
        %2177 = vst [vmem:[#allocation2 + $0xb0] sm:$0xff] %v2173
        %2178 = vst [vmem:[#allocation2 + $0xb8] sm:$0xff] %v2174
        %2179 = vrot.lane.b32.xlu0 %v1814, 1
        %v2180 = vpop.permute.xlu0 %2179
        %2181 = vrot.lane.b32.xlu0 %v1815, 1
        %v2182 = vpop.permute.xlu0 %2181
        %2183 = vrot.lane.b32.xlu0 %v1816, 1
        %v2184 = vpop.permute.xlu0 %2183
        %2185 = vrot.lane.b32.xlu0 %v1817, 1
        %v2186 = vpop.permute.xlu0 %2185
        %v2187 = vsel %vm931, %v2184, %v2186
        %v2188 = vsel %vm931, %v2182, %v2184
        %v2189 = vsel %vm931, %v2180, %v2182
        %v2190 = vsel %vm931, %v2186, %v2180
        %v2191 = vld [vmem:[%s936] ss:$8 sm:$0xf]
        %v2193 = vperm.slane %v2191, 0
        %v2194 = vperm.slane %v2191, 1
        %v2195 = vperm.slane %v2191, 2
        %v2196 = vperm.slane %v2191, 3
        %v2201 = vmul.f32 %v2190, %v2193
        %v2202 = vmul.f32 %v2189, %v2194
        %v2203 = vmul.f32 %v2188, %v2195
        %v2204 = vmul.f32 %v2187, %v2196
        %v2205 = vpack.c.bf16 %v2202, %v2201
        %v2206 = vpack.c.bf16 %v2204, %v2203
        %v2207 = vpack.c.bf16 %v1815, %v1814
        %v2208 = vpack.c.bf16 %v1817, %v1816
        %2209 = vst [vmem:[#allocation2 + $0xc0] sm:$0xff] %v2205
        %2210 = vst [vmem:[#allocation2 + $0xc8] sm:$0xff] %v2206
        %2211 = vst [vmem:[#allocation2 + $0xd0] sm:$0xff] %v2207
        %2212 = vst [vmem:[#allocation2 + $0xd8] sm:$0xff] %v2208
        %2213 = vrot.lane.b32.xlu0 %v1814, 127
        %v2214 = vpop.permute.xlu0 %2213
        %2215 = vrot.lane.b32.xlu0 %v1815, 127
        %v2216 = vpop.permute.xlu0 %2215
        %2217 = vrot.lane.b32.xlu0 %v1816, 127
        %v2218 = vpop.permute.xlu0 %2217
        %2219 = vrot.lane.b32.xlu0 %v1817, 127
        %v2220 = vpop.permute.xlu0 %2219
        %v2221 = vsel %vm967, %v2218, %v2220
        %v2222 = vsel %vm967, %v2216, %v2218
        %v2223 = vsel %vm967, %v2214, %v2216
        %v2224 = vsel %vm967, %v2220, %v2214
        %v2225 = vld [vmem:[%s972] ss:$8 sm:$0xf]
        %v2227 = vperm.slane %v2225, 0
        %v2228 = vperm.slane %v2225, 1
        %v2229 = vperm.slane %v2225, 2
        %v2230 = vperm.slane %v2225, 3
        %v2235 = vmul.f32 %v2223, %v2227
        %v2236 = vmul.f32 %v2222, %v2228
        %v2237 = vmul.f32 %v2221, %v2229
        %v2238 = vmul.f32 %v2224, %v2230
        %2239 = vrot.lane.b32.xlu0 %v1814, 121
        %v2240 = vpop.permute.xlu0 %2239
        %2241 = vrot.lane.b32.xlu0 %v1815, 121
        %v2242 = vpop.permute.xlu0 %2241
        %2243 = vrot.lane.b32.xlu0 %v1816, 121
        %v2244 = vpop.permute.xlu0 %2243
        %2245 = vrot.lane.b32.xlu0 %v1817, 121
        %v2246 = vpop.permute.xlu0 %2245
        %v2247 = vsel %vm995, %v2244, %v2246
        %v2248 = vsel %vm995, %v2242, %v2244
        %v2249 = vsel %vm995, %v2240, %v2242
        %v2250 = vsel %vm995, %v2246, %v2240
        %v2251 = vld [vmem:[%s1000] ss:$8 sm:$0xf]
        %v2253 = vperm.slane %v2251, 0
        %v2254 = vperm.slane %v2251, 1
        %v2255 = vperm.slane %v2251, 2
        %v2256 = vperm.slane %v2251, 3
        %v2261 = vmul.f32 %v2249, %v2253
        %v2262 = vmul.f32 %v2248, %v2254
        %v2263 = vmul.f32 %v2247, %v2255
        %v2264 = vmul.f32 %v2250, %v2256
        %v2265 = vpack.c.bf16 %v2236, %v2235
        %v2266 = vpack.c.bf16 %v2238, %v2237
        %v2267 = vpack.c.bf16 %v2262, %v2261
        %v2268 = vpack.c.bf16 %v2264, %v2263
        %2269 = vst [vmem:[#allocation2 + $0xe0] sm:$0xff] %v2265
        %2270 = vst [vmem:[#allocation2 + $0xe8] sm:$0xff] %v2266
        %2271 = vst [vmem:[#allocation2 + $0xf0] sm:$0xff] %v2267
        %2272 = vst [vmem:[#allocation2 + $0xf8] sm:$0xff] %v2268
        %2273 = vrot.lane.b32.xlu0 %v1814, 120
        %v2274 = vpop.permute.xlu0 %2273
        %2275 = vrot.lane.b32.xlu0 %v1815, 120
        %v2276 = vpop.permute.xlu0 %2275
        %2277 = vrot.lane.b32.xlu0 %v1816, 120
        %v2278 = vpop.permute.xlu0 %2277
        %2279 = vrot.lane.b32.xlu0 %v1817, 120
        %v2280 = vpop.permute.xlu0 %2279
        %v2281 = vsel %vm1031, %v2278, %v2280
        %v2282 = vsel %vm1031, %v2276, %v2278
        %v2283 = vsel %vm1031, %v2274, %v2276
        %v2284 = vsel %vm1031, %v2280, %v2274
        %v2285 = vld [vmem:[%s1036] ss:$8 sm:$0xf]
        %v2287 = vperm.slane %v2285, 0
        %v2288 = vperm.slane %v2285, 1
        %v2289 = vperm.slane %v2285, 2
        %v2290 = vperm.slane %v2285, 3
        %v2295 = vmul.f32 %v2283, %v2287
        %v2296 = vmul.f32 %v2282, %v2288
        %v2297 = vmul.f32 %v2281, %v2289
        %v2298 = vmul.f32 %v2284, %v2290
        %2299 = vrot.lane.b32.xlu0 %v1814, 119
        %v2300 = vpop.permute.xlu0 %2299
        %2301 = vrot.lane.b32.xlu0 %v1815, 119
        %v2302 = vpop.permute.xlu0 %2301
        %2303 = vrot.lane.b32.xlu0 %v1816, 119
        %v2304 = vpop.permute.xlu0 %2303
        %2305 = vrot.lane.b32.xlu0 %v1817, 119
        %v2306 = vpop.permute.xlu0 %2305
        %v2307 = vsel %vm1059, %v2304, %v2306
        %v2308 = vsel %vm1059, %v2302, %v2304
        %v2309 = vsel %vm1059, %v2300, %v2302
        %v2310 = vsel %vm1059, %v2306, %v2300
        %v2311 = vld [vmem:[%s1064] ss:$8 sm:$0xf]
        %v2313 = vperm.slane %v2311, 0
        %v2314 = vperm.slane %v2311, 1
        %v2315 = vperm.slane %v2311, 2
        %v2316 = vperm.slane %v2311, 3
        %v2321 = vmul.f32 %v2309, %v2313
        %v2322 = vmul.f32 %v2308, %v2314
        %v2323 = vmul.f32 %v2307, %v2315
        %v2324 = vmul.f32 %v2310, %v2316
        %v2325 = vpack.c.bf16 %v2296, %v2295
        %v2326 = vpack.c.bf16 %v2298, %v2297
        %v2327 = vpack.c.bf16 %v2322, %v2321
        %v2328 = vpack.c.bf16 %v2324, %v2323
        %2329 = vst [vmem:[#allocation2 + $0x100] sm:$0xff] %v2325
        %2330 = vst [vmem:[#allocation2 + $0x108] sm:$0xff] %v2326
        %2331 = vst [vmem:[#allocation2 + $0x110] sm:$0xff] %v2327
        %2332 = vst [vmem:[#allocation2 + $0x118] sm:$0xff] %v2328
        %v2333 = vld [vmem:[%s1087] ss:$8 sm:$0xf]
        %v2335 = vperm.slane %v2333, 0
        %v2336 = vperm.slane %v2333, 1
        %v2337 = vperm.slane %v2333, 2
        %v2338 = vperm.slane %v2333, 3
        %v2343 = vmul.f32 %v1829, %v2335
        %v2344 = vmul.f32 %v1828, %v2336
        %v2345 = vmul.f32 %v1827, %v2337
        %v2346 = vmul.f32 %v1830, %v2338
        %v2347 = vld [vmem:[%s1102] ss:$8 sm:$0xf]
        %v2349 = vperm.slane %v2347, 0
        %v2350 = vperm.slane %v2347, 1
        %v2351 = vperm.slane %v2347, 2
        %v2352 = vperm.slane %v2347, 3
        %v2357 = vmul.f32 %v1855, %v2349
        %v2358 = vmul.f32 %v1854, %v2350
        %v2359 = vmul.f32 %v1853, %v2351
        %v2360 = vmul.f32 %v1856, %v2352
        %v2361 = vpack.c.bf16 %v2344, %v2343
        %v2362 = vpack.c.bf16 %v2346, %v2345
        %v2363 = vpack.c.bf16 %v2358, %v2357
        %v2364 = vpack.c.bf16 %v2360, %v2359
        %2365 = vst [vmem:[#allocation2 + $0x120] sm:$0xff] %v2361
        %2366 = vst [vmem:[#allocation2 + $0x128] sm:$0xff] %v2362
        %2367 = vst [vmem:[#allocation2 + $0x130] sm:$0xff] %v2363
        %2368 = vst [vmem:[#allocation2 + $0x138] sm:$0xff] %v2364
        %v2369 = vld [vmem:[%s1125] ss:$8 sm:$0xf]
        %v2371 = vperm.slane %v2369, 0
        %v2372 = vperm.slane %v2369, 1
        %v2373 = vperm.slane %v2369, 2
        %v2374 = vperm.slane %v2369, 3
        %v2379 = vmul.f32 %v1889, %v2371
        %v2380 = vmul.f32 %v1888, %v2372
        %v2381 = vmul.f32 %v1887, %v2373
        %v2382 = vmul.f32 %v1890, %v2374
        %v2383 = vld [vmem:[%s1140] ss:$8 sm:$0xf]
        %v2385 = vperm.slane %v2383, 0
        %v2386 = vperm.slane %v2383, 1
        %v2387 = vperm.slane %v2383, 2
        %v2388 = vperm.slane %v2383, 3
        %v2393 = vmul.f32 %v1915, %v2385
        %v2394 = vmul.f32 %v1914, %v2386
        %v2395 = vmul.f32 %v1913, %v2387
        %v2396 = vmul.f32 %v1916, %v2388
        %v2397 = vpack.c.bf16 %v2380, %v2379
        %v2398 = vpack.c.bf16 %v2382, %v2381
        %v2399 = vpack.c.bf16 %v2394, %v2393
        %v2400 = vpack.c.bf16 %v2396, %v2395
        %2401 = vst [vmem:[#allocation2 + $0x140] sm:$0xff] %v2397
        %2402 = vst [vmem:[#allocation2 + $0x148] sm:$0xff] %v2398
        %2403 = vst [vmem:[#allocation2 + $0x150] sm:$0xff] %v2399
        %2404 = vst [vmem:[#allocation2 + $0x158] sm:$0xff] %v2400
        %v2405 = vld [vmem:[%s1163] ss:$8 sm:$0xf]
        %v2407 = vperm.slane %v2405, 0
        %v2408 = vperm.slane %v2405, 1
        %v2409 = vperm.slane %v2405, 2
        %v2410 = vperm.slane %v2405, 3
        %v2415 = vmul.f32 %v1949, %v2407
        %v2416 = vmul.f32 %v1948, %v2408
        %v2417 = vmul.f32 %v1947, %v2409
        %v2418 = vmul.f32 %v1950, %v2410
        %v2419 = vld [vmem:[%s1178] ss:$8 sm:$0xf]
        %v2421 = vperm.slane %v2419, 0
        %v2422 = vperm.slane %v2419, 1
        %v2423 = vperm.slane %v2419, 2
        %v2424 = vperm.slane %v2419, 3
        %v2429 = vmul.f32 %v1975, %v2421
        %v2430 = vmul.f32 %v1974, %v2422
        %v2431 = vmul.f32 %v1973, %v2423
        %v2432 = vmul.f32 %v1976, %v2424
        %v2433 = vpack.c.bf16 %v2416, %v2415
        %v2434 = vpack.c.bf16 %v2418, %v2417
        %v2435 = vpack.c.bf16 %v2430, %v2429
        %v2436 = vpack.c.bf16 %v2432, %v2431
        %2437 = vst [vmem:[#allocation2 + $0x160] sm:$0xff] %v2433
        %2438 = vst [vmem:[#allocation2 + $0x168] sm:$0xff] %v2434
        %2439 = vst [vmem:[#allocation2 + $0x170] sm:$0xff] %v2435
        %2440 = vst [vmem:[#allocation2 + $0x178] sm:$0xff] %v2436
        %v2441 = vld [vmem:[%s1201] ss:$8 sm:$0xf]
        %v2443 = vperm.slane %v2441, 0
        %v2444 = vperm.slane %v2441, 1
        %v2445 = vperm.slane %v2441, 2
        %v2446 = vperm.slane %v2441, 3
        %v2451 = vmul.f32 %v2009, %v2443
        %v2452 = vmul.f32 %v2008, %v2444
        %v2453 = vmul.f32 %v2007, %v2445
        %v2454 = vmul.f32 %v2010, %v2446
        %v2455 = vld [vmem:[%s1216] ss:$8 sm:$0xf]
        %v2457 = vperm.slane %v2455, 0
        %v2458 = vperm.slane %v2455, 1
        %v2459 = vperm.slane %v2455, 2
        %v2460 = vperm.slane %v2455, 3
        %v2465 = vmul.f32 %v2035, %v2457
        %v2466 = vmul.f32 %v2034, %v2458
        %v2467 = vmul.f32 %v2033, %v2459
        %v2468 = vmul.f32 %v2036, %v2460
        %v2469 = vpack.c.bf16 %v2452, %v2451
        %v2470 = vpack.c.bf16 %v2454, %v2453
        %v2471 = vpack.c.bf16 %v2466, %v2465
        %v2472 = vpack.c.bf16 %v2468, %v2467
        %2473 = vst [vmem:[#allocation2 + $0x180] sm:$0xff] %v2469
        %2474 = vst [vmem:[#allocation2 + $0x188] sm:$0xff] %v2470
        %2475 = vst [vmem:[#allocation2 + $0x190] sm:$0xff] %v2471
        %2476 = vst [vmem:[#allocation2 + $0x198] sm:$0xff] %v2472
        %v2477 = vld [vmem:[%s1239] ss:$8 sm:$0xf]
        %v2479 = vperm.slane %v2477, 0
        %v2480 = vperm.slane %v2477, 1
        %v2481 = vperm.slane %v2477, 2
        %v2482 = vperm.slane %v2477, 3
        %v2487 = vmul.f32 %v2069, %v2479
        %v2488 = vmul.f32 %v2068, %v2480
        %v2489 = vmul.f32 %v2067, %v2481
        %v2490 = vmul.f32 %v2070, %v2482
        %v2491 = vpack.c.bf16 %v2488, %v2487
        %v2492 = vpack.c.bf16 %v2490, %v2489
        %2493 = vst [vmem:[#allocation2 + $0x1a0] sm:$0xff] %v2491
        %2494 = vst [vmem:[#allocation2 + $0x1a8] sm:$0xff] %v2492
        %2495 = vst [vmem:[#allocation2 + $0x1b0] sm:$0xff] %v1256
        %2496 = vst [vmem:[#allocation2 + $0x1b8] sm:$0xff] %v1256
        %v2497 = vld [vmem:[%s9] sm:$0xff]
        %v2498 = vld [vmem:[#allocation2] sm:$0xff]
        %v2499 = vld [vmem:[#allocation2 + $0x8] sm:$0xff]
        %v2500 = vld [vmem:[#allocation2 + $0x10] sm:$0xff]
        %v2501 = vld [vmem:[#allocation2 + $0x18] sm:$0xff]
        %v2502 = vld [vmem:[#allocation2 + $0x20] sm:$0xff]
        %v2503 = vld [vmem:[#allocation2 + $0x28] sm:$0xff]
        %v2504 = vld [vmem:[#allocation2 + $0x30] sm:$0xff]
        %v2505 = vld [vmem:[#allocation2 + $0x38] sm:$0xff]
        %v2506 = vld [vmem:[#allocation2 + $0x40] sm:$0xff]
        %v2507 = vld [vmem:[#allocation2 + $0x48] sm:$0xff]
        %v2508 = vld [vmem:[#allocation2 + $0x50] sm:$0xff]
        %v2509 = vld [vmem:[#allocation2 + $0x58] sm:$0xff]
        %v2510 = vld [vmem:[#allocation2 + $0x60] sm:$0xff]
        %v2511 = vld [vmem:[#allocation2 + $0x68] sm:$0xff]
        %v2512 = vld [vmem:[#allocation2 + $0x70] sm:$0xff]
        %v2513 = vld [vmem:[#allocation2 + $0x78] sm:$0xff]
        %v2514 = vld [vmem:[#allocation2 + $0x80] sm:$0xff]
        %v2515 = vld [vmem:[#allocation2 + $0x88] sm:$0xff]
        %v2516 = vld [vmem:[#allocation2 + $0x90] sm:$0xff]
        %v2517 = vld [vmem:[#allocation2 + $0x98] sm:$0xff]
        %v2518 = vld [vmem:[#allocation2 + $0xa0] sm:$0xff]
        %v2519 = vld [vmem:[#allocation2 + $0xa8] sm:$0xff]
        %v2520 = vld [vmem:[#allocation2 + $0xb0] sm:$0xff]
        %v2521 = vld [vmem:[#allocation2 + $0xb8] sm:$0xff]
        %v2522 = vld [vmem:[#allocation2 + $0xc0] sm:$0xff]
        %v2523 = vld [vmem:[#allocation2 + $0xc8] sm:$0xff]
        %v2524 = vld [vmem:[#allocation2 + $0xd0] sm:$0xff]
        %v2525 = vld [vmem:[#allocation2 + $0xd8] sm:$0xff]
        %v2526 = vld [vmem:[#allocation2 + $0xe0] sm:$0xff]
        %v2527 = vld [vmem:[#allocation2 + $0xe8] sm:$0xff]
        %v2528 = vld [vmem:[#allocation2 + $0xf0] sm:$0xff]
        %v2529 = vld [vmem:[#allocation2 + $0xf8] sm:$0xff]
        %v2530 = vld [vmem:[#allocation2 + $0x100] sm:$0xff]
        %v2531 = vld [vmem:[#allocation2 + $0x108] sm:$0xff]
        %v2532 = vld [vmem:[#allocation2 + $0x110] sm:$0xff]
        %v2533 = vld [vmem:[#allocation2 + $0x118] sm:$0xff]
        %v2534 = vld [vmem:[#allocation2 + $0x120] sm:$0xff]
        %v2535 = vld [vmem:[#allocation2 + $0x128] sm:$0xff]
        %v2536 = vld [vmem:[#allocation2 + $0x130] sm:$0xff]
        %v2537 = vld [vmem:[#allocation2 + $0x138] sm:$0xff]
        %v2538 = vld [vmem:[#allocation2 + $0x140] sm:$0xff]
        %v2539 = vld [vmem:[#allocation2 + $0x148] sm:$0xff]
        %v2540 = vld [vmem:[#allocation2 + $0x150] sm:$0xff]
        %v2541 = vld [vmem:[#allocation2 + $0x158] sm:$0xff]
        %v2542 = vld [vmem:[#allocation2 + $0x160] sm:$0xff]
        %v2543 = vld [vmem:[#allocation2 + $0x168] sm:$0xff]
        %v2544 = vld [vmem:[#allocation2 + $0x170] sm:$0xff]
        %v2545 = vld [vmem:[#allocation2 + $0x178] sm:$0xff]
        %v2546 = vld [vmem:[#allocation2 + $0x180] sm:$0xff]
        %v2547 = vld [vmem:[#allocation2 + $0x188] sm:$0xff]
        %v2548 = vld [vmem:[#allocation2 + $0x190] sm:$0xff]
        %v2549 = vld [vmem:[#allocation2 + $0x198] sm:$0xff]
        %v2550 = vld [vmem:[#allocation2 + $0x1a0] sm:$0xff]
        %v2551 = vld [vmem:[#allocation2 + $0x1a8] sm:$0xff]
        %v2552 = vld [vmem:[#allocation2 + $0x1b0] sm:$0xff]
        %v2553 = vld [vmem:[#allocation2 + $0x1b8] sm:$0xff]
        %2555 = vset.pattern.permute.xlu0 0
        %2556 = vperm.xlu0 %2555, %v1818
        %v2557 = vpop.permute.xlu0 %2556
        %v2560 = vunpack.c.l.b16 %v2497
        %v2561 = vunpack.c.h.b16 %v2497
        %v2562 = vpack.c.b16 %v2560, %v2560
        %v2563 = vpack.c.b16 %v2561, %v2561
        %v2621 = vunpack.c.l.b16 %v2498
        %v2622 = vunpack.c.h.b16 %v2498
        %v2623 = vunpack.c.l.b16 %v2499
        %v2624 = vunpack.c.h.b16 %v2499
        %v2625 = vunpack.c.l.b16 %v2500
        %v2626 = vunpack.c.h.b16 %v2500
        %v2627 = vunpack.c.l.b16 %v2501
        %v2628 = vunpack.c.h.b16 %v2501
        %v2629 = vunpack.c.l.b16 %v2502
        %v2630 = vunpack.c.h.b16 %v2502
        %v2631 = vunpack.c.l.b16 %v2503
        %v2632 = vunpack.c.h.b16 %v2503
        %v2633 = vunpack.c.l.b16 %v2504
        %v2634 = vunpack.c.h.b16 %v2504
        %v2635 = vunpack.c.l.b16 %v2505
        %v2636 = vunpack.c.h.b16 %v2505
        %v2637 = vunpack.c.l.b16 %v2506
        %v2638 = vunpack.c.h.b16 %v2506
        %v2639 = vunpack.c.l.b16 %v2507
        %v2640 = vunpack.c.h.b16 %v2507
        %v2641 = vunpack.c.l.b16 %v2508
        %v2642 = vunpack.c.h.b16 %v2508
        %v2643 = vunpack.c.l.b16 %v2509
        %v2644 = vunpack.c.h.b16 %v2509
        %v2645 = vunpack.c.l.b16 %v2510
        %v2646 = vunpack.c.h.b16 %v2510
        %v2647 = vunpack.c.l.b16 %v2511
        %v2648 = vunpack.c.h.b16 %v2511
        %v2649 = vunpack.c.l.b16 %v2512
        %v2650 = vunpack.c.h.b16 %v2512
        %v2651 = vunpack.c.l.b16 %v2513
        %v2652 = vunpack.c.h.b16 %v2513
        %v2653 = vunpack.c.l.b16 %v2514
        %v2654 = vunpack.c.h.b16 %v2514
        %v2655 = vunpack.c.l.b16 %v2515
        %v2656 = vunpack.c.h.b16 %v2515
        %v2657 = vunpack.c.l.b16 %v2516
        %v2658 = vunpack.c.h.b16 %v2516
        %v2659 = vunpack.c.l.b16 %v2517
        %v2660 = vunpack.c.h.b16 %v2517
        %v2661 = vunpack.c.l.b16 %v2518
        %v2662 = vunpack.c.h.b16 %v2518
        %v2663 = vunpack.c.l.b16 %v2519
        %v2664 = vunpack.c.h.b16 %v2519
        %v2665 = vunpack.c.l.b16 %v2520
        %v2666 = vunpack.c.h.b16 %v2520
        %v2667 = vunpack.c.l.b16 %v2521
        %v2668 = vunpack.c.h.b16 %v2521
        %v2669 = vunpack.c.l.b16 %v2522
        %v2670 = vunpack.c.h.b16 %v2522
        %v2671 = vunpack.c.l.b16 %v2523
        %v2672 = vunpack.c.h.b16 %v2523
        %v2673 = vunpack.c.l.b16 %v2524
        %v2674 = vunpack.c.h.b16 %v2524
        %v2675 = vunpack.c.l.b16 %v2525
        %v2676 = vunpack.c.h.b16 %v2525
        %v2677 = vunpack.c.l.b16 %v2526
        %v2678 = vunpack.c.h.b16 %v2526
        %v2679 = vunpack.c.l.b16 %v2527
        %v2680 = vunpack.c.h.b16 %v2527
        %v2681 = vunpack.c.l.b16 %v2528
        %v2682 = vunpack.c.h.b16 %v2528
        %v2683 = vunpack.c.l.b16 %v2529
        %v2684 = vunpack.c.h.b16 %v2529
        %v2685 = vunpack.c.l.b16 %v2530
        %v2686 = vunpack.c.h.b16 %v2530
        %v2687 = vunpack.c.l.b16 %v2531
        %v2688 = vunpack.c.h.b16 %v2531
        %v2689 = vunpack.c.l.b16 %v2532
        %v2690 = vunpack.c.h.b16 %v2532
        %v2691 = vunpack.c.l.b16 %v2533
        %v2692 = vunpack.c.h.b16 %v2533
        %v2693 = vunpack.c.l.b16 %v2534
        %v2694 = vunpack.c.h.b16 %v2534
        %v2695 = vunpack.c.l.b16 %v2535
        %v2696 = vunpack.c.h.b16 %v2535
        %v2697 = vunpack.c.l.b16 %v2536
        %v2698 = vunpack.c.h.b16 %v2536
        %v2699 = vunpack.c.l.b16 %v2537
        %v2700 = vunpack.c.h.b16 %v2537
        %v2701 = vunpack.c.l.b16 %v2538
        %v2702 = vunpack.c.h.b16 %v2538
        %v2703 = vunpack.c.l.b16 %v2539
        %v2704 = vunpack.c.h.b16 %v2539
        %v2705 = vunpack.c.l.b16 %v2540
        %v2706 = vunpack.c.h.b16 %v2540
        %v2707 = vunpack.c.l.b16 %v2541
        %v2708 = vunpack.c.h.b16 %v2541
        %v2709 = vunpack.c.l.b16 %v2542
        %v2710 = vunpack.c.h.b16 %v2542
        %v2711 = vunpack.c.l.b16 %v2543
        %v2712 = vunpack.c.h.b16 %v2543
        %v2713 = vunpack.c.l.b16 %v2544
        %v2714 = vunpack.c.h.b16 %v2544
        %v2715 = vunpack.c.l.b16 %v2545
        %v2716 = vunpack.c.h.b16 %v2545
        %v2717 = vunpack.c.l.b16 %v2546
        %v2718 = vunpack.c.h.b16 %v2546
        %v2719 = vunpack.c.l.b16 %v2547
        %v2720 = vunpack.c.h.b16 %v2547
        %v2721 = vunpack.c.l.b16 %v2548
        %v2722 = vunpack.c.h.b16 %v2548
        %v2723 = vunpack.c.l.b16 %v2549
        %v2724 = vunpack.c.h.b16 %v2549
        %v2725 = vunpack.c.l.b16 %v2550
        %v2726 = vunpack.c.h.b16 %v2550
        %v2727 = vunpack.c.l.b16 %v2551
        %v2728 = vunpack.c.h.b16 %v2551
        %v2729 = vunpack.c.l.b16 %v2552
        %v2730 = vunpack.c.h.b16 %v2552
        %v2731 = vunpack.c.l.b16 %v2553
        %v2732 = vunpack.c.h.b16 %v2553
        %v2733 = vpack.c.b16 %v2625, %v2621
        %v2734 = vpack.c.b16 %v2626, %v2622
        %v2735 = vpack.c.b16 %v2627, %v2623
        %v2736 = vpack.c.b16 %v2628, %v2624
        %v2737 = vpack.c.b16 %v2633, %v2629
        %v2738 = vpack.c.b16 %v2634, %v2630
        %v2739 = vpack.c.b16 %v2635, %v2631
        %v2740 = vpack.c.b16 %v2636, %v2632
        %v2741 = vpack.c.b16 %v2641, %v2637
        %v2742 = vpack.c.b16 %v2642, %v2638
        %v2743 = vpack.c.b16 %v2643, %v2639
        %v2744 = vpack.c.b16 %v2644, %v2640
        %v2745 = vpack.c.b16 %v2649, %v2645
        %v2746 = vpack.c.b16 %v2650, %v2646
        %v2747 = vpack.c.b16 %v2651, %v2647
        %v2748 = vpack.c.b16 %v2652, %v2648
        %v2749 = vpack.c.b16 %v2657, %v2653
        %v2750 = vpack.c.b16 %v2658, %v2654
        %v2751 = vpack.c.b16 %v2659, %v2655
        %v2752 = vpack.c.b16 %v2660, %v2656
        %v2753 = vpack.c.b16 %v2665, %v2661
        %v2754 = vpack.c.b16 %v2666, %v2662
        %v2755 = vpack.c.b16 %v2667, %v2663
        %v2756 = vpack.c.b16 %v2668, %v2664
        %v2757 = vpack.c.b16 %v2673, %v2669
        %v2758 = vpack.c.b16 %v2674, %v2670
        %v2759 = vpack.c.b16 %v2675, %v2671
        %v2760 = vpack.c.b16 %v2676, %v2672
        %v2761 = vpack.c.b16 %v2681, %v2677
        %v2762 = vpack.c.b16 %v2682, %v2678
        %v2763 = vpack.c.b16 %v2683, %v2679
        %v2764 = vpack.c.b16 %v2684, %v2680
        %v2765 = vpack.c.b16 %v2689, %v2685
        %v2766 = vpack.c.b16 %v2690, %v2686
        %v2767 = vpack.c.b16 %v2691, %v2687
        %v2768 = vpack.c.b16 %v2692, %v2688
        %v2769 = vpack.c.b16 %v2697, %v2693
        %v2770 = vpack.c.b16 %v2698, %v2694
        %v2771 = vpack.c.b16 %v2699, %v2695
        %v2772 = vpack.c.b16 %v2700, %v2696
        %v2773 = vpack.c.b16 %v2705, %v2701
        %v2774 = vpack.c.b16 %v2706, %v2702
        %v2775 = vpack.c.b16 %v2707, %v2703
        %v2776 = vpack.c.b16 %v2708, %v2704
        %v2777 = vpack.c.b16 %v2713, %v2709
        %v2778 = vpack.c.b16 %v2714, %v2710
        %v2779 = vpack.c.b16 %v2715, %v2711
        %v2780 = vpack.c.b16 %v2716, %v2712
        %v2781 = vpack.c.b16 %v2721, %v2717
        %v2782 = vpack.c.b16 %v2722, %v2718
        %v2783 = vpack.c.b16 %v2723, %v2719
        %v2784 = vpack.c.b16 %v2724, %v2720
        %v2785 = vpack.c.b16 %v2729, %v2725
        %v2786 = vpack.c.b16 %v2730, %v2726
        %v2787 = vpack.c.b16 %v2731, %v2727
        %v2788 = vpack.c.b16 %v2732, %v2728
        %v2846 = vsel %vm1609, %v2563, 0
        %2848 = vmatpush.bf16.msra.mxu0 %v2761
        %2849 = vmatpush.bf16.msra.mxu0 %v2757
        %2850 = vmatpush.bf16.msra.mxu0 %v2753
        %2851 = vmatpush.bf16.msra.mxu0 %v2749
        %2852 = vmatpush.bf16.msra.mxu0 %v2745
        %2853 = vmatpush.bf16.msra.mxu0 %v2741
        %2854 = vmatpush.bf16.msra.mxu0 %v2737
        %2855 = vmatpush.bf16.msra.mxu0 %v2733
        %2856 = vmatmul.bf16.gmra.mxu0 %v2562
        %v2857 = vpop.f32.mrf.mxu0
        %v2858 = vadd.f32 %v2557, %v2857
        %v2859 = vpop.f32.mrf.mxu0
        %2860 = vdwg.mxu0
        %2861 = vmatpush.bf16.msra.mxu0 0
        %2862 = vmatpush.bf16.msra.mxu0 0
        %2863 = vmatpush.bf16.msra.mxu0 %v2785
        %2864 = vmatpush.bf16.msra.mxu0 %v2781
        %2865 = vmatpush.bf16.msra.mxu0 %v2777
        %2866 = vmatpush.bf16.msra.mxu0 %v2773
        %2867 = vmatpush.bf16.msra.mxu0 %v2769
        %2868 = vmatpush.bf16.msra.mxu0 %v2765
        %2869 = vmatmul.bf16.gmra.mxu0 %v2846
        %v2870 = vpop.f32.mrf.mxu0
        %v2871 = vadd.f32 %v2858, %v2870
        %v2872 = vpop.f32.mrf.mxu0
        %2873 = vdwg.mxu0
        %2874 = vmatpush.bf16.msra.mxu0 %v2762
        %2875 = vmatpush.bf16.msra.mxu0 %v2758
        %2876 = vmatpush.bf16.msra.mxu0 %v2754
        %2877 = vmatpush.bf16.msra.mxu0 %v2750
        %2878 = vmatpush.bf16.msra.mxu0 %v2746
        %2879 = vmatpush.bf16.msra.mxu0 %v2742
        %2880 = vmatpush.bf16.msra.mxu0 %v2738
        %2881 = vmatpush.bf16.msra.mxu0 %v2734
        %2882 = vmatmul.bf16.gmra.mxu0 %v2562
        %v2883 = vpop.f32.mrf.mxu0
        %v2884 = vadd.f32 %v2557, %v2883
        %v2885 = vpop.f32.mrf.mxu0
        %2886 = vdwg.mxu0
        %2887 = vmatpush.bf16.msra.mxu0 0
        %2888 = vmatpush.bf16.msra.mxu0 0
        %2889 = vmatpush.bf16.msra.mxu0 %v2786
        %2890 = vmatpush.bf16.msra.mxu0 %v2782
        %2891 = vmatpush.bf16.msra.mxu0 %v2778
        %2892 = vmatpush.bf16.msra.mxu0 %v2774
        %2893 = vmatpush.bf16.msra.mxu0 %v2770
        %2894 = vmatpush.bf16.msra.mxu0 %v2766
        %2895 = vmatmul.bf16.gmra.mxu0 %v2846
        %v2896 = vpop.f32.mrf.mxu0
        %v2897 = vadd.f32 %v2884, %v2896
        %v2898 = vpop.f32.mrf.mxu0
        %2899 = vdwg.mxu0
        %2900 = vmatpush.bf16.msra.mxu0 %v2763
        %2901 = vmatpush.bf16.msra.mxu0 %v2759
        %2902 = vmatpush.bf16.msra.mxu0 %v2755
        %2903 = vmatpush.bf16.msra.mxu0 %v2751
        %2904 = vmatpush.bf16.msra.mxu0 %v2747
        %2905 = vmatpush.bf16.msra.mxu0 %v2743
        %2906 = vmatpush.bf16.msra.mxu0 %v2739
        %2907 = vmatpush.bf16.msra.mxu0 %v2735
        %2908 = vmatmul.bf16.gmra.mxu0 %v2562
        %v2909 = vpop.f32.mrf.mxu0
        %v2910 = vadd.f32 %v2557, %v2909
        %v2911 = vpop.f32.mrf.mxu0
        %2912 = vdwg.mxu0
        %2913 = vmatpush.bf16.msra.mxu0 0
        %2914 = vmatpush.bf16.msra.mxu0 0
        %2915 = vmatpush.bf16.msra.mxu0 %v2787
        %2916 = vmatpush.bf16.msra.mxu0 %v2783
        %2917 = vmatpush.bf16.msra.mxu0 %v2779
        %2918 = vmatpush.bf16.msra.mxu0 %v2775
        %2919 = vmatpush.bf16.msra.mxu0 %v2771
        %2920 = vmatpush.bf16.msra.mxu0 %v2767
        %2921 = vmatmul.bf16.gmra.mxu0 %v2846
        %v2922 = vpop.f32.mrf.mxu0
        %v2923 = vadd.f32 %v2910, %v2922
        %v2924 = vpop.f32.mrf.mxu0
        %2925 = vdwg.mxu0
        %2926 = vmatpush.bf16.msra.mxu0 %v2764
        %2927 = vmatpush.bf16.msra.mxu0 %v2760
        %2928 = vmatpush.bf16.msra.mxu0 %v2756
        %2929 = vmatpush.bf16.msra.mxu0 %v2752
        %2930 = vmatpush.bf16.msra.mxu0 %v2748
        %2931 = vmatpush.bf16.msra.mxu0 %v2744
        %2932 = vmatpush.bf16.msra.mxu0 %v2740
        %2933 = vmatpush.bf16.msra.mxu0 %v2736
        %2934 = vmatmul.bf16.gmra.mxu0 %v2562
        %v2935 = vpop.f32.mrf.mxu0
        %v2936 = vadd.f32 %v2557, %v2935
        %v2937 = vpop.f32.mrf.mxu0
        %2938 = vdwg.mxu0
        %2939 = vmatpush.bf16.msra.mxu0 0
        %2940 = vmatpush.bf16.msra.mxu0 0
        %2941 = vmatpush.bf16.msra.mxu0 %v2788
        %2942 = vmatpush.bf16.msra.mxu0 %v2784
        %2943 = vmatpush.bf16.msra.mxu0 %v2780
        %2944 = vmatpush.bf16.msra.mxu0 %v2776
        %2945 = vmatpush.bf16.msra.mxu0 %v2772
        %2946 = vmatpush.bf16.msra.mxu0 %v2768
        %2947 = vmatmul.bf16.gmra.mxu0 %v2846
        %v2948 = vpop.f32.mrf.mxu0
        %v2949 = vadd.f32 %v2936, %v2948
        %v2950 = vpop.f32.mrf.mxu0
        %2951 = vdwg.mxu0
        %v2952 = vadd.f32 %v2871, %v423
        %v2953 = vadd.f32 %v2897, %v424
        %v2954 = vadd.f32 %v2923, %v425
        %v2955 = vadd.f32 %v2949, %v426
        %2956 = vst [vmem:[%s421] sm:$0xff] %v2952
        %2957 = vst [vmem:[%s421 + $0x8] sm:$0xff] %v2953
        %2958 = vst [vmem:[%s421 + $0x10] sm:$0xff] %v2954
        %2959 = vst [vmem:[%s421 + $0x18] sm:$0xff] %v2955
        %s2960 = sand.u32 %s273, 1
        %s2961 = scalar_lea.sflag [#allocation5], %s2960
        %s2962 = sand.u32 %s273, 1
        %s2963 = smul.addr %s2962, 32
        %s2964 = scalar_lea.vmem [#allocation8], %s2963
        // Predicated region
        $region73: #{tpu_custom_call.1} parent=63 // pred_check
          %p2965 = pneg %p283
        $region74: #{tpu_custom_call.1} parent=63 // pred_check_branch
          %2967 = sbr.rel (%p2965) target = $region76
        $region75: #{tpu_custom_call.1} parent=63 // pred_region
          %2969 = vsyncadd %s2961, 0
          %s2970 = smul.addr %s29, 4
          %s2971 = smul.addr %s2970, 8
          %s2972 = scalar_lea.hbm %s11, %s2971
          %s2974 = sshll.u32 %s2964, 4
          %s2975 = int_to_ptr.vmem [resolvable:$true] %s2974
          %s2976 = sshll.u32 %s2972, 4
          %s2977 = int_to_ptr.hbm [resolvable:$true] %s2976
          %2979 = dma.vmem_to_hbm [thread:$0]  %s2975, 512, %s2977, %s2961
        $region76: #{tpu_custom_call.1} parent=63 // pred_fallthru
          _
      $region64: #{tpu_custom_call.1} parent=5 // pred_fallthru
        _
      %p2980 = scmp.le.s32.totalorder 2, %s24
      // Predicated region
      $region77: #{tpu_custom_call.1} parent=5 // pred_check
        %p2981 = pneg %p2980
      $region78: #{tpu_custom_call.1} parent=5 // pred_check_branch
        %2983 = sbr.rel (%p2981) target = $region80
      $region79: #{tpu_custom_call.1} parent=5 // pred_region
        %s2984 = ssub.s32 %s24, 2
        // Predicated region
        $region81: #{tpu_custom_call.1} parent=79 // pred_check
          %p2985 = pneg %p289
        $region82: #{tpu_custom_call.1} parent=79 // pred_check_branch
          %2987 = sbr.rel (%p2985) target = $region84
        $region83: #{tpu_custom_call.1} parent=79 // pred_region
          %s2988 = sand.u32 %s274, 1
          %s2989 = scalar_lea.sflag [#allocation5], %s2988
          %s2990 = sand.u32 %s274, 1
          %s2991 = smul.addr %s2990, 32
          %s2992 = scalar_lea.vmem [#allocation8], %s2991
          %2994 = dma.done %s2989, 512
        $region84: #{tpu_custom_call.1} parent=79 // pred_fallthru
          _
      $region80: #{tpu_custom_call.1} parent=5 // pred_fallthru
        _
    $region6: #{tpu_custom_call.1} parent=1 // loop_footer
      %s28 = sadd.s32 1, %s24
    $region7: #{tpu_custom_call.1} parent=1 // loop_footer_branch
      %23 = sbr.rel target = $region3
    $region8: #{tpu_custom_call.1} parent=1 // loop_exit
      _
    %2995 = vsyncpa [#allocation4], 1
    %s2996 = scalar_lea.sflag [#allocation4], 1
    %2997 = vsyncpa %s2996, 1
    %2998 = vsyncpa [#allocation7], 1
    %2999 = vsyncpa [#allocation5], 1
    %s3000 = scalar_lea.sflag [#allocation5], 1
    %3001 = vsyncpa %s3000, 1

</llo_original>
